<compile_context>
chip_gen: v7x
topology: tpu7x:2x2x1
jax: 0.10.0
libtpu: 0.0.40
codegen_flags: <defaults>
</compile_context>

<pallas_src>
import functools
import math

import jax
import jax.numpy as jnp
from jax import lax
from jax.experimental import pallas as pl
from jax.experimental.pallas import tpu as pltpu


def _supports_buffered():
    if not hasattr(pl, "Buffered"):
        return False
    try:
        pl.BlockSpec((8, 128), lambda b: (0, 0), pipeline_mode=pl.Buffered(1))
        return True
    except Exception:
        return False


_SUPPORTS_BUFFERED = _supports_buffered()


def _racing_mha_kernel(*refs, num_heads, inv_scale, has_mask):
    if has_mask:
        (q_ref, k_ref, v_ref, mask_ref,
         wq_ref, bq_ref, wk_ref, bk_ref, wv_ref, bv_ref,
         wo_ref, bo_ref, out_ref, ctx_ref) = refs
    else:
        (q_ref, k_ref, v_ref,
         wq_ref, bq_ref, wk_ref, bk_ref, wv_ref, bv_ref,
         wo_ref, bo_ref, out_ref, ctx_ref) = refs
        mask_ref = None

    # bf16 MXU operands; f32 accumulation everywhere via preferred_element_type.
    q_in = q_ref[0].astype(jnp.bfloat16)   # (S, D)
    k_in = k_ref[0].astype(jnp.bfloat16)
    v_in = v_ref[0].astype(jnp.bfloat16)

    S, D = q_in.shape
    d_k = D // num_heads

    # --- Q/K/V projections: bf16 x bf16 -> f32, f32 bias add, downcast once. ---
    # 1/sqrt(d_k) is folded into Q here (S*D muls) instead of scaling (S,S) scores/head.
    Q = ((jnp.dot(q_in, wq_ref[...], preferred_element_type=jnp.float32)
          + bq_ref[...]) * inv_scale).astype(jnp.bfloat16)
    K = (jnp.dot(k_in, wk_ref[...], preferred_element_type=jnp.float32)
         + bk_ref[...]).astype(jnp.bfloat16)
    V = (jnp.dot(v_in, wv_ref[...], preferred_element_type=jnp.float32)
         + bv_ref[...]).astype(jnp.bfloat16)

    # Additive mask bias computed ONCE per grid step (hoisted out of the head loop).
    if has_mask:
        mask_bias = jnp.where(mask_ref[0] == 0.0, -1e9, 0.0).astype(jnp.float32)

    # Static (unrolled) per-head loop; each head writes its context slice into the
    # shared bf16 VMEM scratch so the output projection is one big matmul.
    for h in range(num_heads):
        sl = slice(h * d_k, (h + 1) * d_k)
        q_h = Q[:, sl]                       # (S, d_k) bf16
        k_h = K[:, sl]
        v_h = V[:, sl]

        # scores = (q_h / sqrt(d_k)) @ k_h^T   (racing_bias omitted: uniform row shift
        # cancels exactly in softmax; masked entries underflow to 0 either way)
        scores = lax.dot_general(q_h, k_h, (((1,), (1,)), ((), ())),
                                 preferred_element_type=jnp.float32)
        if has_mask:
            scores = scores + mask_bias

        # Numerically-stable softmax with DEFERRED normalization: normalize the
        # (S, d_k) context instead of the (S, S) probabilities; reciprocal -> EUP.
        m = jnp.max(scores, axis=-1, keepdims=True)
        e = jnp.exp(scores - m)              # f32 exp (v5e EUP has no bf16)
        l = jnp.sum(e, axis=-1, keepdims=True)
        ctx_un = jnp.dot(e.astype(jnp.bfloat16), v_h,
                         preferred_element_type=jnp.float32)     # (S, d_k)
        # (dropout on attention probs is identity in eval mode)
        ctx_ref[:, sl] = (ctx_un * pl.reciprocal(l, approx=True)).astype(jnp.bfloat16)

    # --- Single concatenated output projection: (S,D) @ (D,D) + bias. ---
    out = (jnp.dot(ctx_ref[...], wo_ref[...], preferred_element_type=jnp.float32)
           + bo_ref[...])
    out_ref[0] = out.astype(out_ref.dtype)


def racing_multi_head_attention(query, key, value, params, mask=None, *, num_heads):
    B, S, D = query.shape
    assert D % num_heads == 0
    inv_scale = 1.0 / math.sqrt(D // num_heads)
    has_mask = mask is not None

    weight_args = [params["wq"], params["bq"], params["wk"], params["bk"],
                   params["wv"], params["bv"], params["wo"], params["bo"]]

    inputs = [query, key, value]
    if has_mask:
        inputs.append(jnp.asarray(mask, jnp.float32).reshape(B, S, S))
    inputs += weight_args

    kernel = functools.partial(_racing_mha_kernel, num_heads=num_heads,
                               inv_scale=inv_scale, has_mask=has_mask)

    # Real VMEM footprint: double-buffered per-batch blocks + weights (single- or
    # double-buffered) + the bf16 ctx scratch. Used for an explicit scoped-VMEM limit.
    def footprint(weight_bufs):
        f = 3 * 2 * S * D * query.dtype.itemsize            # q/k/v blocks (2 bufs each)
        f += 2 * S * D * query.dtype.itemsize                # out block
        if has_mask:
            f += 2 * S * S * 4
        f += weight_bufs * sum(math.prod(w.shape) * w.dtype.itemsize for w in weight_args)
        f += S * D * 2                                       # ctx scratch (bf16)
        return f

    flops = B * (4 * 2 * S * D * D          # Q/K/V + output projections
                 + 2 * 2 * S * S * D)       # scores + probs @ V (all heads)
    cost = pl.CostEstimate(
        flops=flops,
        transcendentals=B * num_heads * S * S,
        bytes_accessed=int(sum(x.nbytes for x in inputs)
                           + B * S * D * query.dtype.itemsize))

    def build(single_buffer_weights):
        def row_spec(last):
            return pl.BlockSpec((1, S, last), lambda b: (b, 0, 0))

        def const_spec(shape):
            nd = len(shape)
            kw = {}
            if single_buffer_weights:
                kw["pipeline_mode"] = pl.Buffered(1)         # weights never change
            return pl.BlockSpec(shape, lambda b, _nd=nd: (0,) * _nd, **kw)

        in_specs = [row_spec(D), row_spec(D), row_spec(D)]
        if has_mask:
            in_specs.append(row_spec(S))
        in_specs += [const_spec(w.shape) for w in weight_args]

        weight_bufs = 1 if single_buffer_weights else 2
        vmem_limit = min(128 * 1024 * 1024,
                         max(32 * 1024 * 1024, 2 * footprint(weight_bufs)))

        return pl.pallas_call(
            kernel,
            out_shape=jax.ShapeDtypeStruct((B, S, D), query.dtype),
            grid=(B,),
            in_specs=in_specs,
            out_specs=pl.BlockSpec((1, S, D), lambda b: (b, 0, 0)),
            scratch_shapes=[pltpu.VMEM((S, D), jnp.bfloat16)],
            compiler_params=pltpu.CompilerParams(
                dimension_semantics=("parallel",),
                vmem_limit_bytes=int(vmem_limit)),
            cost_estimate=cost,
        )

    use_single = _SUPPORTS_BUFFERED
    try:
        return build(use_single)(*inputs)
    except Exception:
        if not use_single:
            raise
        # Fallback for JAX versions that reject Buffered(1) on constant-index BlockSpecs.
        return build(False)(*inputs)


def init_params(key, d_model, num_heads):
    ks = jax.random.split(key, 9)

    def lin(kw, kb, fan_in, fan_out):
        bound = 1.0 / math.sqrt(fan_in)
        # Weights stored pre-transposed (in, out) relative to nn.Linear, in bf16 for the MXU.
        w = jax.random.uniform(kw, (fan_in, fan_out), jnp.float32, -bound, bound)
        b = jax.random.uniform(kb, (1, fan_out), jnp.float32, -bound, bound)
        return w.astype(jnp.bfloat16), b

    wq, bq = lin(ks[0], ks[1], d_model, d_model)
    wk, bk = lin(ks[2], ks[3], d_model, d_model)
    wv, bv = lin(ks[4], ks[5], d_model, d_model)
    wo, bo = lin(ks[6], ks[7], d_model, d_model)
    # torch initializes racing_bias to zeros; use nonzero values so the reference exercises
    # the bias path and the test confirms the in-kernel softmax-shift cancellation.
    racing_bias = 0.1 * jax.random.normal(ks[8], (num_heads,), jnp.float32)
    return dict(wq=wq, bq=bq, wk=wk, bk=bk, wv=wv, bv=bv, wo=wo, bo=bo,
                racing_bias=racing_bias)


def reference_forward(query, key, value, params, mask=None, *, num_heads):
    # Pure-JAX f32 reference (HIGHEST precision) on the same bf16-stored weights,
    # including the racing_bias add and torch masked_fill ordering.
    B, S, D = query.shape
    d_k = D // num_heads
    hp = lax.Precision.HIGHEST
    wq = params["wq"].astype(jnp.float32); wk = params["wk"].astype(jnp.float32)
    wv = params["wv"].astype(jnp.float32); wo = params["wo"].astype(jnp.float32)
    Q = jnp.matmul(query, wq, precision=hp) + params["bq"]
    K = jnp.matmul(key, wk, precision=hp) + params["bk"]
    V = jnp.matmul(value, wv, precision=hp) + params["bv"]
    Qh = Q.reshape(B, S, num_heads, d_k).transpose(0, 2, 1, 3)
    Kh = K.reshape(B, S, num_heads, d_k).transpose(0, 2, 1, 3)
    Vh = V.reshape(B, S, num_heads, d_k).transpose(0, 2, 1, 3)
    scores = jnp.einsum("bhqd,bhkd->bhqk", Qh, Kh, precision=hp) / math.sqrt(d_k)
    scores = scores + params["racing_bias"].reshape(1, num_heads, 1, 1)
    if mask is not None:
        m = jnp.asarray(mask).reshape(B, 1, S, S)
        scores = jnp.where(m == 0, -1e9, scores)
    attn = jax.nn.softmax(scores, axis=-1)
    ctx = jnp.einsum("bhqk,bhkd->bhqd", attn, Vh, precision=hp)
    ctx = ctx.transpose(0, 2, 1, 3).reshape(B, S, D)
    return jnp.matmul(ctx, wo, precision=hp) + params["bo"]


if __name__ == "__main__":
    B, S, d_model, num_heads = 2, 8, 32, 4

    root = jax.random.PRNGKey(0)
    kq, kk, kv, kp = jax.random.split(root, 4)
    query = jax.random.normal(kq, (B, S, d_model), jnp.float32)
    key_in = jax.random.normal(kk, (B, S, d_model), jnp.float32)
    value = jax.random.normal(kv, (B, S, d_model), jnp.float32)
    params = init_params(kp, d_model, num_heads)

    # bf16 matmul chain vs. HIGHEST-precision f32 reference -> looser tolerance.
    ATOL = RTOL = 3e-2

    # --- no mask ---
    out = racing_multi_head_attention(query, key_in, value, params,
                                      mask=None, num_heads=num_heads)
    out = jax.block_until_ready(out)
    ref = reference_forward(query, key_in, value, params, mask=None,
                            num_heads=num_heads)
    assert out.shape == (B, S, d_model)
    assert jnp.allclose(out, ref, atol=ATOL, rtol=RTOL), \
        float(jnp.max(jnp.abs(out - ref)))

    # --- causal mask path ---
    causal = jnp.tril(jnp.ones((S, S), jnp.float32))
    mask = jnp.broadcast_to(causal, (B, S, S))
    out_m = racing_multi_head_attention(query, key_in, value, params,
                                        mask=mask, num_heads=num_heads)
    out_m = jax.block_until_ready(out_m)
    ref_m = reference_forward(query, key_in, value, params, mask=mask,
                              num_heads=num_heads)
    assert jnp.allclose(out_m, ref_m, atol=ATOL, rtol=RTOL), \
        float(jnp.max(jnp.abs(out_m - ref_m)))

    print("KERNEL_OK")
</pallas_src>

<mosaic_0001>
module attributes {stable_mosaic.version = 11 : i64} {
  func.func @_racing_mha_kernel(%arg0: i32, %arg1: memref<1x8x32xf32, #tpu.memory_space<vmem>>, %arg2: memref<1x8x32xf32, #tpu.memory_space<vmem>>, %arg3: memref<1x8x32xf32, #tpu.memory_space<vmem>>, %arg4: memref<32x32xbf16, #tpu.memory_space<vmem>>, %arg5: memref<1x32xf32, #tpu.memory_space<vmem>>, %arg6: memref<32x32xbf16, #tpu.memory_space<vmem>>, %arg7: memref<1x32xf32, #tpu.memory_space<vmem>>, %arg8: memref<32x32xbf16, #tpu.memory_space<vmem>>, %arg9: memref<1x32xf32, #tpu.memory_space<vmem>>, %arg10: memref<32x32xbf16, #tpu.memory_space<vmem>>, %arg11: memref<1x32xf32, #tpu.memory_space<vmem>>, %arg12: memref<1x8x32xf32, #tpu.memory_space<vmem>>, %arg13: memref<8x32xbf16, #tpu.memory_space<vmem>>) attributes {dimension_semantics = [#tpu.dimension_semantics<parallel>], iteration_bounds = array<i64: 2>, scalar_prefetch = 0 : i64, scratch_operands = 1 : i64, tpu.core_type = #tpu.core_type<tc>, window_params = [{transform_indices = @transform_0, window_bounds = array<i64: 1, 8, 32>}, {transform_indices = @transform_1, window_bounds = array<i64: 1, 8, 32>}, {transform_indices = @transform_2, window_bounds = array<i64: 1, 8, 32>}, {pipeline_mode = #tpu.pipeline_mode<synchronous>, transform_indices = @transform_3, window_bounds = array<i64: 32, 32>}, {pipeline_mode = #tpu.pipeline_mode<synchronous>, transform_indices = @transform_4, window_bounds = array<i64: 1, 32>}, {pipeline_mode = #tpu.pipeline_mode<synchronous>, transform_indices = @transform_5, window_bounds = array<i64: 32, 32>}, {pipeline_mode = #tpu.pipeline_mode<synchronous>, transform_indices = @transform_6, window_bounds = array<i64: 1, 32>}, {pipeline_mode = #tpu.pipeline_mode<synchronous>, transform_indices = @transform_7, window_bounds = array<i64: 32, 32>}, {pipeline_mode = #tpu.pipeline_mode<synchronous>, transform_indices = @transform_8, window_bounds = array<i64: 1, 32>}, {pipeline_mode = #tpu.pipeline_mode<synchronous>, transform_indices = @transform_9, window_bounds = array<i64: 32, 32>}, {pipeline_mode = #tpu.pipeline_mode<synchronous>, transform_indices = @transform_10, window_bounds = array<i64: 1, 32>}, {transform_indices = @transform_11, window_bounds = array<i64: 1, 8, 32>}]} {
    %c0 = arith.constant 0 : index
    %c0_0 = arith.constant 0 : index
    %c0_1 = arith.constant 0 : index
    %0 = vector.load %arg1[%c0, %c0_0, %c0_1] : memref<1x8x32xf32, #tpu.memory_space<vmem>>, vector<1x8x32xf32>
    %1 = vector.shape_cast %0 : vector<1x8x32xf32> to vector<8x32xf32>
    %2 = arith.truncf %1 : vector<8x32xf32> to vector<8x32xbf16>
    %c0_2 = arith.constant 0 : index
    %c0_3 = arith.constant 0 : index
    %c0_4 = arith.constant 0 : index
    %3 = vector.load %arg2[%c0_2, %c0_3, %c0_4] : memref<1x8x32xf32, #tpu.memory_space<vmem>>, vector<1x8x32xf32>
    %4 = vector.shape_cast %3 : vector<1x8x32xf32> to vector<8x32xf32>
    %5 = arith.truncf %4 : vector<8x32xf32> to vector<8x32xbf16>
    %c0_5 = arith.constant 0 : index
    %c0_6 = arith.constant 0 : index
    %c0_7 = arith.constant 0 : index
    %6 = vector.load %arg3[%c0_5, %c0_6, %c0_7] : memref<1x8x32xf32, #tpu.memory_space<vmem>>, vector<1x8x32xf32>
    %7 = vector.shape_cast %6 : vector<1x8x32xf32> to vector<8x32xf32>
    %8 = arith.truncf %7 : vector<8x32xf32> to vector<8x32xbf16>
    %c0_8 = arith.constant 0 : index
    %c0_9 = arith.constant 0 : index
    %9 = vector.load %arg4[%c0_8, %c0_9] : memref<32x32xbf16, #tpu.memory_space<vmem>>, vector<32x32xbf16>
    %cst = arith.constant dense<0.000000e+00> : vector<8x32xf32>
    %10 = tpu.matmul %2, %9, %cst {dimension_numbers = #tpu.dot_dimension_numbers<[1], [0], [0], [1], [0, 0, 1, 1], [], []>} : vector<8x32xbf16>, vector<32x32xbf16>, vector<8x32xf32> -> vector<8x32xf32>
    %c0_10 = arith.constant 0 : index
    %c0_11 = arith.constant 0 : index
    %11 = vector.load %arg5[%c0_10, %c0_11] : memref<1x32xf32, #tpu.memory_space<vmem>>, vector<1x32xf32>
    %12 = vector.broadcast %11 : vector<1x32xf32> to vector<8x32xf32>
    %13 = arith.addf %10, %12 : vector<8x32xf32>
    %cst_12 = arith.constant 0.353553385 : f32
    %14 = vector.broadcast %cst_12 : f32 to vector<8x32xf32>
    %15 = arith.mulf %13, %14 : vector<8x32xf32>
    %16 = arith.truncf %15 : vector<8x32xf32> to vector<8x32xbf16>
    %c0_13 = arith.constant 0 : index
    %c0_14 = arith.constant 0 : index
    %17 = vector.load %arg6[%c0_13, %c0_14] : memref<32x32xbf16, #tpu.memory_space<vmem>>, vector<32x32xbf16>
    %cst_15 = arith.constant dense<0.000000e+00> : vector<8x32xf32>
    %18 = tpu.matmul %5, %17, %cst_15 {dimension_numbers = #tpu.dot_dimension_numbers<[1], [0], [0], [1], [0, 0, 1, 1], [], []>} : vector<8x32xbf16>, vector<32x32xbf16>, vector<8x32xf32> -> vector<8x32xf32>
    %c0_16 = arith.constant 0 : index
    %c0_17 = arith.constant 0 : index
    %19 = vector.load %arg7[%c0_16, %c0_17] : memref<1x32xf32, #tpu.memory_space<vmem>>, vector<1x32xf32>
    %20 = vector.broadcast %19 : vector<1x32xf32> to vector<8x32xf32>
    %21 = arith.addf %18, %20 : vector<8x32xf32>
    %22 = arith.truncf %21 : vector<8x32xf32> to vector<8x32xbf16>
    %c0_18 = arith.constant 0 : index
    %c0_19 = arith.constant 0 : index
    %23 = vector.load %arg8[%c0_18, %c0_19] : memref<32x32xbf16, #tpu.memory_space<vmem>>, vector<32x32xbf16>
    %cst_20 = arith.constant dense<0.000000e+00> : vector<8x32xf32>
    %24 = tpu.matmul %8, %23, %cst_20 {dimension_numbers = #tpu.dot_dimension_numbers<[1], [0], [0], [1], [0, 0, 1, 1], [], []>} : vector<8x32xbf16>, vector<32x32xbf16>, vector<8x32xf32> -> vector<8x32xf32>
    %c0_21 = arith.constant 0 : index
    %c0_22 = arith.constant 0 : index
    %25 = vector.load %arg9[%c0_21, %c0_22] : memref<1x32xf32, #tpu.memory_space<vmem>>, vector<1x32xf32>
    %26 = vector.broadcast %25 : vector<1x32xf32> to vector<8x32xf32>
    %27 = arith.addf %24, %26 : vector<8x32xf32>
    %28 = arith.truncf %27 : vector<8x32xf32> to vector<8x32xbf16>
    %29 = vector.extract_strided_slice %16 {offsets = [0, 0], sizes = [8, 8], strides = [1, 1]} : vector<8x32xbf16> to vector<8x8xbf16>
    %30 = vector.extract_strided_slice %22 {offsets = [0, 0], sizes = [8, 8], strides = [1, 1]} : vector<8x32xbf16> to vector<8x8xbf16>
    %31 = vector.extract_strided_slice %28 {offsets = [0, 0], sizes = [8, 8], strides = [1, 1]} : vector<8x32xbf16> to vector<8x8xbf16>
    %cst_23 = arith.constant dense<0.000000e+00> : vector<8x8xf32>
    %32 = tpu.matmul %29, %30, %cst_23 {dimension_numbers = #tpu.dot_dimension_numbers<[1], [1], [0], [0], [0, 0, 1, 0], [], []>} : vector<8x8xbf16>, vector<8x8xbf16>, vector<8x8xf32> -> vector<8x8xf32>
    %cst_24 = arith.constant dense<0xFF800000> : vector<8xf32>
    %33 = vector.multi_reduction <maximumf>, %32, %cst_24 [1] : vector<8x8xf32> to vector<8xf32>
    %34 = vector.shape_cast %33 : vector<8xf32> to vector<8x1xf32>
    %35 = vector.broadcast %34 : vector<8x1xf32> to vector<8x8xf32>
    %36 = arith.subf %32, %35 : vector<8x8xf32>
    %37 = math.exp %36 : vector<8x8xf32>
    %cst_25 = arith.constant dense<0.000000e+00> : vector<8xf32>
    %38 = vector.multi_reduction <add>, %37, %cst_25 [1] : vector<8x8xf32> to vector<8xf32>
    %39 = vector.shape_cast %38 : vector<8xf32> to vector<8x1xf32>
    %40 = arith.truncf %37 : vector<8x8xf32> to vector<8x8xbf16>
    %cst_26 = arith.constant dense<0.000000e+00> : vector<8x8xf32>
    %41 = tpu.matmul %40, %31, %cst_26 {dimension_numbers = #tpu.dot_dimension_numbers<[1], [0], [0], [1], [0, 0, 1, 1], [], []>} : vector<8x8xbf16>, vector<8x8xbf16>, vector<8x8xf32> -> vector<8x8xf32>
    %42 = tpu.reciprocal %39 {approx = true} : vector<8x1xf32> -> vector<8x1xf32>
    %43 = vector.broadcast %42 : vector<8x1xf32> to vector<8x8xf32>
    %44 = arith.mulf %41, %43 : vector<8x8xf32>
    %45 = arith.truncf %44 : vector<8x8xf32> to vector<8x8xbf16>
    %c0_27 = arith.constant 0 : index
    %c0_28 = arith.constant 0 : index
    %46 = vector.load %arg13[%c0_27, %c0_28] : memref<8x32xbf16, #tpu.memory_space<vmem>>, vector<8x8xbf16>
    tpu.vector_store %arg13[%c0_27, %c0_28], %45 {strides = array<i32>} : memref<8x32xbf16, #tpu.memory_space<vmem>>, vector<8x8xbf16>,
    %47 = vector.extract_strided_slice %16 {offsets = [0, 8], sizes = [8, 8], strides = [1, 1]} : vector<8x32xbf16> to vector<8x8xbf16>
    %48 = vector.extract_strided_slice %22 {offsets = [0, 8], sizes = [8, 8], strides = [1, 1]} : vector<8x32xbf16> to vector<8x8xbf16>
    %49 = vector.extract_strided_slice %28 {offsets = [0, 8], sizes = [8, 8], strides = [1, 1]} : vector<8x32xbf16> to vector<8x8xbf16>
    %cst_29 = arith.constant dense<0.000000e+00> : vector<8x8xf32>
    %50 = tpu.matmul %47, %48, %cst_29 {dimension_numbers = #tpu.dot_dimension_numbers<[1], [1], [0], [0], [0, 0, 1, 0], [], []>} : vector<8x8xbf16>, vector<8x8xbf16>, vector<8x8xf32> -> vector<8x8xf32>
    %cst_30 = arith.constant dense<0xFF800000> : vector<8xf32>
    %51 = vector.multi_reduction <maximumf>, %50, %cst_30 [1] : vector<8x8xf32> to vector<8xf32>
    %52 = vector.shape_cast %51 : vector<8xf32> to vector<8x1xf32>
    %53 = vector.broadcast %52 : vector<8x1xf32> to vector<8x8xf32>
    %54 = arith.subf %50, %53 : vector<8x8xf32>
    %55 = math.exp %54 : vector<8x8xf32>
    %cst_31 = arith.constant dense<0.000000e+00> : vector<8xf32>
    %56 = vector.multi_reduction <add>, %55, %cst_31 [1] : vector<8x8xf32> to vector<8xf32>
    %57 = vector.shape_cast %56 : vector<8xf32> to vector<8x1xf32>
    %58 = arith.truncf %55 : vector<8x8xf32> to vector<8x8xbf16>
    %cst_32 = arith.constant dense<0.000000e+00> : vector<8x8xf32>
    %59 = tpu.matmul %58, %49, %cst_32 {dimension_numbers = #tpu.dot_dimension_numbers<[1], [0], [0], [1], [0, 0, 1, 1], [], []>} : vector<8x8xbf16>, vector<8x8xbf16>, vector<8x8xf32> -> vector<8x8xf32>
    %60 = tpu.reciprocal %57 {approx = true} : vector<8x1xf32> -> vector<8x1xf32>
    %61 = vector.broadcast %60 : vector<8x1xf32> to vector<8x8xf32>
    %62 = arith.mulf %59, %61 : vector<8x8xf32>
    %63 = arith.truncf %62 : vector<8x8xf32> to vector<8x8xbf16>
    %c0_33 = arith.constant 0 : index
    %c8 = arith.constant 8 : index
    %64 = vector.load %arg13[%c0_33, %c8] : memref<8x32xbf16, #tpu.memory_space<vmem>>, vector<8x8xbf16>
    tpu.vector_store %arg13[%c0_33, %c8], %63 {strides = array<i32>} : memref<8x32xbf16, #tpu.memory_space<vmem>>, vector<8x8xbf16>,
    %65 = vector.extract_strided_slice %16 {offsets = [0, 16], sizes = [8, 8], strides = [1, 1]} : vector<8x32xbf16> to vector<8x8xbf16>
    %66 = vector.extract_strided_slice %22 {offsets = [0, 16], sizes = [8, 8], strides = [1, 1]} : vector<8x32xbf16> to vector<8x8xbf16>
    %67 = vector.extract_strided_slice %28 {offsets = [0, 16], sizes = [8, 8], strides = [1, 1]} : vector<8x32xbf16> to vector<8x8xbf16>
    %cst_34 = arith.constant dense<0.000000e+00> : vector<8x8xf32>
    %68 = tpu.matmul %65, %66, %cst_34 {dimension_numbers = #tpu.dot_dimension_numbers<[1], [1], [0], [0], [0, 0, 1, 0], [], []>} : vector<8x8xbf16>, vector<8x8xbf16>, vector<8x8xf32> -> vector<8x8xf32>
    %cst_35 = arith.constant dense<0xFF800000> : vector<8xf32>
    %69 = vector.multi_reduction <maximumf>, %68, %cst_35 [1] : vector<8x8xf32> to vector<8xf32>
    %70 = vector.shape_cast %69 : vector<8xf32> to vector<8x1xf32>
    %71 = vector.broadcast %70 : vector<8x1xf32> to vector<8x8xf32>
    %72 = arith.subf %68, %71 : vector<8x8xf32>
    %73 = math.exp %72 : vector<8x8xf32>
    %cst_36 = arith.constant dense<0.000000e+00> : vector<8xf32>
    %74 = vector.multi_reduction <add>, %73, %cst_36 [1] : vector<8x8xf32> to vector<8xf32>
    %75 = vector.shape_cast %74 : vector<8xf32> to vector<8x1xf32>
    %76 = arith.truncf %73 : vector<8x8xf32> to vector<8x8xbf16>
    %cst_37 = arith.constant dense<0.000000e+00> : vector<8x8xf32>
    %77 = tpu.matmul %76, %67, %cst_37 {dimension_numbers = #tpu.dot_dimension_numbers<[1], [0], [0], [1], [0, 0, 1, 1], [], []>} : vector<8x8xbf16>, vector<8x8xbf16>, vector<8x8xf32> -> vector<8x8xf32>
    %78 = tpu.reciprocal %75 {approx = true} : vector<8x1xf32> -> vector<8x1xf32>
    %79 = vector.broadcast %78 : vector<8x1xf32> to vector<8x8xf32>
    %80 = arith.mulf %77, %79 : vector<8x8xf32>
    %81 = arith.truncf %80 : vector<8x8xf32> to vector<8x8xbf16>
    %c0_38 = arith.constant 0 : index
    %c16 = arith.constant 16 : index
    %82 = vector.load %arg13[%c0_38, %c16] : memref<8x32xbf16, #tpu.memory_space<vmem>>, vector<8x8xbf16>
    tpu.vector_store %arg13[%c0_38, %c16], %81 {strides = array<i32>} : memref<8x32xbf16, #tpu.memory_space<vmem>>, vector<8x8xbf16>,
    %83 = vector.extract_strided_slice %16 {offsets = [0, 24], sizes = [8, 8], strides = [1, 1]} : vector<8x32xbf16> to vector<8x8xbf16>
    %84 = vector.extract_strided_slice %22 {offsets = [0, 24], sizes = [8, 8], strides = [1, 1]} : vector<8x32xbf16> to vector<8x8xbf16>
    %85 = vector.extract_strided_slice %28 {offsets = [0, 24], sizes = [8, 8], strides = [1, 1]} : vector<8x32xbf16> to vector<8x8xbf16>
    %cst_39 = arith.constant dense<0.000000e+00> : vector<8x8xf32>
    %86 = tpu.matmul %83, %84, %cst_39 {dimension_numbers = #tpu.dot_dimension_numbers<[1], [1], [0], [0], [0, 0, 1, 0], [], []>} : vector<8x8xbf16>, vector<8x8xbf16>, vector<8x8xf32> -> vector<8x8xf32>
    %cst_40 = arith.constant dense<0xFF800000> : vector<8xf32>
    %87 = vector.multi_reduction <maximumf>, %86, %cst_40 [1] : vector<8x8xf32> to vector<8xf32>
    %88 = vector.shape_cast %87 : vector<8xf32> to vector<8x1xf32>
    %89 = vector.broadcast %88 : vector<8x1xf32> to vector<8x8xf32>
    %90 = arith.subf %86, %89 : vector<8x8xf32>
    %91 = math.exp %90 : vector<8x8xf32>
    %cst_41 = arith.constant dense<0.000000e+00> : vector<8xf32>
    %92 = vector.multi_reduction <add>, %91, %cst_41 [1] : vector<8x8xf32> to vector<8xf32>
    %93 = vector.shape_cast %92 : vector<8xf32> to vector<8x1xf32>
    %94 = arith.truncf %91 : vector<8x8xf32> to vector<8x8xbf16>
    %cst_42 = arith.constant dense<0.000000e+00> : vector<8x8xf32>
    %95 = tpu.matmul %94, %85, %cst_42 {dimension_numbers = #tpu.dot_dimension_numbers<[1], [0], [0], [1], [0, 0, 1, 1], [], []>} : vector<8x8xbf16>, vector<8x8xbf16>, vector<8x8xf32> -> vector<8x8xf32>
    %96 = tpu.reciprocal %93 {approx = true} : vector<8x1xf32> -> vector<8x1xf32>
    %97 = vector.broadcast %96 : vector<8x1xf32> to vector<8x8xf32>
    %98 = arith.mulf %95, %97 : vector<8x8xf32>
    %99 = arith.truncf %98 : vector<8x8xf32> to vector<8x8xbf16>
    %c0_43 = arith.constant 0 : index
    %c24 = arith.constant 24 : index
    %100 = vector.load %arg13[%c0_43, %c24] : memref<8x32xbf16, #tpu.memory_space<vmem>>, vector<8x8xbf16>
    tpu.vector_store %arg13[%c0_43, %c24], %99 {strides = array<i32>} : memref<8x32xbf16, #tpu.memory_space<vmem>>, vector<8x8xbf16>,
    %c0_44 = arith.constant 0 : index
    %c0_45 = arith.constant 0 : index
    %101 = vector.load %arg13[%c0_44, %c0_45] : memref<8x32xbf16, #tpu.memory_space<vmem>>, vector<8x32xbf16>
    %c0_46 = arith.constant 0 : index
    %c0_47 = arith.constant 0 : index
    %102 = vector.load %arg10[%c0_46, %c0_47] : memref<32x32xbf16, #tpu.memory_space<vmem>>, vector<32x32xbf16>
    %cst_48 = arith.constant dense<0.000000e+00> : vector<8x32xf32>
    %103 = tpu.matmul %101, %102, %cst_48 {dimension_numbers = #tpu.dot_dimension_numbers<[1], [0], [0], [1], [0, 0, 1, 1], [], []>} : vector<8x32xbf16>, vector<32x32xbf16>, vector<8x32xf32> -> vector<8x32xf32>
    %c0_49 = arith.constant 0 : index
    %c0_50 = arith.constant 0 : index
    %104 = vector.load %arg11[%c0_49, %c0_50] : memref<1x32xf32, #tpu.memory_space<vmem>>, vector<1x32xf32>
    %105 = vector.broadcast %104 : vector<1x32xf32> to vector<8x32xf32>
    %106 = arith.addf %103, %105 : vector<8x32xf32>
    %c0_51 = arith.constant 0 : index
    %c0_52 = arith.constant 0 : index
    %c0_53 = arith.constant 0 : index
    %107 = vector.load %arg12[%c0_51, %c0_52, %c0_53] : memref<1x8x32xf32, #tpu.memory_space<vmem>>, vector<1x8x32xf32>
    %108 = vector.shape_cast %107 : vector<1x8x32xf32> to vector<8x32xf32>
    %109 = vector.shape_cast %106 : vector<8x32xf32> to vector<1x8x32xf32>
    tpu.vector_store %arg12[%c0_51, %c0_52, %c0_53], %109 {strides = array<i32>} : memref<1x8x32xf32, #tpu.memory_space<vmem>>, vector<1x8x32xf32>,
    return
  }
  func.func @transform_0(%arg0: i32) -> (i32, i32, i32) {
    %c0_i32 = arith.constant 0 : i32
    %c0_i32_0 = arith.constant 0 : i32
    %c0_i32_1 = arith.constant 0 : i32
    return %arg0, %c0_i32, %c0_i32_0 : i32, i32, i32
  }
  func.func @transform_1(%arg0: i32) -> (i32, i32, i32) {
    %c0_i32 = arith.constant 0 : i32
    %c0_i32_0 = arith.constant 0 : i32
    %c0_i32_1 = arith.constant 0 : i32
    return %arg0, %c0_i32, %c0_i32_0 : i32, i32, i32
  }
  func.func @transform_2(%arg0: i32) -> (i32, i32, i32) {
    %c0_i32 = arith.constant 0 : i32
    %c0_i32_0 = arith.constant 0 : i32
    %c0_i32_1 = arith.constant 0 : i32
    return %arg0, %c0_i32, %c0_i32_0 : i32, i32, i32
  }
  func.func @transform_3(%arg0: i32) -> (i32, i32) {
    %c0_i32 = arith.constant 0 : i32
    %c0_i32_0 = arith.constant 0 : i32
    %c0_i32_1 = arith.constant 0 : i32
    return %c0_i32, %c0_i32_0 : i32, i32
  }
  func.func @transform_4(%arg0: i32) -> (i32, i32) {
    %c0_i32 = arith.constant 0 : i32
    %c0_i32_0 = arith.constant 0 : i32
    %c0_i32_1 = arith.constant 0 : i32
    return %c0_i32, %c0_i32_0 : i32, i32
  }
  func.func @transform_5(%arg0: i32) -> (i32, i32) {
    %c0_i32 = arith.constant 0 : i32
    %c0_i32_0 = arith.constant 0 : i32
    %c0_i32_1 = arith.constant 0 : i32
    return %c0_i32, %c0_i32_0 : i32, i32
  }
  func.func @transform_6(%arg0: i32) -> (i32, i32) {
    %c0_i32 = arith.constant 0 : i32
    %c0_i32_0 = arith.constant 0 : i32
    %c0_i32_1 = arith.constant 0 : i32
    return %c0_i32, %c0_i32_0 : i32, i32
  }
  func.func @transform_7(%arg0: i32) -> (i32, i32) {
    %c0_i32 = arith.constant 0 : i32
    %c0_i32_0 = arith.constant 0 : i32
    %c0_i32_1 = arith.constant 0 : i32
    return %c0_i32, %c0_i32_0 : i32, i32
  }
  func.func @transform_8(%arg0: i32) -> (i32, i32) {
    %c0_i32 = arith.constant 0 : i32
    %c0_i32_0 = arith.constant 0 : i32
    %c0_i32_1 = arith.constant 0 : i32
    return %c0_i32, %c0_i32_0 : i32, i32
  }
  func.func @transform_9(%arg0: i32) -> (i32, i32) {
    %c0_i32 = arith.constant 0 : i32
    %c0_i32_0 = arith.constant 0 : i32
    %c0_i32_1 = arith.constant 0 : i32
    return %c0_i32, %c0_i32_0 : i32, i32
  }
  func.func @transform_10(%arg0: i32) -> (i32, i32) {
    %c0_i32 = arith.constant 0 : i32
    %c0_i32_0 = arith.constant 0 : i32
    %c0_i32_1 = arith.constant 0 : i32
    return %c0_i32, %c0_i32_0 : i32, i32
  }
  func.func @transform_11(%arg0: i32) -> (i32, i32, i32) {
    %c0_i32 = arith.constant 0 : i32
    %c0_i32_0 = arith.constant 0 : i32
    %c0_i32_1 = arith.constant 0 : i32
    return %arg0, %c0_i32, %c0_i32_0 : i32, i32, i32
  }
}

module attributes {stable_mosaic.version = 11 : i64} {
  func.func @_racing_mha_kernel(%arg0: i32, %arg1: memref<1x8x32xf32, #tpu.memory_space<vmem>>, %arg2: memref<1x8x32xf32, #tpu.memory_space<vmem>>, %arg3: memref<1x8x32xf32, #tpu.memory_space<vmem>>, %arg4: memref<32x32xbf16, #tpu.memory_space<vmem>>, %arg5: memref<1x32xf32, #tpu.memory_space<vmem>>, %arg6: memref<32x32xbf16, #tpu.memory_space<vmem>>, %arg7: memref<1x32xf32, #tpu.memory_space<vmem>>, %arg8: memref<32x32xbf16, #tpu.memory_space<vmem>>, %arg9: memref<1x32xf32, #tpu.memory_space<vmem>>, %arg10: memref<32x32xbf16, #tpu.memory_space<vmem>>, %arg11: memref<1x32xf32, #tpu.memory_space<vmem>>, %arg12: memref<1x8x32xf32, #tpu.memory_space<vmem>>, %arg13: memref<8x32xbf16, #tpu.memory_space<vmem>>) attributes {dimension_semantics = [#tpu.dimension_semantics<parallel>], iteration_bounds = array<i64: 2>, scalar_prefetch = 0 : i64, scratch_operands = 1 : i64, tpu.core_type = #tpu.core_type<tc>, window_params = [{transform_indices = @transform_0, window_bounds = array<i64: 1, 8, 32>}, {transform_indices = @transform_1, window_bounds = array<i64: 1, 8, 32>}, {transform_indices = @transform_2, window_bounds = array<i64: 1, 8, 32>}, {pipeline_mode = #tpu.pipeline_mode<synchronous>, transform_indices = @transform_3, window_bounds = array<i64: 32, 32>}, {pipeline_mode = #tpu.pipeline_mode<synchronous>, transform_indices = @transform_4, window_bounds = array<i64: 1, 32>}, {pipeline_mode = #tpu.pipeline_mode<synchronous>, transform_indices = @transform_5, window_bounds = array<i64: 32, 32>}, {pipeline_mode = #tpu.pipeline_mode<synchronous>, transform_indices = @transform_6, window_bounds = array<i64: 1, 32>}, {pipeline_mode = #tpu.pipeline_mode<synchronous>, transform_indices = @transform_7, window_bounds = array<i64: 32, 32>}, {pipeline_mode = #tpu.pipeline_mode<synchronous>, transform_indices = @transform_8, window_bounds = array<i64: 1, 32>}, {pipeline_mode = #tpu.pipeline_mode<synchronous>, transform_indices = @transform_9, window_bounds = array<i64: 32, 32>}, {pipeline_mode = #tpu.pipeline_mode<synchronous>, transform_indices = @transform_10, window_bounds = array<i64: 1, 32>}, {transform_indices = @transform_11, window_bounds = array<i64: 1, 8, 32>}]} {
    %c0 = arith.constant 0 : index
    %c0_0 = arith.constant 0 : index
    %c0_1 = arith.constant 0 : index
    %0 = vector.load %arg1[%c0, %c0_0, %c0_1] : memref<1x8x32xf32, #tpu.memory_space<vmem>>, vector<1x8x32xf32>
    %1 = vector.shape_cast %0 : vector<1x8x32xf32> to vector<8x32xf32>
    %2 = arith.truncf %1 : vector<8x32xf32> to vector<8x32xbf16>
    %c0_2 = arith.constant 0 : index
    %c0_3 = arith.constant 0 : index
    %c0_4 = arith.constant 0 : index
    %3 = vector.load %arg2[%c0_2, %c0_3, %c0_4] : memref<1x8x32xf32, #tpu.memory_space<vmem>>, vector<1x8x32xf32>
    %4 = vector.shape_cast %3 : vector<1x8x32xf32> to vector<8x32xf32>
    %5 = arith.truncf %4 : vector<8x32xf32> to vector<8x32xbf16>
    %c0_5 = arith.constant 0 : index
    %c0_6 = arith.constant 0 : index
    %c0_7 = arith.constant 0 : index
    %6 = vector.load %arg3[%c0_5, %c0_6, %c0_7] : memref<1x8x32xf32, #tpu.memory_space<vmem>>, vector<1x8x32xf32>
    %7 = vector.shape_cast %6 : vector<1x8x32xf32> to vector<8x32xf32>
    %8 = arith.truncf %7 : vector<8x32xf32> to vector<8x32xbf16>
    %c0_8 = arith.constant 0 : index
    %c0_9 = arith.constant 0 : index
    %9 = vector.load %arg4[%c0_8, %c0_9] : memref<32x32xbf16, #tpu.memory_space<vmem>>, vector<32x32xbf16>
    %cst = arith.constant dense<0.000000e+00> : vector<8x32xf32>
    %10 = tpu.matmul %2, %9, %cst {dimension_numbers = #tpu.dot_dimension_numbers<[1], [0], [0], [1], [0, 0, 1, 1], [], []>} : vector<8x32xbf16>, vector<32x32xbf16>, vector<8x32xf32> -> vector<8x32xf32>
    %c0_10 = arith.constant 0 : index
    %c0_11 = arith.constant 0 : index
    %11 = vector.load %arg5[%c0_10, %c0_11] : memref<1x32xf32, #tpu.memory_space<vmem>>, vector<1x32xf32>
    %12 = vector.broadcast %11 : vector<1x32xf32> to vector<8x32xf32>
    %13 = arith.addf %10, %12 : vector<8x32xf32>
    %cst_12 = arith.constant 0.353553385 : f32
    %14 = vector.broadcast %cst_12 : f32 to vector<8x32xf32>
    %15 = arith.mulf %13, %14 : vector<8x32xf32>
    %16 = arith.truncf %15 : vector<8x32xf32> to vector<8x32xbf16>
    %c0_13 = arith.constant 0 : index
    %c0_14 = arith.constant 0 : index
    %17 = vector.load %arg6[%c0_13, %c0_14] : memref<32x32xbf16, #tpu.memory_space<vmem>>, vector<32x32xbf16>
    %cst_15 = arith.constant dense<0.000000e+00> : vector<8x32xf32>
    %18 = tpu.matmul %5, %17, %cst_15 {dimension_numbers = #tpu.dot_dimension_numbers<[1], [0], [0], [1], [0, 0, 1, 1], [], []>} : vector<8x32xbf16>, vector<32x32xbf16>, vector<8x32xf32> -> vector<8x32xf32>
    %c0_16 = arith.constant 0 : index
    %c0_17 = arith.constant 0 : index
    %19 = vector.load %arg7[%c0_16, %c0_17] : memref<1x32xf32, #tpu.memory_space<vmem>>, vector<1x32xf32>
    %20 = vector.broadcast %19 : vector<1x32xf32> to vector<8x32xf32>
    %21 = arith.addf %18, %20 : vector<8x32xf32>
    %22 = arith.truncf %21 : vector<8x32xf32> to vector<8x32xbf16>
    %c0_18 = arith.constant 0 : index
    %c0_19 = arith.constant 0 : index
    %23 = vector.load %arg8[%c0_18, %c0_19] : memref<32x32xbf16, #tpu.memory_space<vmem>>, vector<32x32xbf16>
    %cst_20 = arith.constant dense<0.000000e+00> : vector<8x32xf32>
    %24 = tpu.matmul %8, %23, %cst_20 {dimension_numbers = #tpu.dot_dimension_numbers<[1], [0], [0], [1], [0, 0, 1, 1], [], []>} : vector<8x32xbf16>, vector<32x32xbf16>, vector<8x32xf32> -> vector<8x32xf32>
    %c0_21 = arith.constant 0 : index
    %c0_22 = arith.constant 0 : index
    %25 = vector.load %arg9[%c0_21, %c0_22] : memref<1x32xf32, #tpu.memory_space<vmem>>, vector<1x32xf32>
    %26 = vector.broadcast %25 : vector<1x32xf32> to vector<8x32xf32>
    %27 = arith.addf %24, %26 : vector<8x32xf32>
    %28 = arith.truncf %27 : vector<8x32xf32> to vector<8x32xbf16>
    %29 = vector.extract_strided_slice %16 {offsets = [0, 0], sizes = [8, 8], strides = [1, 1]} : vector<8x32xbf16> to vector<8x8xbf16>
    %30 = vector.extract_strided_slice %22 {offsets = [0, 0], sizes = [8, 8], strides = [1, 1]} : vector<8x32xbf16> to vector<8x8xbf16>
    %31 = vector.extract_strided_slice %28 {offsets = [0, 0], sizes = [8, 8], strides = [1, 1]} : vector<8x32xbf16> to vector<8x8xbf16>
    %cst_23 = arith.constant dense<0.000000e+00> : vector<8x8xf32>
    %32 = tpu.matmul %29, %30, %cst_23 {dimension_numbers = #tpu.dot_dimension_numbers<[1], [1], [0], [0], [0, 0, 1, 0], [], []>} : vector<8x8xbf16>, vector<8x8xbf16>, vector<8x8xf32> -> vector<8x8xf32>
    %cst_24 = arith.constant dense<0xFF800000> : vector<8xf32>
    %33 = vector.multi_reduction <maximumf>, %32, %cst_24 [1] : vector<8x8xf32> to vector<8xf32>
    %34 = vector.shape_cast %33 : vector<8xf32> to vector<8x1xf32>
    %35 = vector.broadcast %34 : vector<8x1xf32> to vector<8x8xf32>
    %36 = arith.subf %32, %35 : vector<8x8xf32>
    %37 = math.exp %36 : vector<8x8xf32>
    %cst_25 = arith.constant dense<0.000000e+00> : vector<8xf32>
    %38 = vector.multi_reduction <add>, %37, %cst_25 [1] : vector<8x8xf32> to vector<8xf32>
    %39 = vector.shape_cast %38 : vector<8xf32> to vector<8x1xf32>
    %40 = arith.truncf %37 : vector<8x8xf32> to vector<8x8xbf16>
    %cst_26 = arith.constant dense<0.000000e+00> : vector<8x8xf32>
    %41 = tpu.matmul %40, %31, %cst_26 {dimension_numbers = #tpu.dot_dimension_numbers<[1], [0], [0], [1], [0, 0, 1, 1], [], []>} : vector<8x8xbf16>, vector<8x8xbf16>, vector<8x8xf32> -> vector<8x8xf32>
    %42 = tpu.reciprocal %39 {approx = true} : vector<8x1xf32> -> vector<8x1xf32>
    %43 = vector.broadcast %42 : vector<8x1xf32> to vector<8x8xf32>
    %44 = arith.mulf %41, %43 : vector<8x8xf32>
    %45 = arith.truncf %44 : vector<8x8xf32> to vector<8x8xbf16>
    %c0_27 = arith.constant 0 : index
    %c0_28 = arith.constant 0 : index
    %46 = vector.load %arg13[%c0_27, %c0_28] : memref<8x32xbf16, #tpu.memory_space<vmem>>, vector<8x8xbf16>
    tpu.vector_store %arg13[%c0_27, %c0_28], %45 {strides = array<i32>} : memref<8x32xbf16, #tpu.memory_space<vmem>>, vector<8x8xbf16>,
    %47 = vector.extract_strided_slice %16 {offsets = [0, 8], sizes = [8, 8], strides = [1, 1]} : vector<8x32xbf16> to vector<8x8xbf16>
    %48 = vector.extract_strided_slice %22 {offsets = [0, 8], sizes = [8, 8], strides = [1, 1]} : vector<8x32xbf16> to vector<8x8xbf16>
    %49 = vector.extract_strided_slice %28 {offsets = [0, 8], sizes = [8, 8], strides = [1, 1]} : vector<8x32xbf16> to vector<8x8xbf16>
    %cst_29 = arith.constant dense<0.000000e+00> : vector<8x8xf32>
    %50 = tpu.matmul %47, %48, %cst_29 {dimension_numbers = #tpu.dot_dimension_numbers<[1], [1], [0], [0], [0, 0, 1, 0], [], []>} : vector<8x8xbf16>, vector<8x8xbf16>, vector<8x8xf32> -> vector<8x8xf32>
    %cst_30 = arith.constant dense<0xFF800000> : vector<8xf32>
    %51 = vector.multi_reduction <maximumf>, %50, %cst_30 [1] : vector<8x8xf32> to vector<8xf32>
    %52 = vector.shape_cast %51 : vector<8xf32> to vector<8x1xf32>
    %53 = vector.broadcast %52 : vector<8x1xf32> to vector<8x8xf32>
    %54 = arith.subf %50, %53 : vector<8x8xf32>
    %55 = math.exp %54 : vector<8x8xf32>
    %cst_31 = arith.constant dense<0.000000e+00> : vector<8xf32>
    %56 = vector.multi_reduction <add>, %55, %cst_31 [1] : vector<8x8xf32> to vector<8xf32>
    %57 = vector.shape_cast %56 : vector<8xf32> to vector<8x1xf32>
    %58 = arith.truncf %55 : vector<8x8xf32> to vector<8x8xbf16>
    %cst_32 = arith.constant dense<0.000000e+00> : vector<8x8xf32>
    %59 = tpu.matmul %58, %49, %cst_32 {dimension_numbers = #tpu.dot_dimension_numbers<[1], [0], [0], [1], [0, 0, 1, 1], [], []>} : vector<8x8xbf16>, vector<8x8xbf16>, vector<8x8xf32> -> vector<8x8xf32>
    %60 = tpu.reciprocal %57 {approx = true} : vector<8x1xf32> -> vector<8x1xf32>
    %61 = vector.broadcast %60 : vector<8x1xf32> to vector<8x8xf32>
    %62 = arith.mulf %59, %61 : vector<8x8xf32>
    %63 = arith.truncf %62 : vector<8x8xf32> to vector<8x8xbf16>
    %c0_33 = arith.constant 0 : index
    %c8 = arith.constant 8 : index
    %64 = vector.load %arg13[%c0_33, %c8] : memref<8x32xbf16, #tpu.memory_space<vmem>>, vector<8x8xbf16>
    tpu.vector_store %arg13[%c0_33, %c8], %63 {strides = array<i32>} : memref<8x32xbf16, #tpu.memory_space<vmem>>, vector<8x8xbf16>,
    %65 = vector.extract_strided_slice %16 {offsets = [0, 16], sizes = [8, 8], strides = [1, 1]} : vector<8x32xbf16> to vector<8x8xbf16>
    %66 = vector.extract_strided_slice %22 {offsets = [0, 16], sizes = [8, 8], strides = [1, 1]} : vector<8x32xbf16> to vector<8x8xbf16>
    %67 = vector.extract_strided_slice %28 {offsets = [0, 16], sizes = [8, 8], strides = [1, 1]} : vector<8x32xbf16> to vector<8x8xbf16>
    %cst_34 = arith.constant dense<0.000000e+00> : vector<8x8xf32>
    %68 = tpu.matmul %65, %66, %cst_34 {dimension_numbers = #tpu.dot_dimension_numbers<[1], [1], [0], [0], [0, 0, 1, 0], [], []>} : vector<8x8xbf16>, vector<8x8xbf16>, vector<8x8xf32> -> vector<8x8xf32>
    %cst_35 = arith.constant dense<0xFF800000> : vector<8xf32>
    %69 = vector.multi_reduction <maximumf>, %68, %cst_35 [1] : vector<8x8xf32> to vector<8xf32>
    %70 = vector.shape_cast %69 : vector<8xf32> to vector<8x1xf32>
    %71 = vector.broadcast %70 : vector<8x1xf32> to vector<8x8xf32>
    %72 = arith.subf %68, %71 : vector<8x8xf32>
    %73 = math.exp %72 : vector<8x8xf32>
    %cst_36 = arith.constant dense<0.000000e+00> : vector<8xf32>
    %74 = vector.multi_reduction <add>, %73, %cst_36 [1] : vector<8x8xf32> to vector<8xf32>
    %75 = vector.shape_cast %74 : vector<8xf32> to vector<8x1xf32>
    %76 = arith.truncf %73 : vector<8x8xf32> to vector<8x8xbf16>
    %cst_37 = arith.constant dense<0.000000e+00> : vector<8x8xf32>
    %77 = tpu.matmul %76, %67, %cst_37 {dimension_numbers = #tpu.dot_dimension_numbers<[1], [0], [0], [1], [0, 0, 1, 1], [], []>} : vector<8x8xbf16>, vector<8x8xbf16>, vector<8x8xf32> -> vector<8x8xf32>
    %78 = tpu.reciprocal %75 {approx = true} : vector<8x1xf32> -> vector<8x1xf32>
    %79 = vector.broadcast %78 : vector<8x1xf32> to vector<8x8xf32>
    %80 = arith.mulf %77, %79 : vector<8x8xf32>
    %81 = arith.truncf %80 : vector<8x8xf32> to vector<8x8xbf16>
    %c0_38 = arith.constant 0 : index
    %c16 = arith.constant 16 : index
    %82 = vector.load %arg13[%c0_38, %c16] : memref<8x32xbf16, #tpu.memory_space<vmem>>, vector<8x8xbf16>
    tpu.vector_store %arg13[%c0_38, %c16], %81 {strides = array<i32>} : memref<8x32xbf16, #tpu.memory_space<vmem>>, vector<8x8xbf16>,
    %83 = vector.extract_strided_slice %16 {offsets = [0, 24], sizes = [8, 8], strides = [1, 1]} : vector<8x32xbf16> to vector<8x8xbf16>
    %84 = vector.extract_strided_slice %22 {offsets = [0, 24], sizes = [8, 8], strides = [1, 1]} : vector<8x32xbf16> to vector<8x8xbf16>
    %85 = vector.extract_strided_slice %28 {offsets = [0, 24], sizes = [8, 8], strides = [1, 1]} : vector<8x32xbf16> to vector<8x8xbf16>
    %cst_39 = arith.constant dense<0.000000e+00> : vector<8x8xf32>
    %86 = tpu.matmul %83, %84, %cst_39 {dimension_numbers = #tpu.dot_dimension_numbers<[1], [1], [0], [0], [0, 0, 1, 0], [], []>} : vector<8x8xbf16>, vector<8x8xbf16>, vector<8x8xf32> -> vector<8x8xf32>
    %cst_40 = arith.constant dense<0xFF800000> : vector<8xf32>
    %87 = vector.multi_reduction <maximumf>, %86, %cst_40 [1] : vector<8x8xf32> to vector<8xf32>
    %88 = vector.shape_cast %87 : vector<8xf32> to vector<8x1xf32>
    %89 = vector.broadcast %88 : vector<8x1xf32> to vector<8x8xf32>
    %90 = arith.subf %86, %89 : vector<8x8xf32>
    %91 = math.exp %90 : vector<8x8xf32>
    %cst_41 = arith.constant dense<0.000000e+00> : vector<8xf32>
    %92 = vector.multi_reduction <add>, %91, %cst_41 [1] : vector<8x8xf32> to vector<8xf32>
    %93 = vector.shape_cast %92 : vector<8xf32> to vector<8x1xf32>
    %94 = arith.truncf %91 : vector<8x8xf32> to vector<8x8xbf16>
    %cst_42 = arith.constant dense<0.000000e+00> : vector<8x8xf32>
    %95 = tpu.matmul %94, %85, %cst_42 {dimension_numbers = #tpu.dot_dimension_numbers<[1], [0], [0], [1], [0, 0, 1, 1], [], []>} : vector<8x8xbf16>, vector<8x8xbf16>, vector<8x8xf32> -> vector<8x8xf32>
    %96 = tpu.reciprocal %93 {approx = true} : vector<8x1xf32> -> vector<8x1xf32>
    %97 = vector.broadcast %96 : vector<8x1xf32> to vector<8x8xf32>
    %98 = arith.mulf %95, %97 : vector<8x8xf32>
    %99 = arith.truncf %98 : vector<8x8xf32> to vector<8x8xbf16>
    %c0_43 = arith.constant 0 : index
    %c24 = arith.constant 24 : index
    %100 = vector.load %arg13[%c0_43, %c24] : memref<8x32xbf16, #tpu.memory_space<vmem>>, vector<8x8xbf16>
    tpu.vector_store %arg13[%c0_43, %c24], %99 {strides = array<i32>} : memref<8x32xbf16, #tpu.memory_space<vmem>>, vector<8x8xbf16>,
    %c0_44 = arith.constant 0 : index
    %c0_45 = arith.constant 0 : index
    %101 = vector.load %arg13[%c0_44, %c0_45] : memref<8x32xbf16, #tpu.memory_space<vmem>>, vector<8x32xbf16>
    %c0_46 = arith.constant 0 : index
    %c0_47 = arith.constant 0 : index
    %102 = vector.load %arg10[%c0_46, %c0_47] : memref<32x32xbf16, #tpu.memory_space<vmem>>, vector<32x32xbf16>
    %cst_48 = arith.constant dense<0.000000e+00> : vector<8x32xf32>
    %103 = tpu.matmul %101, %102, %cst_48 {dimension_numbers = #tpu.dot_dimension_numbers<[1], [0], [0], [1], [0, 0, 1, 1], [], []>} : vector<8x32xbf16>, vector<32x32xbf16>, vector<8x32xf32> -> vector<8x32xf32>
    %c0_49 = arith.constant 0 : index
    %c0_50 = arith.constant 0 : index
    %104 = vector.load %arg11[%c0_49, %c0_50] : memref<1x32xf32, #tpu.memory_space<vmem>>, vector<1x32xf32>
    %105 = vector.broadcast %104 : vector<1x32xf32> to vector<8x32xf32>
    %106 = arith.addf %103, %105 : vector<8x32xf32>
    %c0_51 = arith.constant 0 : index
    %c0_52 = arith.constant 0 : index
    %c0_53 = arith.constant 0 : index
    %107 = vector.load %arg12[%c0_51, %c0_52, %c0_53] : memref<1x8x32xf32, #tpu.memory_space<vmem>>, vector<1x8x32xf32>
    %108 = vector.shape_cast %107 : vector<1x8x32xf32> to vector<8x32xf32>
    %109 = vector.shape_cast %106 : vector<8x32xf32> to vector<1x8x32xf32>
    tpu.vector_store %arg12[%c0_51, %c0_52, %c0_53], %109 {strides = array<i32>} : memref<1x8x32xf32, #tpu.memory_space<vmem>>, vector<1x8x32xf32>,
    return
  }
  func.func @transform_0(%arg0: i32) -> (i32, i32, i32) {
    %c0_i32 = arith.constant 0 : i32
    %c0_i32_0 = arith.constant 0 : i32
    %c0_i32_1 = arith.constant 0 : i32
    return %arg0, %c0_i32, %c0_i32_0 : i32, i32, i32
  }
  func.func @transform_1(%arg0: i32) -> (i32, i32, i32) {
    %c0_i32 = arith.constant 0 : i32
    %c0_i32_0 = arith.constant 0 : i32
    %c0_i32_1 = arith.constant 0 : i32
    return %arg0, %c0_i32, %c0_i32_0 : i32, i32, i32
  }
  func.func @transform_2(%arg0: i32) -> (i32, i32, i32) {
    %c0_i32 = arith.constant 0 : i32
    %c0_i32_0 = arith.constant 0 : i32
    %c0_i32_1 = arith.constant 0 : i32
    return %arg0, %c0_i32, %c0_i32_0 : i32, i32, i32
  }
  func.func @transform_3(%arg0: i32) -> (i32, i32) {
    %c0_i32 = arith.constant 0 : i32
    %c0_i32_0 = arith.constant 0 : i32
    %c0_i32_1 = arith.constant 0 : i32
    return %c0_i32, %c0_i32_0 : i32, i32
  }
  func.func @transform_4(%arg0: i32) -> (i32, i32) {
    %c0_i32 = arith.constant 0 : i32
    %c0_i32_0 = arith.constant 0 : i32
    %c0_i32_1 = arith.constant 0 : i32
    return %c0_i32, %c0_i32_0 : i32, i32
  }
  func.func @transform_5(%arg0: i32) -> (i32, i32) {
    %c0_i32 = arith.constant 0 : i32
    %c0_i32_0 = arith.constant 0 : i32
    %c0_i32_1 = arith.constant 0 : i32
    return %c0_i32, %c0_i32_0 : i32, i32
  }
  func.func @transform_6(%arg0: i32) -> (i32, i32) {
    %c0_i32 = arith.constant 0 : i32
    %c0_i32_0 = arith.constant 0 : i32
    %c0_i32_1 = arith.constant 0 : i32
    return %c0_i32, %c0_i32_0 : i32, i32
  }
  func.func @transform_7(%arg0: i32) -> (i32, i32) {
    %c0_i32 = arith.constant 0 : i32
    %c0_i32_0 = arith.constant 0 : i32
    %c0_i32_1 = arith.constant 0 : i32
    return %c0_i32, %c0_i32_0 : i32, i32
  }
  func.func @transform_8(%arg0: i32) -> (i32, i32) {
    %c0_i32 = arith.constant 0 : i32
    %c0_i32_0 = arith.constant 0 : i32
    %c0_i32_1 = arith.constant 0 : i32
    return %c0_i32, %c0_i32_0 : i32, i32
  }
  func.func @transform_9(%arg0: i32) -> (i32, i32) {
    %c0_i32 = arith.constant 0 : i32
    %c0_i32_0 = arith.constant 0 : i32
    %c0_i32_1 = arith.constant 0 : i32
    return %c0_i32, %c0_i32_0 : i32, i32
  }
  func.func @transform_10(%arg0: i32) -> (i32, i32) {
    %c0_i32 = arith.constant 0 : i32
    %c0_i32_0 = arith.constant 0 : i32
    %c0_i32_1 = arith.constant 0 : i32
    return %c0_i32, %c0_i32_0 : i32, i32
  }
  func.func @transform_11(%arg0: i32) -> (i32, i32, i32) {
    %c0_i32 = arith.constant 0 : i32
    %c0_i32_0 = arith.constant 0 : i32
    %c0_i32_1 = arith.constant 0 : i32
    return %arg0, %c0_i32, %c0_i32_0 : i32, i32, i32
  }
}

</mosaic_0001>

<llo_original>
// kernel: tpu_custom_call.1
$region0: #{tpu_custom_call.1}
  #allocation0 [shape = 'u32[]', space=smem, size = 0x4, offset = 0x4, fixed_abs, tag = 'smem constant byte address 0x4 - core index']
  #allocation1 [shape = 'u32[144,128]{1,0:T(1,128)}', space=vmem, size = 0x12000, scoped, tag = 'internal scratch']
  #allocation2 [shape = 'bf16[8,32]{1,0:T(8,128)(2,1)}', space=vmem, size = 0x800, scoped, tag = 'scratch operand']
  %s0 = inlined_call_operand.hbm [shape: f32[2,8,32], index: 0, kind: input, shape index: {}]
  %s1 = inlined_call_operand.hbm [shape: f32[2,8,32], index: 1, kind: input, shape index: {}]
  %s2 = inlined_call_operand.hbm [shape: f32[2,8,32], index: 2, kind: input, shape index: {}]
  %s3 = inlined_call_operand.hbm [shape: bf16[32,32], index: 3, kind: input, shape index: {}]
  %s4 = inlined_call_operand.vmem [shape: f32[1,32], index: 4, kind: input, shape index: {}]
  %s5 = inlined_call_operand.vmem [shape: bf16[32,32], index: 5, kind: input, shape index: {}]
  %s6 = inlined_call_operand.vmem [shape: f32[1,32], index: 6, kind: input, shape index: {}]
  %s7 = inlined_call_operand.hbm [shape: bf16[32,32], index: 7, kind: input, shape index: {}]
  %s8 = inlined_call_operand.hbm [shape: f32[1,32], index: 8, kind: input, shape index: {}]
  %s9 = inlined_call_operand.vmem [shape: bf16[32,32], index: 9, kind: input, shape index: {}]
  %s10 = inlined_call_operand.vmem [shape: f32[1,32], index: 10, kind: input, shape index: {}]
  %s11 = inlined_call_operand.hbm [shape: f32[2,8,32], index: 11, kind: output, shape index: {}]
  %s12 = sld [smem:[#allocation0]]
  $region101: #{tpu_custom_call.1} parent=0
    _
  %s14 = ssub.s32 1, %s12
  %s15 = scalar_select 0, %s14, %s12
  $region1: #{tpu_custom_call.1} parent=0
    #allocation3 [shape = 'u8[8192]{0}', space=vmem, size = 0x2000, scoped, tag = 'input window, operand 0']
    #allocation4 [shape = 's32[2]{0}', space=sflag, size = 0x8, scoped, tag = 'scoped memory for tpu_custom_call.1']
    #allocation5 [shape = 's32[2]{0}', space=sflag, size = 0x8, scoped, tag = 'scoped memory for tpu_custom_call.1']
    #allocation6 [shape = 'u8[8192]{0}', space=vmem, size = 0x2000, scoped, tag = 'input window, operand 1']
    #allocation7 [shape = 's32[2]{0}', space=sflag, size = 0x8, scoped, tag = 'scoped memory for tpu_custom_call.1']
    #allocation8 [shape = 'u8[8192]{0}', space=vmem, size = 0x2000, scoped, tag = 'input window, operand 2']
    #allocation9 [shape = 'u8[8192]{0}', space=vmem, size = 0x2000, scoped, tag = 'input window, operand 3, single buffered']
    #allocation10 [shape = 's32[1]{0}', space=sflag, size = 0x4, scoped, tag = 'scoped memory for tpu_custom_call.1']
    #allocation11 [shape = 'u8[8192]{0}', space=vmem, size = 0x2000, scoped, tag = 'input window, operand 7, single buffered']
    #allocation12 [shape = 'u8[512]{0}', space=vmem, size = 0x400, scoped, tag = 'input window, operand 8, single buffered']
    #allocation13 [shape = 's32[1]{0}', space=sflag, size = 0x4, scoped, tag = 'scoped memory for tpu_custom_call.1']
    #allocation14 [shape = 'u8[8192]{0}', space=vmem, size = 0x2000, scoped, tag = 'output window, operand 0']
    %16 = vsyncpa [#allocation4], 0
    %s17 = scalar_lea.sflag [#allocation4], 1
    %18 = vsyncpa %s17, 0
    %19 = vsyncpa [#allocation7], 0
    %s20 = scalar_lea.sflag [#allocation7], 1
    %21 = vsyncpa %s20, 0
    %22 = vsyncpa [#allocation10], 0
    %23 = vsyncpa [#allocation13], 0
    %24 = vsyncpa [#allocation5], 0
    %s25 = scalar_lea.sflag [#allocation5], 1
    %26 = vsyncpa %s25, 0
    loop: start=0, step=1, limit=4
    $region2: #{tpu_custom_call.1} parent=1 // loop_pre_header
      _
    $region3: #{tpu_custom_call.1} parent=1 // loop_header
      %s28 = sphi 0, %s32
      %p29 = scmp.ge.s32.totalorder %s28, 4
      %s38 = sphi 0, %s40
      %s41 = sphi 0, %s38
      %s42 = sphi 0, %s41
      %s58 = sphi 0, %s42
      %s64 = sphi 0, %s66
      %s67 = sphi 0, %s64
      %s68 = sphi 0, %s67
      %s84 = sphi 0, %s68
      %s90 = sphi 0, %s92
      %s93 = sphi 0, %s90
      %s94 = sphi 0, %s93
      %s110 = sphi 0, %s94
      %s114 = sphi 0, %s114
      %s116 = sphi 0, %s114
      %s117 = sphi 0, %s116
      %s131 = sphi 0, %s117
      %s135 = sphi 0, %s135
      %s137 = sphi 0, %s135
      %s138 = sphi 0, %s137
      %s152 = sphi 0, %s138
      %s156 = sphi 0, %s156
      %s158 = sphi 0, %s156
      %s159 = sphi 0, %s158
      %s173 = sphi 0, %s159
      %s177 = sphi 0, %s177
      %s179 = sphi 0, %s177
      %s180 = sphi 0, %s179
      %s194 = sphi 0, %s180
      %s198 = sphi 0, %s198
      %s200 = sphi 0, %s198
      %s201 = sphi 0, %s200
      %s215 = sphi 0, %s201
      %s219 = sphi 0, %s219
      %s221 = sphi 0, %s219
      %s222 = sphi 0, %s221
      %s236 = sphi 0, %s222
      %s240 = sphi 0, %s240
      %s242 = sphi 0, %s240
      %s243 = sphi 0, %s242
      %s257 = sphi 0, %s243
      %s261 = sphi 0, %s261
      %s263 = sphi 0, %s261
      %s264 = sphi 0, %s263
      %s278 = sphi 0, %s264
      %s284 = sphi 0, %s286
      %s287 = sphi 0, %s284
      %s288 = sphi 0, %s287
      %s304 = sphi 0, %s288
    $region4: #{tpu_custom_call.1} parent=1 // loop_header_branch
      %31 = sbr.rel (%p29) target = $region8
    $region5: #{tpu_custom_call.1} parent=1 // loop_body
      %s33 = ssub.s32 %s28, 1
      %s34 = ssub.s32 %s28, 2
      %s35 = sadd.s32 %s28, 1
      %s36 = ssub.s32 %s28, %s35
      %p37 = scmp.eq.s32.totalorder %s36, 0
      %s39 = sadd.s32 %s38, 1
      %s40 = scalar_select %p37, %s38, %s39
      %p43 = pneg %p37
      %p44 = scmp.eq.s32.totalorder %s28, 1
      %p45 = por %p43, %p44
      %p46 = scmp.ne.s32.totalorder %s38, %s41
      %p47 = scmp.eq.s32.totalorder %s28, 0
      %p48 = por %p46, %p47
      %p49 = scmp.ne.s32.totalorder %s38, %s41
      %p50 = scmp.eq.s32.totalorder %s33, 1
      %p51 = por %p49, %p50
      %p52 = scmp.ne.s32.totalorder %s41, %s42
      %p53 = scmp.eq.s32.totalorder %s33, 0
      %p54 = por %p52, %p53
      %p55 = scmp.ne.s32.totalorder %s41, %s42
      %p56 = scmp.eq.s32.totalorder %s34, 1
      %p57 = por %p55, %p56
      %p59 = scmp.ne.s32.totalorder %s42, %s58
      %p60 = scmp.eq.s32.totalorder %s34, 0
      %p61 = por %p59, %p60
      %s62 = ssub.s32 %s28, %s35
      %p63 = scmp.eq.s32.totalorder %s62, 0
      %s65 = sadd.s32 %s64, 1
      %s66 = scalar_select %p63, %s64, %s65
      %p69 = pneg %p63
      %p70 = scmp.eq.s32.totalorder %s28, 1
      %p71 = por %p69, %p70
      %p72 = scmp.ne.s32.totalorder %s64, %s67
      %p73 = scmp.eq.s32.totalorder %s28, 0
      %p74 = por %p72, %p73
      %p75 = scmp.ne.s32.totalorder %s64, %s67
      %p76 = scmp.eq.s32.totalorder %s33, 1
      %p77 = por %p75, %p76
      %p78 = scmp.ne.s32.totalorder %s67, %s68
      %p79 = scmp.eq.s32.totalorder %s33, 0
      %p80 = por %p78, %p79
      %p81 = scmp.ne.s32.totalorder %s67, %s68
      %p82 = scmp.eq.s32.totalorder %s34, 1
      %p83 = por %p81, %p82
      %p85 = scmp.ne.s32.totalorder %s68, %s84
      %p86 = scmp.eq.s32.totalorder %s34, 0
      %p87 = por %p85, %p86
      %s88 = ssub.s32 %s28, %s35
      %p89 = scmp.eq.s32.totalorder %s88, 0
      %s91 = sadd.s32 %s90, 1
      %s92 = scalar_select %p89, %s90, %s91
      %p95 = pneg %p89
      %p96 = scmp.eq.s32.totalorder %s28, 1
      %p97 = por %p95, %p96
      %p98 = scmp.ne.s32.totalorder %s90, %s93
      %p99 = scmp.eq.s32.totalorder %s28, 0
      %p100 = por %p98, %p99
      %p101 = scmp.ne.s32.totalorder %s90, %s93
      %p102 = scmp.eq.s32.totalorder %s33, 1
      %p103 = por %p101, %p102
      %p104 = scmp.ne.s32.totalorder %s93, %s94
      %p105 = scmp.eq.s32.totalorder %s33, 0
      %p106 = por %p104, %p105
      %p107 = scmp.ne.s32.totalorder %s93, %s94
      %p108 = scmp.eq.s32.totalorder %s34, 1
      %p109 = por %p107, %p108
      %p111 = scmp.ne.s32.totalorder %s94, %s110
      %p112 = scmp.eq.s32.totalorder %s34, 0
      %p113 = por %p111, %p112
      %s115 = sadd.s32 %s114, 1
      %p118 = scmp.eq.s32.totalorder %s28, 1
      %p119 = scmp.ne.s32.totalorder %s114, %s116
      %p120 = scmp.eq.s32.totalorder %s28, 0
      %p121 = por %p119, %p120
      %p122 = scmp.ne.s32.totalorder %s114, %s116
      %p123 = scmp.eq.s32.totalorder %s33, 1
      %p124 = por %p122, %p123
      %p125 = scmp.ne.s32.totalorder %s116, %s117
      %p126 = scmp.eq.s32.totalorder %s33, 0
      %p127 = por %p125, %p126
      %p128 = scmp.ne.s32.totalorder %s116, %s117
      %p129 = scmp.eq.s32.totalorder %s34, 1
      %p130 = por %p128, %p129
      %p132 = scmp.ne.s32.totalorder %s117, %s131
      %p133 = scmp.eq.s32.totalorder %s34, 0
      %p134 = por %p132, %p133
      %s136 = sadd.s32 %s135, 1
      %p139 = scmp.eq.s32.totalorder %s28, 1
      %p140 = scmp.ne.s32.totalorder %s135, %s137
      %p141 = scmp.eq.s32.totalorder %s28, 0
      %p142 = por %p140, %p141
      %p143 = scmp.ne.s32.totalorder %s135, %s137
      %p144 = scmp.eq.s32.totalorder %s33, 1
      %p145 = por %p143, %p144
      %p146 = scmp.ne.s32.totalorder %s137, %s138
      %p147 = scmp.eq.s32.totalorder %s33, 0
      %p148 = por %p146, %p147
      %p149 = scmp.ne.s32.totalorder %s137, %s138
      %p150 = scmp.eq.s32.totalorder %s34, 1
      %p151 = por %p149, %p150
      %p153 = scmp.ne.s32.totalorder %s138, %s152
      %p154 = scmp.eq.s32.totalorder %s34, 0
      %p155 = por %p153, %p154
      %s157 = sadd.s32 %s156, 1
      %p160 = scmp.eq.s32.totalorder %s28, 1
      %p161 = scmp.ne.s32.totalorder %s156, %s158
      %p162 = scmp.eq.s32.totalorder %s28, 0
      %p163 = por %p161, %p162
      %p164 = scmp.ne.s32.totalorder %s156, %s158
      %p165 = scmp.eq.s32.totalorder %s33, 1
      %p166 = por %p164, %p165
      %p167 = scmp.ne.s32.totalorder %s158, %s159
      %p168 = scmp.eq.s32.totalorder %s33, 0
      %p169 = por %p167, %p168
      %p170 = scmp.ne.s32.totalorder %s158, %s159
      %p171 = scmp.eq.s32.totalorder %s34, 1
      %p172 = por %p170, %p171
      %p174 = scmp.ne.s32.totalorder %s159, %s173
      %p175 = scmp.eq.s32.totalorder %s34, 0
      %p176 = por %p174, %p175
      %s178 = sadd.s32 %s177, 1
      %p181 = scmp.eq.s32.totalorder %s28, 1
      %p182 = scmp.ne.s32.totalorder %s177, %s179
      %p183 = scmp.eq.s32.totalorder %s28, 0
      %p184 = por %p182, %p183
      %p185 = scmp.ne.s32.totalorder %s177, %s179
      %p186 = scmp.eq.s32.totalorder %s33, 1
      %p187 = por %p185, %p186
      %p188 = scmp.ne.s32.totalorder %s179, %s180
      %p189 = scmp.eq.s32.totalorder %s33, 0
      %p190 = por %p188, %p189
      %p191 = scmp.ne.s32.totalorder %s179, %s180
      %p192 = scmp.eq.s32.totalorder %s34, 1
      %p193 = por %p191, %p192
      %p195 = scmp.ne.s32.totalorder %s180, %s194
      %p196 = scmp.eq.s32.totalorder %s34, 0
      %p197 = por %p195, %p196
      %s199 = sadd.s32 %s198, 1
      %p202 = scmp.eq.s32.totalorder %s28, 1
      %p203 = scmp.ne.s32.totalorder %s198, %s200
      %p204 = scmp.eq.s32.totalorder %s28, 0
      %p205 = por %p203, %p204
      %p206 = scmp.ne.s32.totalorder %s198, %s200
      %p207 = scmp.eq.s32.totalorder %s33, 1
      %p208 = por %p206, %p207
      %p209 = scmp.ne.s32.totalorder %s200, %s201
      %p210 = scmp.eq.s32.totalorder %s33, 0
      %p211 = por %p209, %p210
      %p212 = scmp.ne.s32.totalorder %s200, %s201
      %p213 = scmp.eq.s32.totalorder %s34, 1
      %p214 = por %p212, %p213
      %p216 = scmp.ne.s32.totalorder %s201, %s215
      %p217 = scmp.eq.s32.totalorder %s34, 0
      %p218 = por %p216, %p217
      %s220 = sadd.s32 %s219, 1
      %p223 = scmp.eq.s32.totalorder %s28, 1
      %p224 = scmp.ne.s32.totalorder %s219, %s221
      %p225 = scmp.eq.s32.totalorder %s28, 0
      %p226 = por %p224, %p225
      %p227 = scmp.ne.s32.totalorder %s219, %s221
      %p228 = scmp.eq.s32.totalorder %s33, 1
      %p229 = por %p227, %p228
      %p230 = scmp.ne.s32.totalorder %s221, %s222
      %p231 = scmp.eq.s32.totalorder %s33, 0
      %p232 = por %p230, %p231
      %p233 = scmp.ne.s32.totalorder %s221, %s222
      %p234 = scmp.eq.s32.totalorder %s34, 1
      %p235 = por %p233, %p234
      %p237 = scmp.ne.s32.totalorder %s222, %s236
      %p238 = scmp.eq.s32.totalorder %s34, 0
      %p239 = por %p237, %p238
      %s241 = sadd.s32 %s240, 1
      %p244 = scmp.eq.s32.totalorder %s28, 1
      %p245 = scmp.ne.s32.totalorder %s240, %s242
      %p246 = scmp.eq.s32.totalorder %s28, 0
      %p247 = por %p245, %p246
      %p248 = scmp.ne.s32.totalorder %s240, %s242
      %p249 = scmp.eq.s32.totalorder %s33, 1
      %p250 = por %p248, %p249
      %p251 = scmp.ne.s32.totalorder %s242, %s243
      %p252 = scmp.eq.s32.totalorder %s33, 0
      %p253 = por %p251, %p252
      %p254 = scmp.ne.s32.totalorder %s242, %s243
      %p255 = scmp.eq.s32.totalorder %s34, 1
      %p256 = por %p254, %p255
      %p258 = scmp.ne.s32.totalorder %s243, %s257
      %p259 = scmp.eq.s32.totalorder %s34, 0
      %p260 = por %p258, %p259
      %s262 = sadd.s32 %s261, 1
      %p265 = scmp.eq.s32.totalorder %s28, 1
      %p266 = scmp.ne.s32.totalorder %s261, %s263
      %p267 = scmp.eq.s32.totalorder %s28, 0
      %p268 = por %p266, %p267
      %p269 = scmp.ne.s32.totalorder %s261, %s263
      %p270 = scmp.eq.s32.totalorder %s33, 1
      %p271 = por %p269, %p270
      %p272 = scmp.ne.s32.totalorder %s263, %s264
      %p273 = scmp.eq.s32.totalorder %s33, 0
      %p274 = por %p272, %p273
      %p275 = scmp.ne.s32.totalorder %s263, %s264
      %p276 = scmp.eq.s32.totalorder %s34, 1
      %p277 = por %p275, %p276
      %p279 = scmp.ne.s32.totalorder %s264, %s278
      %p280 = scmp.eq.s32.totalorder %s34, 0
      %p281 = por %p279, %p280
      %s282 = ssub.s32 %s28, %s35
      %p283 = scmp.eq.s32.totalorder %s282, 0
      %s285 = sadd.s32 %s284, 1
      %s286 = scalar_select %p283, %s284, %s285
      %p289 = pneg %p283
      %p290 = scmp.eq.s32.totalorder %s28, 1
      %p291 = por %p289, %p290
      %p292 = scmp.ne.s32.totalorder %s284, %s287
      %p293 = scmp.eq.s32.totalorder %s28, 0
      %p294 = por %p292, %p293
      %p295 = scmp.ne.s32.totalorder %s284, %s287
      %p296 = scmp.eq.s32.totalorder %s33, 1
      %p297 = por %p295, %p296
      %p298 = scmp.ne.s32.totalorder %s287, %s288
      %p299 = scmp.eq.s32.totalorder %s33, 0
      %p300 = por %p298, %p299
      %p301 = scmp.ne.s32.totalorder %s287, %s288
      %p302 = scmp.eq.s32.totalorder %s34, 1
      %p303 = por %p301, %p302
      %p305 = scmp.ne.s32.totalorder %s288, %s304
      %p306 = scmp.eq.s32.totalorder %s34, 0
      %p307 = por %p305, %p306
      %p308 = scmp.le.s32.totalorder 1, %s28
      %p309 = scmp.lt.s32.totalorder %s28, 3
      %p310 = pnand %p308, %p309
      %p311 = pneg %p310
      // Predicated region
      $region9: #{tpu_custom_call.1} parent=5 // pred_check
        _
      $region10: #{tpu_custom_call.1} parent=5 // pred_check_branch
        %313 = sbr.rel (%p310) target = $region12
      $region11: #{tpu_custom_call.1} parent=5 // pred_region
        %s314 = ssub.s32 %s28, 1
        // Predicated region
        $region13: #{tpu_custom_call.1} parent=11 // pred_check
          %p315 = pneg %p127
        $region14: #{tpu_custom_call.1} parent=11 // pred_check_branch
          %317 = sbr.rel (%p315) target = $region16
        $region15: #{tpu_custom_call.1} parent=11 // pred_region
          %s319 = ssub.s32 256, 256
          %320 = vsyncadd [#allocation10], %s319
          %s321 = sshll.u32 [#allocation9], 4
          %s322 = int_to_ptr.vmem [resolvable:$true] %s321
          %327 = dma.hbm_to_vmem [thread:$0]  %s3, 256, %s322, [#allocation10], 64, 64, 4
        $region16: #{tpu_custom_call.1} parent=11 // pred_fallthru
          _
        // Predicated region
        $region17: #{tpu_custom_call.1} parent=11 // pred_check
          %p328 = pneg %p148
        $region18: #{tpu_custom_call.1} parent=11 // pred_check_branch
          %330 = sbr.rel (%p328) target = $region20
        $region19: #{tpu_custom_call.1} parent=11 // pred_region
          _
        $region20: #{tpu_custom_call.1} parent=11 // pred_fallthru
          _
        // Predicated region
        $region21: #{tpu_custom_call.1} parent=11 // pred_check
          %p331 = pneg %p169
        $region22: #{tpu_custom_call.1} parent=11 // pred_check_branch
          %333 = sbr.rel (%p331) target = $region24
        $region23: #{tpu_custom_call.1} parent=11 // pred_region
          _
        $region24: #{tpu_custom_call.1} parent=11 // pred_fallthru
          _
        // Predicated region
        $region25: #{tpu_custom_call.1} parent=11 // pred_check
          %p334 = pneg %p190
        $region26: #{tpu_custom_call.1} parent=11 // pred_check_branch
          %336 = sbr.rel (%p334) target = $region28
        $region27: #{tpu_custom_call.1} parent=11 // pred_region
          _
        $region28: #{tpu_custom_call.1} parent=11 // pred_fallthru
          _
        // Predicated region
        $region29: #{tpu_custom_call.1} parent=11 // pred_check
          %p337 = pneg %p211
        $region30: #{tpu_custom_call.1} parent=11 // pred_check_branch
          %339 = sbr.rel (%p337) target = $region32
        $region31: #{tpu_custom_call.1} parent=11 // pred_region
          %s341 = ssub.s32 256, 256
          %342 = vsyncadd [#allocation10], %s341
          %s343 = sshll.u32 [#allocation11], 4
          %s344 = int_to_ptr.vmem [resolvable:$true] %s343
          %349 = dma.hbm_to_vmem [thread:$0]  %s7, 256, %s344, [#allocation10], 64, 64, 4
        $region32: #{tpu_custom_call.1} parent=11 // pred_fallthru
          _
        // Predicated region
        $region33: #{tpu_custom_call.1} parent=11 // pred_check
          %p350 = pneg %p232
        $region34: #{tpu_custom_call.1} parent=11 // pred_check_branch
          %352 = sbr.rel (%p350) target = $region36
        $region35: #{tpu_custom_call.1} parent=11 // pred_region
          %s354 = ssub.s32 16, 16
          %355 = vsyncadd [#allocation13], %s354
          %s357 = sshll.u32 [#allocation12], 4
          %s358 = int_to_ptr.vmem [resolvable:$true] %s357
          %360 = dma.hbm_to_vmem [thread:$0]  %s8, 16, %s358, [#allocation13]
        $region36: #{tpu_custom_call.1} parent=11 // pred_fallthru
          _
        // Predicated region
        $region37: #{tpu_custom_call.1} parent=11 // pred_check
          %p361 = pneg %p253
        $region38: #{tpu_custom_call.1} parent=11 // pred_check_branch
          %363 = sbr.rel (%p361) target = $region40
        $region39: #{tpu_custom_call.1} parent=11 // pred_region
          _
        $region40: #{tpu_custom_call.1} parent=11 // pred_fallthru
          _
        // Predicated region
        $region41: #{tpu_custom_call.1} parent=11 // pred_check
          %p364 = pneg %p274
        $region42: #{tpu_custom_call.1} parent=11 // pred_check_branch
          %366 = sbr.rel (%p364) target = $region44
        $region43: #{tpu_custom_call.1} parent=11 // pred_region
          _
        $region44: #{tpu_custom_call.1} parent=11 // pred_fallthru
          _
      $region12: #{tpu_custom_call.1} parent=5 // pred_fallthru
        _
      %p367 = scmp.lt.s32.totalorder %s28, 2
      // Predicated region
      $region45: #{tpu_custom_call.1} parent=5 // pred_check
        %p368 = pneg %p367
      $region46: #{tpu_custom_call.1} parent=5 // pred_check_branch
        %370 = sbr.rel (%p368) target = $region48
      $region47: #{tpu_custom_call.1} parent=5 // pred_region
        // Predicated region
        $region49: #{tpu_custom_call.1} parent=47 // pred_check
          %p371 = pneg %p48
        $region50: #{tpu_custom_call.1} parent=47 // pred_check_branch
          %373 = sbr.rel (%p371) target = $region52
        $region51: #{tpu_custom_call.1} parent=47 // pred_region
          %s374 = sand.u32 %s38, 1
          %s375 = scalar_lea.sflag [#allocation4], %s374
          %s376 = sand.u32 %s38, 1
          %s377 = smul.addr %s376, 8
          %s378 = scalar_lea.vmem [#allocation3], %s377
          %s380 = ssub.s32 128, 128
          %381 = vsyncadd %s375, %s380
          %s382 = smul.addr %s28, 128
          %s383 = scalar_lea.hbm %s0, %s382
          %s385 = sshll.u32 %s378, 4
          %s386 = int_to_ptr.vmem [resolvable:$true] %s385
          %388 = dma.hbm_to_vmem [thread:$0]  %s383, 128, %s386, %s375
        $region52: #{tpu_custom_call.1} parent=47 // pred_fallthru
          _
        // Predicated region
        $region53: #{tpu_custom_call.1} parent=47 // pred_check
          %p389 = pneg %p74
        $region54: #{tpu_custom_call.1} parent=47 // pred_check_branch
          %391 = sbr.rel (%p389) target = $region56
        $region55: #{tpu_custom_call.1} parent=47 // pred_region
          %s392 = sand.u32 %s28, 1
          %s393 = scalar_lea.sflag [#allocation7], %s392
          %s394 = sand.u32 %s64, 1
          %s395 = smul.addr %s394, 8
          %s396 = scalar_lea.vmem [#allocation6], %s395
          %s398 = ssub.s32 128, 128
          %399 = vsyncadd %s393, %s398
          %s400 = smul.addr %s28, 128
          %s401 = scalar_lea.hbm %s1, %s400
          %s403 = sshll.u32 %s396, 4
          %s404 = int_to_ptr.vmem [resolvable:$true] %s403
          %406 = dma.hbm_to_vmem [thread:$0]  %s401, 128, %s404, %s393
        $region56: #{tpu_custom_call.1} parent=47 // pred_fallthru
          _
        // Predicated region
        $region57: #{tpu_custom_call.1} parent=47 // pred_check
          %p407 = pneg %p100
        $region58: #{tpu_custom_call.1} parent=47 // pred_check_branch
          %409 = sbr.rel (%p407) target = $region60
        $region59: #{tpu_custom_call.1} parent=47 // pred_region
          %s410 = sand.u32 %s28, 1
          %s411 = scalar_lea.sflag [#allocation7], %s410
          %s412 = sand.u32 %s90, 1
          %s413 = smul.addr %s412, 8
          %s414 = scalar_lea.vmem [#allocation8], %s413
          %s416 = ssub.s32 128, 128
          %417 = vsyncadd %s411, %s416
          %s418 = smul.addr %s28, 128
          %s419 = scalar_lea.hbm %s2, %s418
          %s421 = sshll.u32 %s414, 4
          %s422 = int_to_ptr.vmem [resolvable:$true] %s421
          %424 = dma.hbm_to_vmem [thread:$0]  %s419, 128, %s422, %s411
        $region60: #{tpu_custom_call.1} parent=47 // pred_fallthru
          _
      $region48: #{tpu_custom_call.1} parent=5 // pred_fallthru
        _
      %p425 = scmp.le.s32.totalorder 1, %s28
      %p426 = scmp.lt.s32.totalorder %s28, 3
      %p427 = pnand %p425, %p426
      %p428 = pneg %p427
      // Predicated region
      $region61: #{tpu_custom_call.1} parent=5 // pred_check
        _
      $region62: #{tpu_custom_call.1} parent=5 // pred_check_branch
        %430 = sbr.rel (%p427) target = $region64
      $region63: #{tpu_custom_call.1} parent=5 // pred_region
        %s431 = ssub.s32 %s28, 1
        %s432 = sand.u32 %s41, 1
        %s433 = scalar_lea.sflag [#allocation4], %s432
        %s434 = sand.u32 %s41, 1
        %s435 = smul.addr %s434, 8
        %s436 = scalar_lea.vmem [#allocation3], %s435
        // Predicated region
        $region65: #{tpu_custom_call.1} parent=63 // pred_check
          %p437 = pneg %p54
        $region66: #{tpu_custom_call.1} parent=63 // pred_check_branch
          %439 = sbr.rel (%p437) target = $region68
        $region67: #{tpu_custom_call.1} parent=63 // pred_region
          %440 = dma.done %s433, 128
        $region68: #{tpu_custom_call.1} parent=63 // pred_fallthru
          _
        %s441 = sand.u32 %s33, 1
        %s442 = scalar_lea.sflag [#allocation7], %s441
        %s443 = sand.u32 %s67, 1
        %s444 = smul.addr %s443, 8
        %s445 = scalar_lea.vmem [#allocation6], %s444
        // Predicated region
        $region69: #{tpu_custom_call.1} parent=63 // pred_check
          %p446 = pneg %p80
        $region70: #{tpu_custom_call.1} parent=63 // pred_check_branch
          %448 = sbr.rel (%p446) target = $region72
        $region71: #{tpu_custom_call.1} parent=63 // pred_region
          %449 = dma.done %s442, 128
        $region72: #{tpu_custom_call.1} parent=63 // pred_fallthru
          _
        %s450 = sand.u32 %s33, 1
        %s451 = scalar_lea.sflag [#allocation7], %s450
        %s452 = sand.u32 %s93, 1
        %s453 = smul.addr %s452, 8
        %s454 = scalar_lea.vmem [#allocation8], %s453
        // Predicated region
        $region73: #{tpu_custom_call.1} parent=63 // pred_check
          %p455 = pneg %p106
        $region74: #{tpu_custom_call.1} parent=63 // pred_check_branch
          %457 = sbr.rel (%p455) target = $region76
        $region75: #{tpu_custom_call.1} parent=63 // pred_region
          %458 = dma.done %s451, 128
        $region76: #{tpu_custom_call.1} parent=63 // pred_fallthru
          _
        // Predicated region
        $region77: #{tpu_custom_call.1} parent=63 // pred_check
          %p459 = pneg %p127
        $region78: #{tpu_custom_call.1} parent=63 // pred_check_branch
          %461 = sbr.rel (%p459) target = $region80
        $region79: #{tpu_custom_call.1} parent=63 // pred_region
          %462 = dma.done [#allocation10], 256
        $region80: #{tpu_custom_call.1} parent=63 // pred_fallthru
          _
        // Predicated region
        $region81: #{tpu_custom_call.1} parent=63 // pred_check
          %p463 = pneg %p211
        $region82: #{tpu_custom_call.1} parent=63 // pred_check_branch
          %465 = sbr.rel (%p463) target = $region84
        $region83: #{tpu_custom_call.1} parent=63 // pred_region
          %466 = dma.done [#allocation10], 256
        $region84: #{tpu_custom_call.1} parent=63 // pred_fallthru
          _
        // Predicated region
        $region85: #{tpu_custom_call.1} parent=63 // pred_check
          %p467 = pneg %p232
        $region86: #{tpu_custom_call.1} parent=63 // pred_check_branch
          %469 = sbr.rel (%p467) target = $region88
        $region87: #{tpu_custom_call.1} parent=63 // pred_region
          %470 = dma.done [#allocation13], 16
        $region88: #{tpu_custom_call.1} parent=63 // pred_fallthru
          _
        %s471 = sand.u32 %s41, 1
        %s472 = scalar_lea.sflag [#allocation4], %s471
        %s473 = sand.u32 %s41, 1
        %s474 = smul.addr %s473, 8
        %s475 = scalar_lea.vmem [#allocation3], %s474
        %p476 = pneg %p54
        %p477 = pneg %p51
        %s478 = sand.u32 %s33, 1
        %s479 = scalar_lea.sflag [#allocation7], %s478
        %s480 = sand.u32 %s67, 1
        %s481 = smul.addr %s480, 8
        %s482 = scalar_lea.vmem [#allocation6], %s481
        %p483 = pneg %p80
        %p484 = pneg %p77
        %s485 = sand.u32 %s33, 1
        %s486 = scalar_lea.sflag [#allocation7], %s485
        %s487 = sand.u32 %s93, 1
        %s488 = smul.addr %s487, 8
        %s489 = scalar_lea.vmem [#allocation8], %s488
        %p490 = pneg %p106
        %p491 = pneg %p103
        %p492 = pneg %p127
        %p493 = pneg %p124
        %p494 = pneg %p148
        %p495 = pneg %p145
        %p496 = pneg %p169
        %p497 = pneg %p166
        %p498 = pneg %p190
        %p499 = pneg %p187
        %p500 = pneg %p211
        %p501 = pneg %p208
        %p502 = pneg %p232
        %p503 = pneg %p229
        %p504 = pneg %p253
        %p505 = pneg %p250
        %p506 = pneg %p274
        %p507 = pneg %p271
        %p508 = pneg %p300
        %p509 = pneg %p297
        %s510 = sand.u32 %s287, 1
        %s511 = scalar_lea.sflag [#allocation5], %s510
        %s512 = sand.u32 %s287, 1
        %s513 = smul.addr %s512, 8
        %s514 = scalar_lea.vmem [#allocation14], %s513
        %v516 = vld [vmem:[%s436] sm:$0xff]
        %v517 = vpack.c.bf16 %v516, %v516
        %v518 = vld [vmem:[%s445] sm:$0xff]
        %v519 = vpack.c.bf16 %v518, %v518
        %v520 = vld [vmem:[%s454] sm:$0xff]
        %v521 = vpack.c.bf16 %v520, %v520
        %v522 = vld [vmem:[#allocation9] sm:$0xf]
        %v523 = vld [vmem:[#allocation9 + $0x4] sm:$0xf]
        %v524 = vld [vmem:[#allocation9 + $0x8] sm:$0xf]
        %v525 = vld [vmem:[#allocation9 + $0xc] sm:$0xf]
        %v526 = vld [vmem:[%s4] sm:$0x1]
        %v528 = vlaneseq
        %v529 = vshrl.u32 %v528, 7
        %v530 = vsub.s32 0, %v529
        %v531 = vrot.slane %v526, %v530
        %v537 = vunpack.c.l.b16 %v522
        %v538 = vunpack.c.l.b16 %v523
        %v539 = vunpack.c.l.b16 %v524
        %v540 = vunpack.c.l.b16 %v525
        %v541 = vpack.c.b16 %v538, %v537
        %v542 = vpack.c.b16 %v540, %v539
        %vm545 = vcmask 261120
        %v547 = vsel %vm545, %v517, 0
        %549 = vmatprep.subr.bf16.mxu0 0
        %550 = vmatpush1.bf16.msra.mxu0 %v541
        %551 = vmatprep.subr.bf16.mxu0 0
        %552 = vmatpush1.bf16.msra.mxu0 %v542
        %553 = vmatprep.subr.bf16.mxu0 0
        %554 = vmatpush1.bf16.msra.mxu0 0
        %555 = vmatprep.subr.bf16.mxu0 0
        %556 = vmatpush1.bf16.msra.mxu0 0
        %557 = vmatprep.subr.bf16.mxu0 0
        %558 = vmatpush1.bf16.msra.mxu0 0
        %559 = vmatprep.subr.bf16.mxu0 0
        %560 = vmatpush1.bf16.msra.mxu0 0
        %561 = vmatprep.subr.bf16.mxu0 0
        %562 = vmatpush1.bf16.msra.mxu0 0
        %563 = vmatprep.subr.bf16.mxu0 0
        %564 = vmatpush1.bf16.msra.mxu0 0
        %565 = vmatprep.subr.bf16.mxu0 0
        %566 = vmatpush1.bf16.msra.mxu0 0
        %567 = vmatprep.subr.bf16.mxu0 0
        %568 = vmatpush1.bf16.msra.mxu0 0
        %569 = vmatprep.subr.bf16.mxu0 0
        %570 = vmatpush1.bf16.msra.mxu0 0
        %571 = vmatprep.subr.bf16.mxu0 0
        %572 = vmatpush1.bf16.msra.mxu0 0
        %573 = vmatprep.subr.bf16.mxu0 0
        %574 = vmatpush1.bf16.msra.mxu0 0
        %575 = vmatprep.subr.bf16.mxu0 0
        %576 = vmatpush1.bf16.msra.mxu0 0
        %577 = vmatprep.subr.bf16.mxu0 0
        %578 = vmatpush1.bf16.msra.mxu0 0
        %579 = vmatprep.subr.bf16.mxu0 0
        %580 = vmatpush1.bf16.msra.mxu0 0
        %581 = vmatprep.mubr.bf16.mxu0 0
        %582 = vmatmul.mubr.bf16.gmra.mrb[0].mxu0 %v547
        %v583 = vpop.f32.mrb[0].mxu0
        %v584 = vadd.f32 %v531, %v583
        %v585 = vpop.f32.mrb[0].mxu0
        %v586 = vpop.f32.mrb[0].mxu0
        %v587 = vpop.f32.mrb[0].mxu0
        %588 = vdwg.mxu0
        %v589 = vmul.f32 %v584, 0.35355338
        %v590 = vpack.c.bf16 %v589, %v589
        %v591 = vld [vmem:[%s5] sm:$0xf]
        %v592 = vld [vmem:[%s5 + $0x4] sm:$0xf]
        %v593 = vld [vmem:[%s5 + $0x8] sm:$0xf]
        %v594 = vld [vmem:[%s5 + $0xc] sm:$0xf]
        %v595 = vld [vmem:[%s6] sm:$0x1]
        %v597 = vlaneseq
        %v598 = vshrl.u32 %v597, 7
        %v599 = vsub.s32 0, %v598
        %v600 = vrot.slane %v595, %v599
        %v606 = vunpack.c.l.b16 %v591
        %v607 = vunpack.c.l.b16 %v592
        %v608 = vunpack.c.l.b16 %v593
        %v609 = vunpack.c.l.b16 %v594
        %v610 = vpack.c.b16 %v607, %v606
        %v611 = vpack.c.b16 %v609, %v608
        %v615 = vsel %vm545, %v519, 0
        %617 = vmatprep.subr.bf16.mxu0 0
        %618 = vmatpush1.bf16.msra.mxu0 %v610
        %619 = vmatprep.subr.bf16.mxu0 0
        %620 = vmatpush1.bf16.msra.mxu0 %v611
        %621 = vmatprep.subr.bf16.mxu0 0
        %622 = vmatpush1.bf16.msra.mxu0 0
        %623 = vmatprep.subr.bf16.mxu0 0
        %624 = vmatpush1.bf16.msra.mxu0 0
        %625 = vmatprep.subr.bf16.mxu0 0
        %626 = vmatpush1.bf16.msra.mxu0 0
        %627 = vmatprep.subr.bf16.mxu0 0
        %628 = vmatpush1.bf16.msra.mxu0 0
        %629 = vmatprep.subr.bf16.mxu0 0
        %630 = vmatpush1.bf16.msra.mxu0 0
        %631 = vmatprep.subr.bf16.mxu0 0
        %632 = vmatpush1.bf16.msra.mxu0 0
        %633 = vmatprep.subr.bf16.mxu0 0
        %634 = vmatpush1.bf16.msra.mxu0 0
        %635 = vmatprep.subr.bf16.mxu0 0
        %636 = vmatpush1.bf16.msra.mxu0 0
        %637 = vmatprep.subr.bf16.mxu0 0
        %638 = vmatpush1.bf16.msra.mxu0 0
        %639 = vmatprep.subr.bf16.mxu0 0
        %640 = vmatpush1.bf16.msra.mxu0 0
        %641 = vmatprep.subr.bf16.mxu0 0
        %642 = vmatpush1.bf16.msra.mxu0 0
        %643 = vmatprep.subr.bf16.mxu0 0
        %644 = vmatpush1.bf16.msra.mxu0 0
        %645 = vmatprep.subr.bf16.mxu0 0
        %646 = vmatpush1.bf16.msra.mxu0 0
        %647 = vmatprep.subr.bf16.mxu0 0
        %648 = vmatpush1.bf16.msra.mxu0 0
        %649 = vmatprep.mubr.bf16.mxu0 0
        %650 = vmatmul.mubr.bf16.gmra.mrb[0].mxu0 %v615
        %v651 = vpop.f32.mrb[0].mxu0
        %v652 = vadd.f32 %v600, %v651
        %v653 = vpop.f32.mrb[0].mxu0
        %v654 = vpop.f32.mrb[0].mxu0
        %v655 = vpop.f32.mrb[0].mxu0
        %656 = vdwg.mxu0
        %v657 = vpack.c.bf16 %v652, %v652
        %v658 = vld [vmem:[#allocation11] sm:$0xf]
        %v659 = vld [vmem:[#allocation11 + $0x4] sm:$0xf]
        %v660 = vld [vmem:[#allocation11 + $0x8] sm:$0xf]
        %v661 = vld [vmem:[#allocation11 + $0xc] sm:$0xf]
        %v662 = vld [vmem:[#allocation12] sm:$0x1]
        %v664 = vlaneseq
        %v665 = vshrl.u32 %v664, 7
        %v666 = vsub.s32 0, %v665
        %v667 = vrot.slane %v662, %v666
        %v673 = vunpack.c.l.b16 %v658
        %v674 = vunpack.c.l.b16 %v659
        %v675 = vunpack.c.l.b16 %v660
        %v676 = vunpack.c.l.b16 %v661
        %v677 = vpack.c.b16 %v674, %v673
        %v678 = vpack.c.b16 %v676, %v675
        %v682 = vsel %vm545, %v521, 0
        %684 = vmatprep.subr.bf16.mxu0 0
        %685 = vmatpush1.bf16.msra.mxu0 %v677
        %686 = vmatprep.subr.bf16.mxu0 0
        %687 = vmatpush1.bf16.msra.mxu0 %v678
        %688 = vmatprep.subr.bf16.mxu0 0
        %689 = vmatpush1.bf16.msra.mxu0 0
        %690 = vmatprep.subr.bf16.mxu0 0
        %691 = vmatpush1.bf16.msra.mxu0 0
        %692 = vmatprep.subr.bf16.mxu0 0
        %693 = vmatpush1.bf16.msra.mxu0 0
        %694 = vmatprep.subr.bf16.mxu0 0
        %695 = vmatpush1.bf16.msra.mxu0 0
        %696 = vmatprep.subr.bf16.mxu0 0
        %697 = vmatpush1.bf16.msra.mxu0 0
        %698 = vmatprep.subr.bf16.mxu0 0
        %699 = vmatpush1.bf16.msra.mxu0 0
        %700 = vmatprep.subr.bf16.mxu0 0
        %701 = vmatpush1.bf16.msra.mxu0 0
        %702 = vmatprep.subr.bf16.mxu0 0
        %703 = vmatpush1.bf16.msra.mxu0 0
        %704 = vmatprep.subr.bf16.mxu0 0
        %705 = vmatpush1.bf16.msra.mxu0 0
        %706 = vmatprep.subr.bf16.mxu0 0
        %707 = vmatpush1.bf16.msra.mxu0 0
        %708 = vmatprep.subr.bf16.mxu0 0
        %709 = vmatpush1.bf16.msra.mxu0 0
        %710 = vmatprep.subr.bf16.mxu0 0
        %711 = vmatpush1.bf16.msra.mxu0 0
        %712 = vmatprep.subr.bf16.mxu0 0
        %713 = vmatpush1.bf16.msra.mxu0 0
        %714 = vmatprep.subr.bf16.mxu0 0
        %715 = vmatpush1.bf16.msra.mxu0 0
        %716 = vmatprep.mubr.bf16.mxu0 0
        %717 = vmatmul.mubr.bf16.gmra.mrb[0].mxu0 %v682
        %v718 = vpop.f32.mrb[0].mxu0
        %v719 = vadd.f32 %v667, %v718
        %v720 = vpop.f32.mrb[0].mxu0
        %v721 = vpop.f32.mrb[0].mxu0
        %v722 = vpop.f32.mrb[0].mxu0
        %723 = vdwg.mxu0
        %v724 = vpack.c.bf16 %v719, %v719
        %vm725 = vcmask 64512
        %v727 = vsel %vm725, %v590, 0
        %v730 = vsel %vm725, %v657, 0
        %732 = vmatprep.subr.bf16.mxu0 0
        %733 = vmatpush1.bf16.xpose.msra.mxu0 %v730
        %734 = vmatprep.subr.bf16.mxu0 0
        %735 = vmatpush1.bf16.xpose.msra.mxu0 0
        %736 = vmatprep.subr.bf16.mxu0 0
        %737 = vmatpush1.bf16.xpose.msra.mxu0 0
        %738 = vmatprep.subr.bf16.mxu0 0
        %739 = vmatpush1.bf16.xpose.msra.mxu0 0
        %740 = vmatprep.subr.bf16.mxu0 0
        %741 = vmatpush1.bf16.xpose.msra.mxu0 0
        %742 = vmatprep.subr.bf16.mxu0 0
        %743 = vmatpush1.bf16.xpose.msra.mxu0 0
        %744 = vmatprep.subr.bf16.mxu0 0
        %745 = vmatpush1.bf16.xpose.msra.mxu0 0
        %746 = vmatprep.subr.bf16.mxu0 0
        %747 = vmatpush1.bf16.xpose.msra.mxu0 0
        %748 = vmatprep.subr.bf16.mxu0 0
        %749 = vmatpush1.bf16.xpose.msra.mxu0 0
        %750 = vmatprep.subr.bf16.mxu0 0
        %751 = vmatpush1.bf16.xpose.msra.mxu0 0
        %752 = vmatprep.subr.bf16.mxu0 0
        %753 = vmatpush1.bf16.xpose.msra.mxu0 0
        %754 = vmatprep.subr.bf16.mxu0 0
        %755 = vmatpush1.bf16.xpose.msra.mxu0 0
        %756 = vmatprep.subr.bf16.mxu0 0
        %757 = vmatpush1.bf16.xpose.msra.mxu0 0
        %758 = vmatprep.subr.bf16.mxu0 0
        %759 = vmatpush1.bf16.xpose.msra.mxu0 0
        %760 = vmatprep.subr.bf16.mxu0 0
        %761 = vmatpush1.bf16.xpose.msra.mxu0 0
        %762 = vmatprep.subr.bf16.mxu0 0
        %763 = vmatpush1.bf16.xpose.msra.mxu0 0
        %764 = vmatprep.mubr.bf16.mxu0 0
        %765 = vmatmul.mubr.bf16.gmra.mrb[0].mxu0 %v727
        %v766 = vpop.f32.mrb[0].mxu0
        %v767 = vadd.f32 0.0, %v766
        %v768 = vpop.f32.mrb[0].mxu0
        %v769 = vpop.f32.mrb[0].mxu0
        %v770 = vpop.f32.mrb[0].mxu0
        %771 = vdwg.mxu0
        %v772 = vsel %vm725, %v767, -inf
        %773 = vmax.xlane.f32.xlu0 %v772
        %v774 = vpop.xlane.xlu0 %773
        %v775 = vsub.f32 %v767, %v774
        %v776 = vmul.f32 %v775, 1.442695
        %v777 = vpow.pop %v776
        %v778 = vsel %vm725, %v777, 0.0
        %779 = vadd.xlane.f32.xlu0 %v778
        %v780 = vpop.xlane.xlu0 %779
        %v781 = vpack.c.bf16 %v777, %v777
        %v783 = vsel %vm725, %v781, 0
        %vm785 = vcmask 1043456
        %v787 = vsel %vm785, %v724, 0
        %789 = vmatprep.subr.bf16.mxu0 0
        %790 = vmatpush1.bf16.msra.mxu0 %v787
        %791 = vmatprep.subr.bf16.mxu0 0
        %792 = vmatpush1.bf16.msra.mxu0 0
        %793 = vmatprep.subr.bf16.mxu0 0
        %794 = vmatpush1.bf16.msra.mxu0 0
        %795 = vmatprep.subr.bf16.mxu0 0
        %796 = vmatpush1.bf16.msra.mxu0 0
        %797 = vmatprep.subr.bf16.mxu0 0
        %798 = vmatpush1.bf16.msra.mxu0 0
        %799 = vmatprep.subr.bf16.mxu0 0
        %800 = vmatpush1.bf16.msra.mxu0 0
        %801 = vmatprep.subr.bf16.mxu0 0
        %802 = vmatpush1.bf16.msra.mxu0 0
        %803 = vmatprep.subr.bf16.mxu0 0
        %804 = vmatpush1.bf16.msra.mxu0 0
        %805 = vmatprep.subr.bf16.mxu0 0
        %806 = vmatpush1.bf16.msra.mxu0 0
        %807 = vmatprep.subr.bf16.mxu0 0
        %808 = vmatpush1.bf16.msra.mxu0 0
        %809 = vmatprep.subr.bf16.mxu0 0
        %810 = vmatpush1.bf16.msra.mxu0 0
        %811 = vmatprep.subr.bf16.mxu0 0
        %812 = vmatpush1.bf16.msra.mxu0 0
        %813 = vmatprep.subr.bf16.mxu0 0
        %814 = vmatpush1.bf16.msra.mxu0 0
        %815 = vmatprep.subr.bf16.mxu0 0
        %816 = vmatpush1.bf16.msra.mxu0 0
        %817 = vmatprep.subr.bf16.mxu0 0
        %818 = vmatpush1.bf16.msra.mxu0 0
        %819 = vmatprep.subr.bf16.mxu0 0
        %820 = vmatpush1.bf16.msra.mxu0 0
        %821 = vmatprep.mubr.bf16.mxu0 0
        %822 = vmatmul.mubr.bf16.gmra.mrb[0].mxu0 %v783
        %v823 = vpop.f32.mrb[0].mxu0
        %v824 = vadd.f32 0.0, %v823
        %v825 = vpop.f32.mrb[0].mxu0
        %v826 = vpop.f32.mrb[0].mxu0
        %v827 = vpop.f32.mrb[0].mxu0
        %828 = vdwg.mxu0
        %v829 = vrcp.pop %v780
        %v830 = vmul.f32 %v824, %v829
        %v831 = vpack.c.bf16 %v830, %v830
        %vm832 = vcmask 60416
        %833 = vst.msk [vmem:[#allocation2] sm:$0xf] %vm832, %v831
        %835 = vrot.lane.b32.xlu0 %v590, 120
        %v836 = vpop.permute.xlu0 %835
        %838 = vrot.lane.b32.xlu0 %v657, 120
        %v839 = vpop.permute.xlu0 %838
        %v841 = vsel %vm725, %v836, 0
        %v844 = vsel %vm725, %v839, 0
        %846 = vmatprep.subr.bf16.mxu0 0
        %847 = vmatpush1.bf16.xpose.msra.mxu0 %v844
        %848 = vmatprep.subr.bf16.mxu0 0
        %849 = vmatpush1.bf16.xpose.msra.mxu0 0
        %850 = vmatprep.subr.bf16.mxu0 0
        %851 = vmatpush1.bf16.xpose.msra.mxu0 0
        %852 = vmatprep.subr.bf16.mxu0 0
        %853 = vmatpush1.bf16.xpose.msra.mxu0 0
        %854 = vmatprep.subr.bf16.mxu0 0
        %855 = vmatpush1.bf16.xpose.msra.mxu0 0
        %856 = vmatprep.subr.bf16.mxu0 0
        %857 = vmatpush1.bf16.xpose.msra.mxu0 0
        %858 = vmatprep.subr.bf16.mxu0 0
        %859 = vmatpush1.bf16.xpose.msra.mxu0 0
        %860 = vmatprep.subr.bf16.mxu0 0
        %861 = vmatpush1.bf16.xpose.msra.mxu0 0
        %862 = vmatprep.subr.bf16.mxu0 0
        %863 = vmatpush1.bf16.xpose.msra.mxu0 0
        %864 = vmatprep.subr.bf16.mxu0 0
        %865 = vmatpush1.bf16.xpose.msra.mxu0 0
        %866 = vmatprep.subr.bf16.mxu0 0
        %867 = vmatpush1.bf16.xpose.msra.mxu0 0
        %868 = vmatprep.subr.bf16.mxu0 0
        %869 = vmatpush1.bf16.xpose.msra.mxu0 0
        %870 = vmatprep.subr.bf16.mxu0 0
        %871 = vmatpush1.bf16.xpose.msra.mxu0 0
        %872 = vmatprep.subr.bf16.mxu0 0
        %873 = vmatpush1.bf16.xpose.msra.mxu0 0
        %874 = vmatprep.subr.bf16.mxu0 0
        %875 = vmatpush1.bf16.xpose.msra.mxu0 0
        %876 = vmatprep.subr.bf16.mxu0 0
        %877 = vmatpush1.bf16.xpose.msra.mxu0 0
        %878 = vmatprep.mubr.bf16.mxu0 0
        %879 = vmatmul.mubr.bf16.gmra.mrb[0].mxu0 %v841
        %v880 = vpop.f32.mrb[0].mxu0
        %v881 = vadd.f32 0.0, %v880
        %v882 = vpop.f32.mrb[0].mxu0
        %v883 = vpop.f32.mrb[0].mxu0
        %v884 = vpop.f32.mrb[0].mxu0
        %885 = vdwg.mxu0
        %v886 = vsel %vm725, %v881, -inf
        %887 = vmax.xlane.f32.xlu0 %v886
        %v888 = vpop.xlane.xlu0 %887
        %v889 = vsub.f32 %v881, %v888
        %v890 = vmul.f32 %v889, 1.442695
        %v891 = vpow.pop %v890
        %v892 = vsel %vm725, %v891, 0.0
        %893 = vadd.xlane.f32.xlu0 %v892
        %v894 = vpop.xlane.xlu0 %893
        %v895 = vpack.c.bf16 %v891, %v891
        %897 = vrot.lane.b32.xlu0 %v724, 120
        %v898 = vpop.permute.xlu0 %897
        %v900 = vsel %vm725, %v895, 0
        %v903 = vsel %vm785, %v898, 0
        %905 = vmatprep.subr.bf16.mxu0 0
        %906 = vmatpush1.bf16.msra.mxu0 %v903
        %907 = vmatprep.subr.bf16.mxu0 0
        %908 = vmatpush1.bf16.msra.mxu0 0
        %909 = vmatprep.subr.bf16.mxu0 0
        %910 = vmatpush1.bf16.msra.mxu0 0
        %911 = vmatprep.subr.bf16.mxu0 0
        %912 = vmatpush1.bf16.msra.mxu0 0
        %913 = vmatprep.subr.bf16.mxu0 0
        %914 = vmatpush1.bf16.msra.mxu0 0
        %915 = vmatprep.subr.bf16.mxu0 0
        %916 = vmatpush1.bf16.msra.mxu0 0
        %917 = vmatprep.subr.bf16.mxu0 0
        %918 = vmatpush1.bf16.msra.mxu0 0
        %919 = vmatprep.subr.bf16.mxu0 0
        %920 = vmatpush1.bf16.msra.mxu0 0
        %921 = vmatprep.subr.bf16.mxu0 0
        %922 = vmatpush1.bf16.msra.mxu0 0
        %923 = vmatprep.subr.bf16.mxu0 0
        %924 = vmatpush1.bf16.msra.mxu0 0
        %925 = vmatprep.subr.bf16.mxu0 0
        %926 = vmatpush1.bf16.msra.mxu0 0
        %927 = vmatprep.subr.bf16.mxu0 0
        %928 = vmatpush1.bf16.msra.mxu0 0
        %929 = vmatprep.subr.bf16.mxu0 0
        %930 = vmatpush1.bf16.msra.mxu0 0
        %931 = vmatprep.subr.bf16.mxu0 0
        %932 = vmatpush1.bf16.msra.mxu0 0
        %933 = vmatprep.subr.bf16.mxu0 0
        %934 = vmatpush1.bf16.msra.mxu0 0
        %935 = vmatprep.subr.bf16.mxu0 0
        %936 = vmatpush1.bf16.msra.mxu0 0
        %937 = vmatprep.mubr.bf16.mxu0 0
        %938 = vmatmul.mubr.bf16.gmra.mrb[0].mxu0 %v900
        %v939 = vpop.f32.mrb[0].mxu0
        %v940 = vadd.f32 0.0, %v939
        %v941 = vpop.f32.mrb[0].mxu0
        %v942 = vpop.f32.mrb[0].mxu0
        %v943 = vpop.f32.mrb[0].mxu0
        %944 = vdwg.mxu0
        %v945 = vrcp.pop %v894
        %v946 = vmul.f32 %v940, %v945
        %v947 = vpack.c.bf16 %v946, %v946
        %v949 = vunpack.c.l.b16 %v947
        %v950 = vpack.c.b16 %v949, %v949
        %951 = vrot.lane.b32.xlu0 %v950, 8
        %v952 = vpop.permute.xlu0 %951
        %vm954 = vcmask 126016
        %955 = vst.msk [vmem:[#allocation2] sm:$0xf] %vm954, %v952
        %956 = vrot.lane.b32.xlu0 %v590, 112
        %v957 = vpop.permute.xlu0 %956
        %958 = vrot.lane.b32.xlu0 %v657, 112
        %v959 = vpop.permute.xlu0 %958
        %v961 = vsel %vm725, %v957, 0
        %v964 = vsel %vm725, %v959, 0
        %966 = vmatprep.subr.bf16.mxu0 0
        %967 = vmatpush1.bf16.xpose.msra.mxu0 %v964
        %968 = vmatprep.subr.bf16.mxu0 0
        %969 = vmatpush1.bf16.xpose.msra.mxu0 0
        %970 = vmatprep.subr.bf16.mxu0 0
        %971 = vmatpush1.bf16.xpose.msra.mxu0 0
        %972 = vmatprep.subr.bf16.mxu0 0
        %973 = vmatpush1.bf16.xpose.msra.mxu0 0
        %974 = vmatprep.subr.bf16.mxu0 0
        %975 = vmatpush1.bf16.xpose.msra.mxu0 0
        %976 = vmatprep.subr.bf16.mxu0 0
        %977 = vmatpush1.bf16.xpose.msra.mxu0 0
        %978 = vmatprep.subr.bf16.mxu0 0
        %979 = vmatpush1.bf16.xpose.msra.mxu0 0
        %980 = vmatprep.subr.bf16.mxu0 0
        %981 = vmatpush1.bf16.xpose.msra.mxu0 0
        %982 = vmatprep.subr.bf16.mxu0 0
        %983 = vmatpush1.bf16.xpose.msra.mxu0 0
        %984 = vmatprep.subr.bf16.mxu0 0
        %985 = vmatpush1.bf16.xpose.msra.mxu0 0
        %986 = vmatprep.subr.bf16.mxu0 0
        %987 = vmatpush1.bf16.xpose.msra.mxu0 0
        %988 = vmatprep.subr.bf16.mxu0 0
        %989 = vmatpush1.bf16.xpose.msra.mxu0 0
        %990 = vmatprep.subr.bf16.mxu0 0
        %991 = vmatpush1.bf16.xpose.msra.mxu0 0
        %992 = vmatprep.subr.bf16.mxu0 0
        %993 = vmatpush1.bf16.xpose.msra.mxu0 0
        %994 = vmatprep.subr.bf16.mxu0 0
        %995 = vmatpush1.bf16.xpose.msra.mxu0 0
        %996 = vmatprep.subr.bf16.mxu0 0
        %997 = vmatpush1.bf16.xpose.msra.mxu0 0
        %998 = vmatprep.mubr.bf16.mxu0 0
        %999 = vmatmul.mubr.bf16.gmra.mrb[0].mxu0 %v961
        %v1000 = vpop.f32.mrb[0].mxu0
        %v1001 = vadd.f32 0.0, %v1000
        %v1002 = vpop.f32.mrb[0].mxu0
        %v1003 = vpop.f32.mrb[0].mxu0
        %v1004 = vpop.f32.mrb[0].mxu0
        %1005 = vdwg.mxu0
        %v1006 = vsel %vm725, %v1001, -inf
        %1007 = vmax.xlane.f32.xlu0 %v1006
        %v1008 = vpop.xlane.xlu0 %1007
        %v1009 = vsub.f32 %v1001, %v1008
        %v1010 = vmul.f32 %v1009, 1.442695
        %v1011 = vpow.pop %v1010
        %v1012 = vsel %vm725, %v1011, 0.0
        %1013 = vadd.xlane.f32.xlu0 %v1012
        %v1014 = vpop.xlane.xlu0 %1013
        %v1015 = vpack.c.bf16 %v1011, %v1011
        %1016 = vrot.lane.b32.xlu0 %v724, 112
        %v1017 = vpop.permute.xlu0 %1016
        %v1019 = vsel %vm725, %v1015, 0
        %v1022 = vsel %vm785, %v1017, 0
        %1024 = vmatprep.subr.bf16.mxu0 0
        %1025 = vmatpush1.bf16.msra.mxu0 %v1022
        %1026 = vmatprep.subr.bf16.mxu0 0
        %1027 = vmatpush1.bf16.msra.mxu0 0
        %1028 = vmatprep.subr.bf16.mxu0 0
        %1029 = vmatpush1.bf16.msra.mxu0 0
        %1030 = vmatprep.subr.bf16.mxu0 0
        %1031 = vmatpush1.bf16.msra.mxu0 0
        %1032 = vmatprep.subr.bf16.mxu0 0
        %1033 = vmatpush1.bf16.msra.mxu0 0
        %1034 = vmatprep.subr.bf16.mxu0 0
        %1035 = vmatpush1.bf16.msra.mxu0 0
        %1036 = vmatprep.subr.bf16.mxu0 0
        %1037 = vmatpush1.bf16.msra.mxu0 0
        %1038 = vmatprep.subr.bf16.mxu0 0
        %1039 = vmatpush1.bf16.msra.mxu0 0
        %1040 = vmatprep.subr.bf16.mxu0 0
        %1041 = vmatpush1.bf16.msra.mxu0 0
        %1042 = vmatprep.subr.bf16.mxu0 0
        %1043 = vmatpush1.bf16.msra.mxu0 0
        %1044 = vmatprep.subr.bf16.mxu0 0
        %1045 = vmatpush1.bf16.msra.mxu0 0
        %1046 = vmatprep.subr.bf16.mxu0 0
        %1047 = vmatpush1.bf16.msra.mxu0 0
        %1048 = vmatprep.subr.bf16.mxu0 0
        %1049 = vmatpush1.bf16.msra.mxu0 0
        %1050 = vmatprep.subr.bf16.mxu0 0
        %1051 = vmatpush1.bf16.msra.mxu0 0
        %1052 = vmatprep.subr.bf16.mxu0 0
        %1053 = vmatpush1.bf16.msra.mxu0 0
        %1054 = vmatprep.subr.bf16.mxu0 0
        %1055 = vmatpush1.bf16.msra.mxu0 0
        %1056 = vmatprep.mubr.bf16.mxu0 0
        %1057 = vmatmul.mubr.bf16.gmra.mrb[0].mxu0 %v1019
        %v1058 = vpop.f32.mrb[0].mxu0
        %v1059 = vadd.f32 0.0, %v1058
        %v1060 = vpop.f32.mrb[0].mxu0
        %v1061 = vpop.f32.mrb[0].mxu0
        %v1062 = vpop.f32.mrb[0].mxu0
        %1063 = vdwg.mxu0
        %v1064 = vrcp.pop %v1014
        %v1065 = vmul.f32 %v1059, %v1064
        %v1066 = vpack.c.bf16 %v1065, %v1065
        %v1068 = vunpack.c.l.b16 %v1066
        %v1069 = vpack.c.b16 %v1068, %v1068
        %1070 = vrot.lane.b32.xlu0 %v1069, 16
        %v1071 = vpop.permute.xlu0 %1070
        %vm1073 = vcmask 191616
        %1074 = vst.msk [vmem:[#allocation2] sm:$0xf] %vm1073, %v1071
        %1075 = vrot.lane.b32.xlu0 %v590, 104
        %v1076 = vpop.permute.xlu0 %1075
        %1077 = vrot.lane.b32.xlu0 %v657, 104
        %v1078 = vpop.permute.xlu0 %1077
        %v1080 = vsel %vm725, %v1076, 0
        %v1083 = vsel %vm725, %v1078, 0
        %1085 = vmatprep.subr.bf16.mxu0 0
        %1086 = vmatpush1.bf16.xpose.msra.mxu0 %v1083
        %1087 = vmatprep.subr.bf16.mxu0 0
        %1088 = vmatpush1.bf16.xpose.msra.mxu0 0
        %1089 = vmatprep.subr.bf16.mxu0 0
        %1090 = vmatpush1.bf16.xpose.msra.mxu0 0
        %1091 = vmatprep.subr.bf16.mxu0 0
        %1092 = vmatpush1.bf16.xpose.msra.mxu0 0
        %1093 = vmatprep.subr.bf16.mxu0 0
        %1094 = vmatpush1.bf16.xpose.msra.mxu0 0
        %1095 = vmatprep.subr.bf16.mxu0 0
        %1096 = vmatpush1.bf16.xpose.msra.mxu0 0
        %1097 = vmatprep.subr.bf16.mxu0 0
        %1098 = vmatpush1.bf16.xpose.msra.mxu0 0
        %1099 = vmatprep.subr.bf16.mxu0 0
        %1100 = vmatpush1.bf16.xpose.msra.mxu0 0
        %1101 = vmatprep.subr.bf16.mxu0 0
        %1102 = vmatpush1.bf16.xpose.msra.mxu0 0
        %1103 = vmatprep.subr.bf16.mxu0 0
        %1104 = vmatpush1.bf16.xpose.msra.mxu0 0
        %1105 = vmatprep.subr.bf16.mxu0 0
        %1106 = vmatpush1.bf16.xpose.msra.mxu0 0
        %1107 = vmatprep.subr.bf16.mxu0 0
        %1108 = vmatpush1.bf16.xpose.msra.mxu0 0
        %1109 = vmatprep.subr.bf16.mxu0 0
        %1110 = vmatpush1.bf16.xpose.msra.mxu0 0
        %1111 = vmatprep.subr.bf16.mxu0 0
        %1112 = vmatpush1.bf16.xpose.msra.mxu0 0
        %1113 = vmatprep.subr.bf16.mxu0 0
        %1114 = vmatpush1.bf16.xpose.msra.mxu0 0
        %1115 = vmatprep.subr.bf16.mxu0 0
        %1116 = vmatpush1.bf16.xpose.msra.mxu0 0
        %1117 = vmatprep.mubr.bf16.mxu0 0
        %1118 = vmatmul.mubr.bf16.gmra.mrb[0].mxu0 %v1080
        %v1119 = vpop.f32.mrb[0].mxu0
        %v1120 = vadd.f32 0.0, %v1119
        %v1121 = vpop.f32.mrb[0].mxu0
        %v1122 = vpop.f32.mrb[0].mxu0
        %v1123 = vpop.f32.mrb[0].mxu0
        %1124 = vdwg.mxu0
        %v1125 = vsel %vm725, %v1120, -inf
        %1126 = vmax.xlane.f32.xlu0 %v1125
        %v1127 = vpop.xlane.xlu0 %1126
        %v1128 = vsub.f32 %v1120, %v1127
        %v1129 = vmul.f32 %v1128, 1.442695
        %v1130 = vpow.pop %v1129
        %v1131 = vsel %vm725, %v1130, 0.0
        %1132 = vadd.xlane.f32.xlu0 %v1131
        %v1133 = vpop.xlane.xlu0 %1132
        %v1134 = vpack.c.bf16 %v1130, %v1130
        %1135 = vrot.lane.b32.xlu0 %v724, 104
        %v1136 = vpop.permute.xlu0 %1135
        %v1138 = vsel %vm725, %v1134, 0
        %v1141 = vsel %vm785, %v1136, 0
        %1143 = vmatprep.subr.bf16.mxu0 0
        %1144 = vmatpush1.bf16.msra.mxu0 %v1141
        %1145 = vmatprep.subr.bf16.mxu0 0
        %1146 = vmatpush1.bf16.msra.mxu0 0
        %1147 = vmatprep.subr.bf16.mxu0 0
        %1148 = vmatpush1.bf16.msra.mxu0 0
        %1149 = vmatprep.subr.bf16.mxu0 0
        %1150 = vmatpush1.bf16.msra.mxu0 0
        %1151 = vmatprep.subr.bf16.mxu0 0
        %1152 = vmatpush1.bf16.msra.mxu0 0
        %1153 = vmatprep.subr.bf16.mxu0 0
        %1154 = vmatpush1.bf16.msra.mxu0 0
        %1155 = vmatprep.subr.bf16.mxu0 0
        %1156 = vmatpush1.bf16.msra.mxu0 0
        %1157 = vmatprep.subr.bf16.mxu0 0
        %1158 = vmatpush1.bf16.msra.mxu0 0
        %1159 = vmatprep.subr.bf16.mxu0 0
        %1160 = vmatpush1.bf16.msra.mxu0 0
        %1161 = vmatprep.subr.bf16.mxu0 0
        %1162 = vmatpush1.bf16.msra.mxu0 0
        %1163 = vmatprep.subr.bf16.mxu0 0
        %1164 = vmatpush1.bf16.msra.mxu0 0
        %1165 = vmatprep.subr.bf16.mxu0 0
        %1166 = vmatpush1.bf16.msra.mxu0 0
        %1167 = vmatprep.subr.bf16.mxu0 0
        %1168 = vmatpush1.bf16.msra.mxu0 0
        %1169 = vmatprep.subr.bf16.mxu0 0
        %1170 = vmatpush1.bf16.msra.mxu0 0
        %1171 = vmatprep.subr.bf16.mxu0 0
        %1172 = vmatpush1.bf16.msra.mxu0 0
        %1173 = vmatprep.subr.bf16.mxu0 0
        %1174 = vmatpush1.bf16.msra.mxu0 0
        %1175 = vmatprep.mubr.bf16.mxu0 0
        %1176 = vmatmul.mubr.bf16.gmra.mrb[0].mxu0 %v1138
        %v1177 = vpop.f32.mrb[0].mxu0
        %v1178 = vadd.f32 0.0, %v1177
        %v1179 = vpop.f32.mrb[0].mxu0
        %v1180 = vpop.f32.mrb[0].mxu0
        %v1181 = vpop.f32.mrb[0].mxu0
        %1182 = vdwg.mxu0
        %v1183 = vrcp.pop %v1133
        %v1184 = vmul.f32 %v1178, %v1183
        %v1185 = vpack.c.bf16 %v1184, %v1184
        %v1187 = vunpack.c.l.b16 %v1185
        %v1188 = vpack.c.b16 %v1187, %v1187
        %1189 = vrot.lane.b32.xlu0 %v1188, 24
        %v1190 = vpop.permute.xlu0 %1189
        %vm1192 = vcmask 257216
        %1193 = vst.msk [vmem:[#allocation2] sm:$0xf] %vm1192, %v1190
        %v1194 = vld [vmem:[#allocation2] sm:$0xf]
        %v1195 = vld [vmem:[%s9] sm:$0xf]
        %v1196 = vld [vmem:[%s9 + $0x4] sm:$0xf]
        %v1197 = vld [vmem:[%s9 + $0x8] sm:$0xf]
        %v1198 = vld [vmem:[%s9 + $0xc] sm:$0xf]
        %v1199 = vld [vmem:[%s10] sm:$0x1]
        %v1201 = vlaneseq
        %v1202 = vshrl.u32 %v1201, 7
        %v1203 = vsub.s32 0, %v1202
        %v1204 = vrot.slane %v1199, %v1203
        %v1210 = vunpack.c.l.b16 %v1195
        %v1211 = vunpack.c.l.b16 %v1196
        %v1212 = vunpack.c.l.b16 %v1197
        %v1213 = vunpack.c.l.b16 %v1198
        %v1214 = vpack.c.b16 %v1211, %v1210
        %v1215 = vpack.c.b16 %v1213, %v1212
        %v1219 = vsel %vm545, %v1194, 0
        %1221 = vmatprep.subr.bf16.mxu0 0
        %1222 = vmatpush1.bf16.msra.mxu0 %v1214
        %1223 = vmatprep.subr.bf16.mxu0 0
        %1224 = vmatpush1.bf16.msra.mxu0 %v1215
        %1225 = vmatprep.subr.bf16.mxu0 0
        %1226 = vmatpush1.bf16.msra.mxu0 0
        %1227 = vmatprep.subr.bf16.mxu0 0
        %1228 = vmatpush1.bf16.msra.mxu0 0
        %1229 = vmatprep.subr.bf16.mxu0 0
        %1230 = vmatpush1.bf16.msra.mxu0 0
        %1231 = vmatprep.subr.bf16.mxu0 0
        %1232 = vmatpush1.bf16.msra.mxu0 0
        %1233 = vmatprep.subr.bf16.mxu0 0
        %1234 = vmatpush1.bf16.msra.mxu0 0
        %1235 = vmatprep.subr.bf16.mxu0 0
        %1236 = vmatpush1.bf16.msra.mxu0 0
        %1237 = vmatprep.subr.bf16.mxu0 0
        %1238 = vmatpush1.bf16.msra.mxu0 0
        %1239 = vmatprep.subr.bf16.mxu0 0
        %1240 = vmatpush1.bf16.msra.mxu0 0
        %1241 = vmatprep.subr.bf16.mxu0 0
        %1242 = vmatpush1.bf16.msra.mxu0 0
        %1243 = vmatprep.subr.bf16.mxu0 0
        %1244 = vmatpush1.bf16.msra.mxu0 0
        %1245 = vmatprep.subr.bf16.mxu0 0
        %1246 = vmatpush1.bf16.msra.mxu0 0
        %1247 = vmatprep.subr.bf16.mxu0 0
        %1248 = vmatpush1.bf16.msra.mxu0 0
        %1249 = vmatprep.subr.bf16.mxu0 0
        %1250 = vmatpush1.bf16.msra.mxu0 0
        %1251 = vmatprep.subr.bf16.mxu0 0
        %1252 = vmatpush1.bf16.msra.mxu0 0
        %1253 = vmatprep.mubr.bf16.mxu0 0
        %1254 = vmatmul.mubr.bf16.gmra.mrb[0].mxu0 %v1219
        %v1255 = vpop.f32.mrb[0].mxu0
        %v1256 = vadd.f32 %v1204, %v1255
        %v1257 = vpop.f32.mrb[0].mxu0
        %v1258 = vpop.f32.mrb[0].mxu0
        %v1259 = vpop.f32.mrb[0].mxu0
        %1260 = vdwg.mxu0
        %1261 = vst.msk [vmem:[%s514] sm:$0xff] %vm545, %v1256
        %s1262 = sand.u32 %s287, 1
        %s1263 = scalar_lea.sflag [#allocation5], %s1262
        %s1264 = sand.u32 %s287, 1
        %s1265 = smul.addr %s1264, 8
        %s1266 = scalar_lea.vmem [#allocation14], %s1265
        // Predicated region
        $region89: #{tpu_custom_call.1} parent=63 // pred_check
          %p1267 = pneg %p297
        $region90: #{tpu_custom_call.1} parent=63 // pred_check_branch
          %1269 = sbr.rel (%p1267) target = $region92
        $region91: #{tpu_custom_call.1} parent=63 // pred_region
          %s1271 = ssub.s32 128, 128
          %1272 = vsyncadd %s1263, %s1271
          %s1273 = smul.addr %s33, 128
          %s1274 = scalar_lea.hbm %s11, %s1273
          %s1276 = sshll.u32 %s1266, 4
          %s1277 = int_to_ptr.vmem [resolvable:$true] %s1276
          %1279 = dma.vmem_to_hbm [thread:$0]  %s1277, 128, %s1274, %s1263
        $region92: #{tpu_custom_call.1} parent=63 // pred_fallthru
          _
      $region64: #{tpu_custom_call.1} parent=5 // pred_fallthru
        _
      %p1280 = scmp.le.s32.totalorder 2, %s28
      // Predicated region
      $region93: #{tpu_custom_call.1} parent=5 // pred_check
        %p1281 = pneg %p1280
      $region94: #{tpu_custom_call.1} parent=5 // pred_check_branch
        %1283 = sbr.rel (%p1281) target = $region96
      $region95: #{tpu_custom_call.1} parent=5 // pred_region
        %s1284 = ssub.s32 %s28, 2
        // Predicated region
        $region97: #{tpu_custom_call.1} parent=95 // pred_check
          %p1285 = pneg %p303
        $region98: #{tpu_custom_call.1} parent=95 // pred_check_branch
          %1287 = sbr.rel (%p1285) target = $region100
        $region99: #{tpu_custom_call.1} parent=95 // pred_region
          %s1288 = sand.u32 %s288, 1
          %s1289 = scalar_lea.sflag [#allocation5], %s1288
          %s1290 = sand.u32 %s288, 1
          %s1291 = smul.addr %s1290, 8
          %s1292 = scalar_lea.vmem [#allocation14], %s1291
          %1293 = dma.done %s1289, 128
        $region100: #{tpu_custom_call.1} parent=95 // pred_fallthru
          _
      $region96: #{tpu_custom_call.1} parent=5 // pred_fallthru
        _
    $region6: #{tpu_custom_call.1} parent=1 // loop_footer
      %s32 = sadd.s32 1, %s28
    $region7: #{tpu_custom_call.1} parent=1 // loop_footer_branch
      %27 = sbr.rel target = $region3
    $region8: #{tpu_custom_call.1} parent=1 // loop_exit
      _
    %1294 = vsyncpa [#allocation4], 1
    %s1295 = scalar_lea.sflag [#allocation4], 1
    %1296 = vsyncpa %s1295, 1
    %1297 = vsyncpa [#allocation7], 1
    %s1298 = scalar_lea.sflag [#allocation7], 1
    %1299 = vsyncpa %s1298, 1
    %1300 = vsyncpa [#allocation10], 1
    %1301 = vsyncpa [#allocation13], 1
    %1302 = vsyncpa [#allocation5], 1
    %s1303 = scalar_lea.sflag [#allocation5], 1
    %1304 = vsyncpa %s1303, 1

// kernel: tpu_custom_call.1
$region0: #{tpu_custom_call.1}
  #allocation0 [shape = 'u32[]', space=smem, size = 0x4, offset = 0x4, fixed_abs, tag = 'smem constant byte address 0x4 - core index']
  #allocation1 [shape = 'u32[144,128]{1,0:T(1,128)}', space=vmem, size = 0x12000, scoped, tag = 'internal scratch']
  #allocation2 [shape = 'bf16[8,32]{1,0:T(8,128)(2,1)}', space=vmem, size = 0x800, scoped, tag = 'scratch operand']
  %s0 = inlined_call_operand.hbm [shape: f32[2,8,32], index: 0, kind: input, shape index: {}]
  %s1 = inlined_call_operand.hbm [shape: f32[2,8,32], index: 1, kind: input, shape index: {}]
  %s2 = inlined_call_operand.hbm [shape: f32[2,8,32], index: 2, kind: input, shape index: {}]
  %s3 = inlined_call_operand.hbm [shape: bf16[32,32], index: 3, kind: input, shape index: {}]
  %s4 = inlined_call_operand.vmem [shape: f32[1,32], index: 4, kind: input, shape index: {}]
  %s5 = inlined_call_operand.vmem [shape: bf16[32,32], index: 5, kind: input, shape index: {}]
  %s6 = inlined_call_operand.vmem [shape: f32[1,32], index: 6, kind: input, shape index: {}]
  %s7 = inlined_call_operand.hbm [shape: bf16[32,32], index: 7, kind: input, shape index: {}]
  %s8 = inlined_call_operand.hbm [shape: f32[1,32], index: 8, kind: input, shape index: {}]
  %s9 = inlined_call_operand.vmem [shape: bf16[32,32], index: 9, kind: input, shape index: {}]
  %s10 = inlined_call_operand.vmem [shape: f32[1,32], index: 10, kind: input, shape index: {}]
  %s11 = inlined_call_operand.hbm [shape: f32[2,8,32], index: 11, kind: output, shape index: {}]
  %s12 = sld [smem:[#allocation0]]
  $region101: #{tpu_custom_call.1} parent=0
    _
  %s14 = ssub.s32 1, %s12
  %s15 = scalar_select 0, %s14, %s12
  $region1: #{tpu_custom_call.1} parent=0
    #allocation3 [shape = 'u8[8192]{0}', space=vmem, size = 0x2000, scoped, tag = 'input window, operand 0']
    #allocation4 [shape = 's32[2]{0}', space=sflag, size = 0x8, scoped, tag = 'scoped memory for tpu_custom_call.1']
    #allocation5 [shape = 's32[2]{0}', space=sflag, size = 0x8, scoped, tag = 'scoped memory for tpu_custom_call.1']
    #allocation6 [shape = 'u8[8192]{0}', space=vmem, size = 0x2000, scoped, tag = 'input window, operand 1']
    #allocation7 [shape = 's32[2]{0}', space=sflag, size = 0x8, scoped, tag = 'scoped memory for tpu_custom_call.1']
    #allocation8 [shape = 'u8[8192]{0}', space=vmem, size = 0x2000, scoped, tag = 'input window, operand 2']
    #allocation9 [shape = 'u8[8192]{0}', space=vmem, size = 0x2000, scoped, tag = 'input window, operand 3, single buffered']
    #allocation10 [shape = 's32[1]{0}', space=sflag, size = 0x4, scoped, tag = 'scoped memory for tpu_custom_call.1']
    #allocation11 [shape = 'u8[8192]{0}', space=vmem, size = 0x2000, scoped, tag = 'input window, operand 7, single buffered']
    #allocation12 [shape = 'u8[512]{0}', space=vmem, size = 0x400, scoped, tag = 'input window, operand 8, single buffered']
    #allocation13 [shape = 's32[1]{0}', space=sflag, size = 0x4, scoped, tag = 'scoped memory for tpu_custom_call.1']
    #allocation14 [shape = 'u8[8192]{0}', space=vmem, size = 0x2000, scoped, tag = 'output window, operand 0']
    %16 = vsyncpa [#allocation4], 0
    %s17 = scalar_lea.sflag [#allocation4], 1
    %18 = vsyncpa %s17, 0
    %19 = vsyncpa [#allocation7], 0
    %s20 = scalar_lea.sflag [#allocation7], 1
    %21 = vsyncpa %s20, 0
    %22 = vsyncpa [#allocation10], 0
    %23 = vsyncpa [#allocation13], 0
    %24 = vsyncpa [#allocation5], 0
    %s25 = scalar_lea.sflag [#allocation5], 1
    %26 = vsyncpa %s25, 0
    loop: start=0, step=1, limit=4
    $region2: #{tpu_custom_call.1} parent=1 // loop_pre_header
      _
    $region3: #{tpu_custom_call.1} parent=1 // loop_header
      %s28 = sphi 0, %s32
      %p29 = scmp.ge.s32.totalorder %s28, 4
      %s38 = sphi 0, %s40
      %s41 = sphi 0, %s38
      %s42 = sphi 0, %s41
      %s58 = sphi 0, %s42
      %s64 = sphi 0, %s66
      %s67 = sphi 0, %s64
      %s68 = sphi 0, %s67
      %s84 = sphi 0, %s68
      %s90 = sphi 0, %s92
      %s93 = sphi 0, %s90
      %s94 = sphi 0, %s93
      %s110 = sphi 0, %s94
      %s114 = sphi 0, %s114
      %s116 = sphi 0, %s114
      %s117 = sphi 0, %s116
      %s131 = sphi 0, %s117
      %s135 = sphi 0, %s135
      %s137 = sphi 0, %s135
      %s138 = sphi 0, %s137
      %s152 = sphi 0, %s138
      %s156 = sphi 0, %s156
      %s158 = sphi 0, %s156
      %s159 = sphi 0, %s158
      %s173 = sphi 0, %s159
      %s177 = sphi 0, %s177
      %s179 = sphi 0, %s177
      %s180 = sphi 0, %s179
      %s194 = sphi 0, %s180
      %s198 = sphi 0, %s198
      %s200 = sphi 0, %s198
      %s201 = sphi 0, %s200
      %s215 = sphi 0, %s201
      %s219 = sphi 0, %s219
      %s221 = sphi 0, %s219
      %s222 = sphi 0, %s221
      %s236 = sphi 0, %s222
      %s240 = sphi 0, %s240
      %s242 = sphi 0, %s240
      %s243 = sphi 0, %s242
      %s257 = sphi 0, %s243
      %s261 = sphi 0, %s261
      %s263 = sphi 0, %s261
      %s264 = sphi 0, %s263
      %s278 = sphi 0, %s264
      %s284 = sphi 0, %s286
      %s287 = sphi 0, %s284
      %s288 = sphi 0, %s287
      %s304 = sphi 0, %s288
    $region4: #{tpu_custom_call.1} parent=1 // loop_header_branch
      %31 = sbr.rel (%p29) target = $region8
    $region5: #{tpu_custom_call.1} parent=1 // loop_body
      %s33 = ssub.s32 %s28, 1
      %s34 = ssub.s32 %s28, 2
      %s35 = sadd.s32 %s28, 1
      %s36 = ssub.s32 %s28, %s35
      %p37 = scmp.eq.s32.totalorder %s36, 0
      %s39 = sadd.s32 %s38, 1
      %s40 = scalar_select %p37, %s38, %s39
      %p43 = pneg %p37
      %p44 = scmp.eq.s32.totalorder %s28, 1
      %p45 = por %p43, %p44
      %p46 = scmp.ne.s32.totalorder %s38, %s41
      %p47 = scmp.eq.s32.totalorder %s28, 0
      %p48 = por %p46, %p47
      %p49 = scmp.ne.s32.totalorder %s38, %s41
      %p50 = scmp.eq.s32.totalorder %s33, 1
      %p51 = por %p49, %p50
      %p52 = scmp.ne.s32.totalorder %s41, %s42
      %p53 = scmp.eq.s32.totalorder %s33, 0
      %p54 = por %p52, %p53
      %p55 = scmp.ne.s32.totalorder %s41, %s42
      %p56 = scmp.eq.s32.totalorder %s34, 1
      %p57 = por %p55, %p56
      %p59 = scmp.ne.s32.totalorder %s42, %s58
      %p60 = scmp.eq.s32.totalorder %s34, 0
      %p61 = por %p59, %p60
      %s62 = ssub.s32 %s28, %s35
      %p63 = scmp.eq.s32.totalorder %s62, 0
      %s65 = sadd.s32 %s64, 1
      %s66 = scalar_select %p63, %s64, %s65
      %p69 = pneg %p63
      %p70 = scmp.eq.s32.totalorder %s28, 1
      %p71 = por %p69, %p70
      %p72 = scmp.ne.s32.totalorder %s64, %s67
      %p73 = scmp.eq.s32.totalorder %s28, 0
      %p74 = por %p72, %p73
      %p75 = scmp.ne.s32.totalorder %s64, %s67
      %p76 = scmp.eq.s32.totalorder %s33, 1
      %p77 = por %p75, %p76
      %p78 = scmp.ne.s32.totalorder %s67, %s68
      %p79 = scmp.eq.s32.totalorder %s33, 0
      %p80 = por %p78, %p79
      %p81 = scmp.ne.s32.totalorder %s67, %s68
      %p82 = scmp.eq.s32.totalorder %s34, 1
      %p83 = por %p81, %p82
      %p85 = scmp.ne.s32.totalorder %s68, %s84
      %p86 = scmp.eq.s32.totalorder %s34, 0
      %p87 = por %p85, %p86
      %s88 = ssub.s32 %s28, %s35
      %p89 = scmp.eq.s32.totalorder %s88, 0
      %s91 = sadd.s32 %s90, 1
      %s92 = scalar_select %p89, %s90, %s91
      %p95 = pneg %p89
      %p96 = scmp.eq.s32.totalorder %s28, 1
      %p97 = por %p95, %p96
      %p98 = scmp.ne.s32.totalorder %s90, %s93
      %p99 = scmp.eq.s32.totalorder %s28, 0
      %p100 = por %p98, %p99
      %p101 = scmp.ne.s32.totalorder %s90, %s93
      %p102 = scmp.eq.s32.totalorder %s33, 1
      %p103 = por %p101, %p102
      %p104 = scmp.ne.s32.totalorder %s93, %s94
      %p105 = scmp.eq.s32.totalorder %s33, 0
      %p106 = por %p104, %p105
      %p107 = scmp.ne.s32.totalorder %s93, %s94
      %p108 = scmp.eq.s32.totalorder %s34, 1
      %p109 = por %p107, %p108
      %p111 = scmp.ne.s32.totalorder %s94, %s110
      %p112 = scmp.eq.s32.totalorder %s34, 0
      %p113 = por %p111, %p112
      %s115 = sadd.s32 %s114, 1
      %p118 = scmp.eq.s32.totalorder %s28, 1
      %p119 = scmp.ne.s32.totalorder %s114, %s116
      %p120 = scmp.eq.s32.totalorder %s28, 0
      %p121 = por %p119, %p120
      %p122 = scmp.ne.s32.totalorder %s114, %s116
      %p123 = scmp.eq.s32.totalorder %s33, 1
      %p124 = por %p122, %p123
      %p125 = scmp.ne.s32.totalorder %s116, %s117
      %p126 = scmp.eq.s32.totalorder %s33, 0
      %p127 = por %p125, %p126
      %p128 = scmp.ne.s32.totalorder %s116, %s117
      %p129 = scmp.eq.s32.totalorder %s34, 1
      %p130 = por %p128, %p129
      %p132 = scmp.ne.s32.totalorder %s117, %s131
      %p133 = scmp.eq.s32.totalorder %s34, 0
      %p134 = por %p132, %p133
      %s136 = sadd.s32 %s135, 1
      %p139 = scmp.eq.s32.totalorder %s28, 1
      %p140 = scmp.ne.s32.totalorder %s135, %s137
      %p141 = scmp.eq.s32.totalorder %s28, 0
      %p142 = por %p140, %p141
      %p143 = scmp.ne.s32.totalorder %s135, %s137
      %p144 = scmp.eq.s32.totalorder %s33, 1
      %p145 = por %p143, %p144
      %p146 = scmp.ne.s32.totalorder %s137, %s138
      %p147 = scmp.eq.s32.totalorder %s33, 0
      %p148 = por %p146, %p147
      %p149 = scmp.ne.s32.totalorder %s137, %s138
      %p150 = scmp.eq.s32.totalorder %s34, 1
      %p151 = por %p149, %p150
      %p153 = scmp.ne.s32.totalorder %s138, %s152
      %p154 = scmp.eq.s32.totalorder %s34, 0
      %p155 = por %p153, %p154
      %s157 = sadd.s32 %s156, 1
      %p160 = scmp.eq.s32.totalorder %s28, 1
      %p161 = scmp.ne.s32.totalorder %s156, %s158
      %p162 = scmp.eq.s32.totalorder %s28, 0
      %p163 = por %p161, %p162
      %p164 = scmp.ne.s32.totalorder %s156, %s158
      %p165 = scmp.eq.s32.totalorder %s33, 1
      %p166 = por %p164, %p165
      %p167 = scmp.ne.s32.totalorder %s158, %s159
      %p168 = scmp.eq.s32.totalorder %s33, 0
      %p169 = por %p167, %p168
      %p170 = scmp.ne.s32.totalorder %s158, %s159
      %p171 = scmp.eq.s32.totalorder %s34, 1
      %p172 = por %p170, %p171
      %p174 = scmp.ne.s32.totalorder %s159, %s173
      %p175 = scmp.eq.s32.totalorder %s34, 0
      %p176 = por %p174, %p175
      %s178 = sadd.s32 %s177, 1
      %p181 = scmp.eq.s32.totalorder %s28, 1
      %p182 = scmp.ne.s32.totalorder %s177, %s179
      %p183 = scmp.eq.s32.totalorder %s28, 0
      %p184 = por %p182, %p183
      %p185 = scmp.ne.s32.totalorder %s177, %s179
      %p186 = scmp.eq.s32.totalorder %s33, 1
      %p187 = por %p185, %p186
      %p188 = scmp.ne.s32.totalorder %s179, %s180
      %p189 = scmp.eq.s32.totalorder %s33, 0
      %p190 = por %p188, %p189
      %p191 = scmp.ne.s32.totalorder %s179, %s180
      %p192 = scmp.eq.s32.totalorder %s34, 1
      %p193 = por %p191, %p192
      %p195 = scmp.ne.s32.totalorder %s180, %s194
      %p196 = scmp.eq.s32.totalorder %s34, 0
      %p197 = por %p195, %p196
      %s199 = sadd.s32 %s198, 1
      %p202 = scmp.eq.s32.totalorder %s28, 1
      %p203 = scmp.ne.s32.totalorder %s198, %s200
      %p204 = scmp.eq.s32.totalorder %s28, 0
      %p205 = por %p203, %p204
      %p206 = scmp.ne.s32.totalorder %s198, %s200
      %p207 = scmp.eq.s32.totalorder %s33, 1
      %p208 = por %p206, %p207
      %p209 = scmp.ne.s32.totalorder %s200, %s201
      %p210 = scmp.eq.s32.totalorder %s33, 0
      %p211 = por %p209, %p210
      %p212 = scmp.ne.s32.totalorder %s200, %s201
      %p213 = scmp.eq.s32.totalorder %s34, 1
      %p214 = por %p212, %p213
      %p216 = scmp.ne.s32.totalorder %s201, %s215
      %p217 = scmp.eq.s32.totalorder %s34, 0
      %p218 = por %p216, %p217
      %s220 = sadd.s32 %s219, 1
      %p223 = scmp.eq.s32.totalorder %s28, 1
      %p224 = scmp.ne.s32.totalorder %s219, %s221
      %p225 = scmp.eq.s32.totalorder %s28, 0
      %p226 = por %p224, %p225
      %p227 = scmp.ne.s32.totalorder %s219, %s221
      %p228 = scmp.eq.s32.totalorder %s33, 1
      %p229 = por %p227, %p228
      %p230 = scmp.ne.s32.totalorder %s221, %s222
      %p231 = scmp.eq.s32.totalorder %s33, 0
      %p232 = por %p230, %p231
      %p233 = scmp.ne.s32.totalorder %s221, %s222
      %p234 = scmp.eq.s32.totalorder %s34, 1
      %p235 = por %p233, %p234
      %p237 = scmp.ne.s32.totalorder %s222, %s236
      %p238 = scmp.eq.s32.totalorder %s34, 0
      %p239 = por %p237, %p238
      %s241 = sadd.s32 %s240, 1
      %p244 = scmp.eq.s32.totalorder %s28, 1
      %p245 = scmp.ne.s32.totalorder %s240, %s242
      %p246 = scmp.eq.s32.totalorder %s28, 0
      %p247 = por %p245, %p246
      %p248 = scmp.ne.s32.totalorder %s240, %s242
      %p249 = scmp.eq.s32.totalorder %s33, 1
      %p250 = por %p248, %p249
      %p251 = scmp.ne.s32.totalorder %s242, %s243
      %p252 = scmp.eq.s32.totalorder %s33, 0
      %p253 = por %p251, %p252
      %p254 = scmp.ne.s32.totalorder %s242, %s243
      %p255 = scmp.eq.s32.totalorder %s34, 1
      %p256 = por %p254, %p255
      %p258 = scmp.ne.s32.totalorder %s243, %s257
      %p259 = scmp.eq.s32.totalorder %s34, 0
      %p260 = por %p258, %p259
      %s262 = sadd.s32 %s261, 1
      %p265 = scmp.eq.s32.totalorder %s28, 1
      %p266 = scmp.ne.s32.totalorder %s261, %s263
      %p267 = scmp.eq.s32.totalorder %s28, 0
      %p268 = por %p266, %p267
      %p269 = scmp.ne.s32.totalorder %s261, %s263
      %p270 = scmp.eq.s32.totalorder %s33, 1
      %p271 = por %p269, %p270
      %p272 = scmp.ne.s32.totalorder %s263, %s264
      %p273 = scmp.eq.s32.totalorder %s33, 0
      %p274 = por %p272, %p273
      %p275 = scmp.ne.s32.totalorder %s263, %s264
      %p276 = scmp.eq.s32.totalorder %s34, 1
      %p277 = por %p275, %p276
      %p279 = scmp.ne.s32.totalorder %s264, %s278
      %p280 = scmp.eq.s32.totalorder %s34, 0
      %p281 = por %p279, %p280
      %s282 = ssub.s32 %s28, %s35
      %p283 = scmp.eq.s32.totalorder %s282, 0
      %s285 = sadd.s32 %s284, 1
      %s286 = scalar_select %p283, %s284, %s285
      %p289 = pneg %p283
      %p290 = scmp.eq.s32.totalorder %s28, 1
      %p291 = por %p289, %p290
      %p292 = scmp.ne.s32.totalorder %s284, %s287
      %p293 = scmp.eq.s32.totalorder %s28, 0
      %p294 = por %p292, %p293
      %p295 = scmp.ne.s32.totalorder %s284, %s287
      %p296 = scmp.eq.s32.totalorder %s33, 1
      %p297 = por %p295, %p296
      %p298 = scmp.ne.s32.totalorder %s287, %s288
      %p299 = scmp.eq.s32.totalorder %s33, 0
      %p300 = por %p298, %p299
      %p301 = scmp.ne.s32.totalorder %s287, %s288
      %p302 = scmp.eq.s32.totalorder %s34, 1
      %p303 = por %p301, %p302
      %p305 = scmp.ne.s32.totalorder %s288, %s304
      %p306 = scmp.eq.s32.totalorder %s34, 0
      %p307 = por %p305, %p306
      %p308 = scmp.le.s32.totalorder 1, %s28
      %p309 = scmp.lt.s32.totalorder %s28, 3
      %p310 = pnand %p308, %p309
      %p311 = pneg %p310
      // Predicated region
      $region9: #{tpu_custom_call.1} parent=5 // pred_check
        _
      $region10: #{tpu_custom_call.1} parent=5 // pred_check_branch
        %313 = sbr.rel (%p310) target = $region12
      $region11: #{tpu_custom_call.1} parent=5 // pred_region
        %s314 = ssub.s32 %s28, 1
        // Predicated region
        $region13: #{tpu_custom_call.1} parent=11 // pred_check
          %p315 = pneg %p127
        $region14: #{tpu_custom_call.1} parent=11 // pred_check_branch
          %317 = sbr.rel (%p315) target = $region16
        $region15: #{tpu_custom_call.1} parent=11 // pred_region
          %s319 = ssub.s32 256, 256
          %320 = vsyncadd [#allocation10], %s319
          %s321 = sshll.u32 [#allocation9], 4
          %s322 = int_to_ptr.vmem [resolvable:$true] %s321
          %327 = dma.hbm_to_vmem [thread:$0]  %s3, 256, %s322, [#allocation10], 64, 64, 4
        $region16: #{tpu_custom_call.1} parent=11 // pred_fallthru
          _
        // Predicated region
        $region17: #{tpu_custom_call.1} parent=11 // pred_check
          %p328 = pneg %p148
        $region18: #{tpu_custom_call.1} parent=11 // pred_check_branch
          %330 = sbr.rel (%p328) target = $region20
        $region19: #{tpu_custom_call.1} parent=11 // pred_region
          _
        $region20: #{tpu_custom_call.1} parent=11 // pred_fallthru
          _
        // Predicated region
        $region21: #{tpu_custom_call.1} parent=11 // pred_check
          %p331 = pneg %p169
        $region22: #{tpu_custom_call.1} parent=11 // pred_check_branch
          %333 = sbr.rel (%p331) target = $region24
        $region23: #{tpu_custom_call.1} parent=11 // pred_region
          _
        $region24: #{tpu_custom_call.1} parent=11 // pred_fallthru
          _
        // Predicated region
        $region25: #{tpu_custom_call.1} parent=11 // pred_check
          %p334 = pneg %p190
        $region26: #{tpu_custom_call.1} parent=11 // pred_check_branch
          %336 = sbr.rel (%p334) target = $region28
        $region27: #{tpu_custom_call.1} parent=11 // pred_region
          _
        $region28: #{tpu_custom_call.1} parent=11 // pred_fallthru
          _
        // Predicated region
        $region29: #{tpu_custom_call.1} parent=11 // pred_check
          %p337 = pneg %p211
        $region30: #{tpu_custom_call.1} parent=11 // pred_check_branch
          %339 = sbr.rel (%p337) target = $region32
        $region31: #{tpu_custom_call.1} parent=11 // pred_region
          %s341 = ssub.s32 256, 256
          %342 = vsyncadd [#allocation10], %s341
          %s343 = sshll.u32 [#allocation11], 4
          %s344 = int_to_ptr.vmem [resolvable:$true] %s343
          %349 = dma.hbm_to_vmem [thread:$0]  %s7, 256, %s344, [#allocation10], 64, 64, 4
        $region32: #{tpu_custom_call.1} parent=11 // pred_fallthru
          _
        // Predicated region
        $region33: #{tpu_custom_call.1} parent=11 // pred_check
          %p350 = pneg %p232
        $region34: #{tpu_custom_call.1} parent=11 // pred_check_branch
          %352 = sbr.rel (%p350) target = $region36
        $region35: #{tpu_custom_call.1} parent=11 // pred_region
          %s354 = ssub.s32 16, 16
          %355 = vsyncadd [#allocation13], %s354
          %s357 = sshll.u32 [#allocation12], 4
          %s358 = int_to_ptr.vmem [resolvable:$true] %s357
          %360 = dma.hbm_to_vmem [thread:$0]  %s8, 16, %s358, [#allocation13]
        $region36: #{tpu_custom_call.1} parent=11 // pred_fallthru
          _
        // Predicated region
        $region37: #{tpu_custom_call.1} parent=11 // pred_check
          %p361 = pneg %p253
        $region38: #{tpu_custom_call.1} parent=11 // pred_check_branch
          %363 = sbr.rel (%p361) target = $region40
        $region39: #{tpu_custom_call.1} parent=11 // pred_region
          _
        $region40: #{tpu_custom_call.1} parent=11 // pred_fallthru
          _
        // Predicated region
        $region41: #{tpu_custom_call.1} parent=11 // pred_check
          %p364 = pneg %p274
        $region42: #{tpu_custom_call.1} parent=11 // pred_check_branch
          %366 = sbr.rel (%p364) target = $region44
        $region43: #{tpu_custom_call.1} parent=11 // pred_region
          _
        $region44: #{tpu_custom_call.1} parent=11 // pred_fallthru
          _
      $region12: #{tpu_custom_call.1} parent=5 // pred_fallthru
        _
      %p367 = scmp.lt.s32.totalorder %s28, 2
      // Predicated region
      $region45: #{tpu_custom_call.1} parent=5 // pred_check
        %p368 = pneg %p367
      $region46: #{tpu_custom_call.1} parent=5 // pred_check_branch
        %370 = sbr.rel (%p368) target = $region48
      $region47: #{tpu_custom_call.1} parent=5 // pred_region
        // Predicated region
        $region49: #{tpu_custom_call.1} parent=47 // pred_check
          %p371 = pneg %p48
        $region50: #{tpu_custom_call.1} parent=47 // pred_check_branch
          %373 = sbr.rel (%p371) target = $region52
        $region51: #{tpu_custom_call.1} parent=47 // pred_region
          %s374 = sand.u32 %s38, 1
          %s375 = scalar_lea.sflag [#allocation4], %s374
          %s376 = sand.u32 %s38, 1
          %s377 = smul.addr %s376, 8
          %s378 = scalar_lea.vmem [#allocation3], %s377
          %s380 = ssub.s32 128, 128
          %381 = vsyncadd %s375, %s380
          %s382 = smul.addr %s28, 128
          %s383 = scalar_lea.hbm %s0, %s382
          %s385 = sshll.u32 %s378, 4
          %s386 = int_to_ptr.vmem [resolvable:$true] %s385
          %388 = dma.hbm_to_vmem [thread:$0]  %s383, 128, %s386, %s375
        $region52: #{tpu_custom_call.1} parent=47 // pred_fallthru
          _
        // Predicated region
        $region53: #{tpu_custom_call.1} parent=47 // pred_check
          %p389 = pneg %p74
        $region54: #{tpu_custom_call.1} parent=47 // pred_check_branch
          %391 = sbr.rel (%p389) target = $region56
        $region55: #{tpu_custom_call.1} parent=47 // pred_region
          %s392 = sand.u32 %s28, 1
          %s393 = scalar_lea.sflag [#allocation7], %s392
          %s394 = sand.u32 %s64, 1
          %s395 = smul.addr %s394, 8
          %s396 = scalar_lea.vmem [#allocation6], %s395
          %s398 = ssub.s32 128, 128
          %399 = vsyncadd %s393, %s398
          %s400 = smul.addr %s28, 128
          %s401 = scalar_lea.hbm %s1, %s400
          %s403 = sshll.u32 %s396, 4
          %s404 = int_to_ptr.vmem [resolvable:$true] %s403
          %406 = dma.hbm_to_vmem [thread:$0]  %s401, 128, %s404, %s393
        $region56: #{tpu_custom_call.1} parent=47 // pred_fallthru
          _
        // Predicated region
        $region57: #{tpu_custom_call.1} parent=47 // pred_check
          %p407 = pneg %p100
        $region58: #{tpu_custom_call.1} parent=47 // pred_check_branch
          %409 = sbr.rel (%p407) target = $region60
        $region59: #{tpu_custom_call.1} parent=47 // pred_region
          %s410 = sand.u32 %s28, 1
          %s411 = scalar_lea.sflag [#allocation7], %s410
          %s412 = sand.u32 %s90, 1
          %s413 = smul.addr %s412, 8
          %s414 = scalar_lea.vmem [#allocation8], %s413
          %s416 = ssub.s32 128, 128
          %417 = vsyncadd %s411, %s416
          %s418 = smul.addr %s28, 128
          %s419 = scalar_lea.hbm %s2, %s418
          %s421 = sshll.u32 %s414, 4
          %s422 = int_to_ptr.vmem [resolvable:$true] %s421
          %424 = dma.hbm_to_vmem [thread:$0]  %s419, 128, %s422, %s411
        $region60: #{tpu_custom_call.1} parent=47 // pred_fallthru
          _
      $region48: #{tpu_custom_call.1} parent=5 // pred_fallthru
        _
      %p425 = scmp.le.s32.totalorder 1, %s28
      %p426 = scmp.lt.s32.totalorder %s28, 3
      %p427 = pnand %p425, %p426
      %p428 = pneg %p427
      // Predicated region
      $region61: #{tpu_custom_call.1} parent=5 // pred_check
        _
      $region62: #{tpu_custom_call.1} parent=5 // pred_check_branch
        %430 = sbr.rel (%p427) target = $region64
      $region63: #{tpu_custom_call.1} parent=5 // pred_region
        %s431 = ssub.s32 %s28, 1
        %s432 = sand.u32 %s41, 1
        %s433 = scalar_lea.sflag [#allocation4], %s432
        %s434 = sand.u32 %s41, 1
        %s435 = smul.addr %s434, 8
        %s436 = scalar_lea.vmem [#allocation3], %s435
        // Predicated region
        $region65: #{tpu_custom_call.1} parent=63 // pred_check
          %p437 = pneg %p54
        $region66: #{tpu_custom_call.1} parent=63 // pred_check_branch
          %439 = sbr.rel (%p437) target = $region68
        $region67: #{tpu_custom_call.1} parent=63 // pred_region
          %440 = dma.done %s433, 128
        $region68: #{tpu_custom_call.1} parent=63 // pred_fallthru
          _
        %s441 = sand.u32 %s33, 1
        %s442 = scalar_lea.sflag [#allocation7], %s441
        %s443 = sand.u32 %s67, 1
        %s444 = smul.addr %s443, 8
        %s445 = scalar_lea.vmem [#allocation6], %s444
        // Predicated region
        $region69: #{tpu_custom_call.1} parent=63 // pred_check
          %p446 = pneg %p80
        $region70: #{tpu_custom_call.1} parent=63 // pred_check_branch
          %448 = sbr.rel (%p446) target = $region72
        $region71: #{tpu_custom_call.1} parent=63 // pred_region
          %449 = dma.done %s442, 128
        $region72: #{tpu_custom_call.1} parent=63 // pred_fallthru
          _
        %s450 = sand.u32 %s33, 1
        %s451 = scalar_lea.sflag [#allocation7], %s450
        %s452 = sand.u32 %s93, 1
        %s453 = smul.addr %s452, 8
        %s454 = scalar_lea.vmem [#allocation8], %s453
        // Predicated region
        $region73: #{tpu_custom_call.1} parent=63 // pred_check
          %p455 = pneg %p106
        $region74: #{tpu_custom_call.1} parent=63 // pred_check_branch
          %457 = sbr.rel (%p455) target = $region76
        $region75: #{tpu_custom_call.1} parent=63 // pred_region
          %458 = dma.done %s451, 128
        $region76: #{tpu_custom_call.1} parent=63 // pred_fallthru
          _
        // Predicated region
        $region77: #{tpu_custom_call.1} parent=63 // pred_check
          %p459 = pneg %p127
        $region78: #{tpu_custom_call.1} parent=63 // pred_check_branch
          %461 = sbr.rel (%p459) target = $region80
        $region79: #{tpu_custom_call.1} parent=63 // pred_region
          %462 = dma.done [#allocation10], 256
        $region80: #{tpu_custom_call.1} parent=63 // pred_fallthru
          _
        // Predicated region
        $region81: #{tpu_custom_call.1} parent=63 // pred_check
          %p463 = pneg %p211
        $region82: #{tpu_custom_call.1} parent=63 // pred_check_branch
          %465 = sbr.rel (%p463) target = $region84
        $region83: #{tpu_custom_call.1} parent=63 // pred_region
          %466 = dma.done [#allocation10], 256
        $region84: #{tpu_custom_call.1} parent=63 // pred_fallthru
          _
        // Predicated region
        $region85: #{tpu_custom_call.1} parent=63 // pred_check
          %p467 = pneg %p232
        $region86: #{tpu_custom_call.1} parent=63 // pred_check_branch
          %469 = sbr.rel (%p467) target = $region88
        $region87: #{tpu_custom_call.1} parent=63 // pred_region
          %470 = dma.done [#allocation13], 16
        $region88: #{tpu_custom_call.1} parent=63 // pred_fallthru
          _
        %s471 = sand.u32 %s41, 1
        %s472 = scalar_lea.sflag [#allocation4], %s471
        %s473 = sand.u32 %s41, 1
        %s474 = smul.addr %s473, 8
        %s475 = scalar_lea.vmem [#allocation3], %s474
        %p476 = pneg %p54
        %p477 = pneg %p51
        %s478 = sand.u32 %s33, 1
        %s479 = scalar_lea.sflag [#allocation7], %s478
        %s480 = sand.u32 %s67, 1
        %s481 = smul.addr %s480, 8
        %s482 = scalar_lea.vmem [#allocation6], %s481
        %p483 = pneg %p80
        %p484 = pneg %p77
        %s485 = sand.u32 %s33, 1
        %s486 = scalar_lea.sflag [#allocation7], %s485
        %s487 = sand.u32 %s93, 1
        %s488 = smul.addr %s487, 8
        %s489 = scalar_lea.vmem [#allocation8], %s488
        %p490 = pneg %p106
        %p491 = pneg %p103
        %p492 = pneg %p127
        %p493 = pneg %p124
        %p494 = pneg %p148
        %p495 = pneg %p145
        %p496 = pneg %p169
        %p497 = pneg %p166
        %p498 = pneg %p190
        %p499 = pneg %p187
        %p500 = pneg %p211
        %p501 = pneg %p208
        %p502 = pneg %p232
        %p503 = pneg %p229
        %p504 = pneg %p253
        %p505 = pneg %p250
        %p506 = pneg %p274
        %p507 = pneg %p271
        %p508 = pneg %p300
        %p509 = pneg %p297
        %s510 = sand.u32 %s287, 1
        %s511 = scalar_lea.sflag [#allocation5], %s510
        %s512 = sand.u32 %s287, 1
        %s513 = smul.addr %s512, 8
        %s514 = scalar_lea.vmem [#allocation14], %s513
        %v516 = vld [vmem:[%s436] sm:$0xff]
        %v517 = vpack.c.bf16 %v516, %v516
        %v518 = vld [vmem:[%s445] sm:$0xff]
        %v519 = vpack.c.bf16 %v518, %v518
        %v520 = vld [vmem:[%s454] sm:$0xff]
        %v521 = vpack.c.bf16 %v520, %v520
        %v522 = vld [vmem:[#allocation9] sm:$0xf]
        %v523 = vld [vmem:[#allocation9 + $0x4] sm:$0xf]
        %v524 = vld [vmem:[#allocation9 + $0x8] sm:$0xf]
        %v525 = vld [vmem:[#allocation9 + $0xc] sm:$0xf]
        %v526 = vld [vmem:[%s4] sm:$0x1]
        %v528 = vlaneseq
        %v529 = vshrl.u32 %v528, 7
        %v530 = vsub.s32 0, %v529
        %v531 = vrot.slane %v526, %v530
        %v537 = vunpack.c.l.b16 %v522
        %v538 = vunpack.c.l.b16 %v523
        %v539 = vunpack.c.l.b16 %v524
        %v540 = vunpack.c.l.b16 %v525
        %v541 = vpack.c.b16 %v538, %v537
        %v542 = vpack.c.b16 %v540, %v539
        %vm545 = vcmask 261120
        %v547 = vsel %vm545, %v517, 0
        %549 = vmatprep.subr.bf16.mxu0 0
        %550 = vmatpush1.bf16.msra.mxu0 %v541
        %551 = vmatprep.subr.bf16.mxu0 0
        %552 = vmatpush1.bf16.msra.mxu0 %v542
        %553 = vmatprep.subr.bf16.mxu0 0
        %554 = vmatpush1.bf16.msra.mxu0 0
        %555 = vmatprep.subr.bf16.mxu0 0
        %556 = vmatpush1.bf16.msra.mxu0 0
        %557 = vmatprep.subr.bf16.mxu0 0
        %558 = vmatpush1.bf16.msra.mxu0 0
        %559 = vmatprep.subr.bf16.mxu0 0
        %560 = vmatpush1.bf16.msra.mxu0 0
        %561 = vmatprep.subr.bf16.mxu0 0
        %562 = vmatpush1.bf16.msra.mxu0 0
        %563 = vmatprep.subr.bf16.mxu0 0
        %564 = vmatpush1.bf16.msra.mxu0 0
        %565 = vmatprep.subr.bf16.mxu0 0
        %566 = vmatpush1.bf16.msra.mxu0 0
        %567 = vmatprep.subr.bf16.mxu0 0
        %568 = vmatpush1.bf16.msra.mxu0 0
        %569 = vmatprep.subr.bf16.mxu0 0
        %570 = vmatpush1.bf16.msra.mxu0 0
        %571 = vmatprep.subr.bf16.mxu0 0
        %572 = vmatpush1.bf16.msra.mxu0 0
        %573 = vmatprep.subr.bf16.mxu0 0
        %574 = vmatpush1.bf16.msra.mxu0 0
        %575 = vmatprep.subr.bf16.mxu0 0
        %576 = vmatpush1.bf16.msra.mxu0 0
        %577 = vmatprep.subr.bf16.mxu0 0
        %578 = vmatpush1.bf16.msra.mxu0 0
        %579 = vmatprep.subr.bf16.mxu0 0
        %580 = vmatpush1.bf16.msra.mxu0 0
        %581 = vmatprep.mubr.bf16.mxu0 0
        %582 = vmatmul.mubr.bf16.gmra.mrb[0].mxu0 %v547
        %v583 = vpop.f32.mrb[0].mxu0
        %v584 = vadd.f32 %v531, %v583
        %v585 = vpop.f32.mrb[0].mxu0
        %v586 = vpop.f32.mrb[0].mxu0
        %v587 = vpop.f32.mrb[0].mxu0
        %588 = vdwg.mxu0
        %v589 = vmul.f32 %v584, 0.35355338
        %v590 = vpack.c.bf16 %v589, %v589
        %v591 = vld [vmem:[%s5] sm:$0xf]
        %v592 = vld [vmem:[%s5 + $0x4] sm:$0xf]
        %v593 = vld [vmem:[%s5 + $0x8] sm:$0xf]
        %v594 = vld [vmem:[%s5 + $0xc] sm:$0xf]
        %v595 = vld [vmem:[%s6] sm:$0x1]
        %v597 = vlaneseq
        %v598 = vshrl.u32 %v597, 7
        %v599 = vsub.s32 0, %v598
        %v600 = vrot.slane %v595, %v599
        %v606 = vunpack.c.l.b16 %v591
        %v607 = vunpack.c.l.b16 %v592
        %v608 = vunpack.c.l.b16 %v593
        %v609 = vunpack.c.l.b16 %v594
        %v610 = vpack.c.b16 %v607, %v606
        %v611 = vpack.c.b16 %v609, %v608
        %v615 = vsel %vm545, %v519, 0
        %617 = vmatprep.subr.bf16.mxu0 0
        %618 = vmatpush1.bf16.msra.mxu0 %v610
        %619 = vmatprep.subr.bf16.mxu0 0
        %620 = vmatpush1.bf16.msra.mxu0 %v611
        %621 = vmatprep.subr.bf16.mxu0 0
        %622 = vmatpush1.bf16.msra.mxu0 0
        %623 = vmatprep.subr.bf16.mxu0 0
        %624 = vmatpush1.bf16.msra.mxu0 0
        %625 = vmatprep.subr.bf16.mxu0 0
        %626 = vmatpush1.bf16.msra.mxu0 0
        %627 = vmatprep.subr.bf16.mxu0 0
        %628 = vmatpush1.bf16.msra.mxu0 0
        %629 = vmatprep.subr.bf16.mxu0 0
        %630 = vmatpush1.bf16.msra.mxu0 0
        %631 = vmatprep.subr.bf16.mxu0 0
        %632 = vmatpush1.bf16.msra.mxu0 0
        %633 = vmatprep.subr.bf16.mxu0 0
        %634 = vmatpush1.bf16.msra.mxu0 0
        %635 = vmatprep.subr.bf16.mxu0 0
        %636 = vmatpush1.bf16.msra.mxu0 0
        %637 = vmatprep.subr.bf16.mxu0 0
        %638 = vmatpush1.bf16.msra.mxu0 0
        %639 = vmatprep.subr.bf16.mxu0 0
        %640 = vmatpush1.bf16.msra.mxu0 0
        %641 = vmatprep.subr.bf16.mxu0 0
        %642 = vmatpush1.bf16.msra.mxu0 0
        %643 = vmatprep.subr.bf16.mxu0 0
        %644 = vmatpush1.bf16.msra.mxu0 0
        %645 = vmatprep.subr.bf16.mxu0 0
        %646 = vmatpush1.bf16.msra.mxu0 0
        %647 = vmatprep.subr.bf16.mxu0 0
        %648 = vmatpush1.bf16.msra.mxu0 0
        %649 = vmatprep.mubr.bf16.mxu0 0
        %650 = vmatmul.mubr.bf16.gmra.mrb[0].mxu0 %v615
        %v651 = vpop.f32.mrb[0].mxu0
        %v652 = vadd.f32 %v600, %v651
        %v653 = vpop.f32.mrb[0].mxu0
        %v654 = vpop.f32.mrb[0].mxu0
        %v655 = vpop.f32.mrb[0].mxu0
        %656 = vdwg.mxu0
        %v657 = vpack.c.bf16 %v652, %v652
        %v658 = vld [vmem:[#allocation11] sm:$0xf]
        %v659 = vld [vmem:[#allocation11 + $0x4] sm:$0xf]
        %v660 = vld [vmem:[#allocation11 + $0x8] sm:$0xf]
        %v661 = vld [vmem:[#allocation11 + $0xc] sm:$0xf]
        %v662 = vld [vmem:[#allocation12] sm:$0x1]
        %v664 = vlaneseq
        %v665 = vshrl.u32 %v664, 7
        %v666 = vsub.s32 0, %v665
        %v667 = vrot.slane %v662, %v666
        %v673 = vunpack.c.l.b16 %v658
        %v674 = vunpack.c.l.b16 %v659
        %v675 = vunpack.c.l.b16 %v660
        %v676 = vunpack.c.l.b16 %v661
        %v677 = vpack.c.b16 %v674, %v673
        %v678 = vpack.c.b16 %v676, %v675
        %v682 = vsel %vm545, %v521, 0
        %684 = vmatprep.subr.bf16.mxu0 0
        %685 = vmatpush1.bf16.msra.mxu0 %v677
        %686 = vmatprep.subr.bf16.mxu0 0
        %687 = vmatpush1.bf16.msra.mxu0 %v678
        %688 = vmatprep.subr.bf16.mxu0 0
        %689 = vmatpush1.bf16.msra.mxu0 0
        %690 = vmatprep.subr.bf16.mxu0 0
        %691 = vmatpush1.bf16.msra.mxu0 0
        %692 = vmatprep.subr.bf16.mxu0 0
        %693 = vmatpush1.bf16.msra.mxu0 0
        %694 = vmatprep.subr.bf16.mxu0 0
        %695 = vmatpush1.bf16.msra.mxu0 0
        %696 = vmatprep.subr.bf16.mxu0 0
        %697 = vmatpush1.bf16.msra.mxu0 0
        %698 = vmatprep.subr.bf16.mxu0 0
        %699 = vmatpush1.bf16.msra.mxu0 0
        %700 = vmatprep.subr.bf16.mxu0 0
        %701 = vmatpush1.bf16.msra.mxu0 0
        %702 = vmatprep.subr.bf16.mxu0 0
        %703 = vmatpush1.bf16.msra.mxu0 0
        %704 = vmatprep.subr.bf16.mxu0 0
        %705 = vmatpush1.bf16.msra.mxu0 0
        %706 = vmatprep.subr.bf16.mxu0 0
        %707 = vmatpush1.bf16.msra.mxu0 0
        %708 = vmatprep.subr.bf16.mxu0 0
        %709 = vmatpush1.bf16.msra.mxu0 0
        %710 = vmatprep.subr.bf16.mxu0 0
        %711 = vmatpush1.bf16.msra.mxu0 0
        %712 = vmatprep.subr.bf16.mxu0 0
        %713 = vmatpush1.bf16.msra.mxu0 0
        %714 = vmatprep.subr.bf16.mxu0 0
        %715 = vmatpush1.bf16.msra.mxu0 0
        %716 = vmatprep.mubr.bf16.mxu0 0
        %717 = vmatmul.mubr.bf16.gmra.mrb[0].mxu0 %v682
        %v718 = vpop.f32.mrb[0].mxu0
        %v719 = vadd.f32 %v667, %v718
        %v720 = vpop.f32.mrb[0].mxu0
        %v721 = vpop.f32.mrb[0].mxu0
        %v722 = vpop.f32.mrb[0].mxu0
        %723 = vdwg.mxu0
        %v724 = vpack.c.bf16 %v719, %v719
        %vm725 = vcmask 64512
        %v727 = vsel %vm725, %v590, 0
        %v730 = vsel %vm725, %v657, 0
        %732 = vmatprep.subr.bf16.mxu0 0
        %733 = vmatpush1.bf16.xpose.msra.mxu0 %v730
        %734 = vmatprep.subr.bf16.mxu0 0
        %735 = vmatpush1.bf16.xpose.msra.mxu0 0
        %736 = vmatprep.subr.bf16.mxu0 0
        %737 = vmatpush1.bf16.xpose.msra.mxu0 0
        %738 = vmatprep.subr.bf16.mxu0 0
        %739 = vmatpush1.bf16.xpose.msra.mxu0 0
        %740 = vmatprep.subr.bf16.mxu0 0
        %741 = vmatpush1.bf16.xpose.msra.mxu0 0
        %742 = vmatprep.subr.bf16.mxu0 0
        %743 = vmatpush1.bf16.xpose.msra.mxu0 0
        %744 = vmatprep.subr.bf16.mxu0 0
        %745 = vmatpush1.bf16.xpose.msra.mxu0 0
        %746 = vmatprep.subr.bf16.mxu0 0
        %747 = vmatpush1.bf16.xpose.msra.mxu0 0
        %748 = vmatprep.subr.bf16.mxu0 0
        %749 = vmatpush1.bf16.xpose.msra.mxu0 0
        %750 = vmatprep.subr.bf16.mxu0 0
        %751 = vmatpush1.bf16.xpose.msra.mxu0 0
        %752 = vmatprep.subr.bf16.mxu0 0
        %753 = vmatpush1.bf16.xpose.msra.mxu0 0
        %754 = vmatprep.subr.bf16.mxu0 0
        %755 = vmatpush1.bf16.xpose.msra.mxu0 0
        %756 = vmatprep.subr.bf16.mxu0 0
        %757 = vmatpush1.bf16.xpose.msra.mxu0 0
        %758 = vmatprep.subr.bf16.mxu0 0
        %759 = vmatpush1.bf16.xpose.msra.mxu0 0
        %760 = vmatprep.subr.bf16.mxu0 0
        %761 = vmatpush1.bf16.xpose.msra.mxu0 0
        %762 = vmatprep.subr.bf16.mxu0 0
        %763 = vmatpush1.bf16.xpose.msra.mxu0 0
        %764 = vmatprep.mubr.bf16.mxu0 0
        %765 = vmatmul.mubr.bf16.gmra.mrb[0].mxu0 %v727
        %v766 = vpop.f32.mrb[0].mxu0
        %v767 = vadd.f32 0.0, %v766
        %v768 = vpop.f32.mrb[0].mxu0
        %v769 = vpop.f32.mrb[0].mxu0
        %v770 = vpop.f32.mrb[0].mxu0
        %771 = vdwg.mxu0
        %v772 = vsel %vm725, %v767, -inf
        %773 = vmax.xlane.f32.xlu0 %v772
        %v774 = vpop.xlane.xlu0 %773
        %v775 = vsub.f32 %v767, %v774
        %v776 = vmul.f32 %v775, 1.442695
        %v777 = vpow.pop %v776
        %v778 = vsel %vm725, %v777, 0.0
        %779 = vadd.xlane.f32.xlu0 %v778
        %v780 = vpop.xlane.xlu0 %779
        %v781 = vpack.c.bf16 %v777, %v777
        %v783 = vsel %vm725, %v781, 0
        %vm785 = vcmask 1043456
        %v787 = vsel %vm785, %v724, 0
        %789 = vmatprep.subr.bf16.mxu0 0
        %790 = vmatpush1.bf16.msra.mxu0 %v787
        %791 = vmatprep.subr.bf16.mxu0 0
        %792 = vmatpush1.bf16.msra.mxu0 0
        %793 = vmatprep.subr.bf16.mxu0 0
        %794 = vmatpush1.bf16.msra.mxu0 0
        %795 = vmatprep.subr.bf16.mxu0 0
        %796 = vmatpush1.bf16.msra.mxu0 0
        %797 = vmatprep.subr.bf16.mxu0 0
        %798 = vmatpush1.bf16.msra.mxu0 0
        %799 = vmatprep.subr.bf16.mxu0 0
        %800 = vmatpush1.bf16.msra.mxu0 0
        %801 = vmatprep.subr.bf16.mxu0 0
        %802 = vmatpush1.bf16.msra.mxu0 0
        %803 = vmatprep.subr.bf16.mxu0 0
        %804 = vmatpush1.bf16.msra.mxu0 0
        %805 = vmatprep.subr.bf16.mxu0 0
        %806 = vmatpush1.bf16.msra.mxu0 0
        %807 = vmatprep.subr.bf16.mxu0 0
        %808 = vmatpush1.bf16.msra.mxu0 0
        %809 = vmatprep.subr.bf16.mxu0 0
        %810 = vmatpush1.bf16.msra.mxu0 0
        %811 = vmatprep.subr.bf16.mxu0 0
        %812 = vmatpush1.bf16.msra.mxu0 0
        %813 = vmatprep.subr.bf16.mxu0 0
        %814 = vmatpush1.bf16.msra.mxu0 0
        %815 = vmatprep.subr.bf16.mxu0 0
        %816 = vmatpush1.bf16.msra.mxu0 0
        %817 = vmatprep.subr.bf16.mxu0 0
        %818 = vmatpush1.bf16.msra.mxu0 0
        %819 = vmatprep.subr.bf16.mxu0 0
        %820 = vmatpush1.bf16.msra.mxu0 0
        %821 = vmatprep.mubr.bf16.mxu0 0
        %822 = vmatmul.mubr.bf16.gmra.mrb[0].mxu0 %v783
        %v823 = vpop.f32.mrb[0].mxu0
        %v824 = vadd.f32 0.0, %v823
        %v825 = vpop.f32.mrb[0].mxu0
        %v826 = vpop.f32.mrb[0].mxu0
        %v827 = vpop.f32.mrb[0].mxu0
        %828 = vdwg.mxu0
        %v829 = vrcp.pop %v780
        %v830 = vmul.f32 %v824, %v829
        %v831 = vpack.c.bf16 %v830, %v830
        %vm832 = vcmask 60416
        %833 = vst.msk [vmem:[#allocation2] sm:$0xf] %vm832, %v831
        %835 = vrot.lane.b32.xlu0 %v590, 120
        %v836 = vpop.permute.xlu0 %835
        %838 = vrot.lane.b32.xlu0 %v657, 120
        %v839 = vpop.permute.xlu0 %838
        %v841 = vsel %vm725, %v836, 0
        %v844 = vsel %vm725, %v839, 0
        %846 = vmatprep.subr.bf16.mxu0 0
        %847 = vmatpush1.bf16.xpose.msra.mxu0 %v844
        %848 = vmatprep.subr.bf16.mxu0 0
        %849 = vmatpush1.bf16.xpose.msra.mxu0 0
        %850 = vmatprep.subr.bf16.mxu0 0
        %851 = vmatpush1.bf16.xpose.msra.mxu0 0
        %852 = vmatprep.subr.bf16.mxu0 0
        %853 = vmatpush1.bf16.xpose.msra.mxu0 0
        %854 = vmatprep.subr.bf16.mxu0 0
        %855 = vmatpush1.bf16.xpose.msra.mxu0 0
        %856 = vmatprep.subr.bf16.mxu0 0
        %857 = vmatpush1.bf16.xpose.msra.mxu0 0
        %858 = vmatprep.subr.bf16.mxu0 0
        %859 = vmatpush1.bf16.xpose.msra.mxu0 0
        %860 = vmatprep.subr.bf16.mxu0 0
        %861 = vmatpush1.bf16.xpose.msra.mxu0 0
        %862 = vmatprep.subr.bf16.mxu0 0
        %863 = vmatpush1.bf16.xpose.msra.mxu0 0
        %864 = vmatprep.subr.bf16.mxu0 0
        %865 = vmatpush1.bf16.xpose.msra.mxu0 0
        %866 = vmatprep.subr.bf16.mxu0 0
        %867 = vmatpush1.bf16.xpose.msra.mxu0 0
        %868 = vmatprep.subr.bf16.mxu0 0
        %869 = vmatpush1.bf16.xpose.msra.mxu0 0
        %870 = vmatprep.subr.bf16.mxu0 0
        %871 = vmatpush1.bf16.xpose.msra.mxu0 0
        %872 = vmatprep.subr.bf16.mxu0 0
        %873 = vmatpush1.bf16.xpose.msra.mxu0 0
        %874 = vmatprep.subr.bf16.mxu0 0
        %875 = vmatpush1.bf16.xpose.msra.mxu0 0
        %876 = vmatprep.subr.bf16.mxu0 0
        %877 = vmatpush1.bf16.xpose.msra.mxu0 0
        %878 = vmatprep.mubr.bf16.mxu0 0
        %879 = vmatmul.mubr.bf16.gmra.mrb[0].mxu0 %v841
        %v880 = vpop.f32.mrb[0].mxu0
        %v881 = vadd.f32 0.0, %v880
        %v882 = vpop.f32.mrb[0].mxu0
        %v883 = vpop.f32.mrb[0].mxu0
        %v884 = vpop.f32.mrb[0].mxu0
        %885 = vdwg.mxu0
        %v886 = vsel %vm725, %v881, -inf
        %887 = vmax.xlane.f32.xlu0 %v886
        %v888 = vpop.xlane.xlu0 %887
        %v889 = vsub.f32 %v881, %v888
        %v890 = vmul.f32 %v889, 1.442695
        %v891 = vpow.pop %v890
        %v892 = vsel %vm725, %v891, 0.0
        %893 = vadd.xlane.f32.xlu0 %v892
        %v894 = vpop.xlane.xlu0 %893
        %v895 = vpack.c.bf16 %v891, %v891
        %897 = vrot.lane.b32.xlu0 %v724, 120
        %v898 = vpop.permute.xlu0 %897
        %v900 = vsel %vm725, %v895, 0
        %v903 = vsel %vm785, %v898, 0
        %905 = vmatprep.subr.bf16.mxu0 0
        %906 = vmatpush1.bf16.msra.mxu0 %v903
        %907 = vmatprep.subr.bf16.mxu0 0
        %908 = vmatpush1.bf16.msra.mxu0 0
        %909 = vmatprep.subr.bf16.mxu0 0
        %910 = vmatpush1.bf16.msra.mxu0 0
        %911 = vmatprep.subr.bf16.mxu0 0
        %912 = vmatpush1.bf16.msra.mxu0 0
        %913 = vmatprep.subr.bf16.mxu0 0
        %914 = vmatpush1.bf16.msra.mxu0 0
        %915 = vmatprep.subr.bf16.mxu0 0
        %916 = vmatpush1.bf16.msra.mxu0 0
        %917 = vmatprep.subr.bf16.mxu0 0
        %918 = vmatpush1.bf16.msra.mxu0 0
        %919 = vmatprep.subr.bf16.mxu0 0
        %920 = vmatpush1.bf16.msra.mxu0 0
        %921 = vmatprep.subr.bf16.mxu0 0
        %922 = vmatpush1.bf16.msra.mxu0 0
        %923 = vmatprep.subr.bf16.mxu0 0
        %924 = vmatpush1.bf16.msra.mxu0 0
        %925 = vmatprep.subr.bf16.mxu0 0
        %926 = vmatpush1.bf16.msra.mxu0 0
        %927 = vmatprep.subr.bf16.mxu0 0
        %928 = vmatpush1.bf16.msra.mxu0 0
        %929 = vmatprep.subr.bf16.mxu0 0
        %930 = vmatpush1.bf16.msra.mxu0 0
        %931 = vmatprep.subr.bf16.mxu0 0
        %932 = vmatpush1.bf16.msra.mxu0 0
        %933 = vmatprep.subr.bf16.mxu0 0
        %934 = vmatpush1.bf16.msra.mxu0 0
        %935 = vmatprep.subr.bf16.mxu0 0
        %936 = vmatpush1.bf16.msra.mxu0 0
        %937 = vmatprep.mubr.bf16.mxu0 0
        %938 = vmatmul.mubr.bf16.gmra.mrb[0].mxu0 %v900
        %v939 = vpop.f32.mrb[0].mxu0
        %v940 = vadd.f32 0.0, %v939
        %v941 = vpop.f32.mrb[0].mxu0
        %v942 = vpop.f32.mrb[0].mxu0
        %v943 = vpop.f32.mrb[0].mxu0
        %944 = vdwg.mxu0
        %v945 = vrcp.pop %v894
        %v946 = vmul.f32 %v940, %v945
        %v947 = vpack.c.bf16 %v946, %v946
        %v949 = vunpack.c.l.b16 %v947
        %v950 = vpack.c.b16 %v949, %v949
        %951 = vrot.lane.b32.xlu0 %v950, 8
        %v952 = vpop.permute.xlu0 %951
        %vm954 = vcmask 126016
        %955 = vst.msk [vmem:[#allocation2] sm:$0xf] %vm954, %v952
        %956 = vrot.lane.b32.xlu0 %v590, 112
        %v957 = vpop.permute.xlu0 %956
        %958 = vrot.lane.b32.xlu0 %v657, 112
        %v959 = vpop.permute.xlu0 %958
        %v961 = vsel %vm725, %v957, 0
        %v964 = vsel %vm725, %v959, 0
        %966 = vmatprep.subr.bf16.mxu0 0
        %967 = vmatpush1.bf16.xpose.msra.mxu0 %v964
        %968 = vmatprep.subr.bf16.mxu0 0
        %969 = vmatpush1.bf16.xpose.msra.mxu0 0
        %970 = vmatprep.subr.bf16.mxu0 0
        %971 = vmatpush1.bf16.xpose.msra.mxu0 0
        %972 = vmatprep.subr.bf16.mxu0 0
        %973 = vmatpush1.bf16.xpose.msra.mxu0 0
        %974 = vmatprep.subr.bf16.mxu0 0
        %975 = vmatpush1.bf16.xpose.msra.mxu0 0
        %976 = vmatprep.subr.bf16.mxu0 0
        %977 = vmatpush1.bf16.xpose.msra.mxu0 0
        %978 = vmatprep.subr.bf16.mxu0 0
        %979 = vmatpush1.bf16.xpose.msra.mxu0 0
        %980 = vmatprep.subr.bf16.mxu0 0
        %981 = vmatpush1.bf16.xpose.msra.mxu0 0
        %982 = vmatprep.subr.bf16.mxu0 0
        %983 = vmatpush1.bf16.xpose.msra.mxu0 0
        %984 = vmatprep.subr.bf16.mxu0 0
        %985 = vmatpush1.bf16.xpose.msra.mxu0 0
        %986 = vmatprep.subr.bf16.mxu0 0
        %987 = vmatpush1.bf16.xpose.msra.mxu0 0
        %988 = vmatprep.subr.bf16.mxu0 0
        %989 = vmatpush1.bf16.xpose.msra.mxu0 0
        %990 = vmatprep.subr.bf16.mxu0 0
        %991 = vmatpush1.bf16.xpose.msra.mxu0 0
        %992 = vmatprep.subr.bf16.mxu0 0
        %993 = vmatpush1.bf16.xpose.msra.mxu0 0
        %994 = vmatprep.subr.bf16.mxu0 0
        %995 = vmatpush1.bf16.xpose.msra.mxu0 0
        %996 = vmatprep.subr.bf16.mxu0 0
        %997 = vmatpush1.bf16.xpose.msra.mxu0 0
        %998 = vmatprep.mubr.bf16.mxu0 0
        %999 = vmatmul.mubr.bf16.gmra.mrb[0].mxu0 %v961
        %v1000 = vpop.f32.mrb[0].mxu0
        %v1001 = vadd.f32 0.0, %v1000
        %v1002 = vpop.f32.mrb[0].mxu0
        %v1003 = vpop.f32.mrb[0].mxu0
        %v1004 = vpop.f32.mrb[0].mxu0
        %1005 = vdwg.mxu0
        %v1006 = vsel %vm725, %v1001, -inf
        %1007 = vmax.xlane.f32.xlu0 %v1006
        %v1008 = vpop.xlane.xlu0 %1007
        %v1009 = vsub.f32 %v1001, %v1008
        %v1010 = vmul.f32 %v1009, 1.442695
        %v1011 = vpow.pop %v1010
        %v1012 = vsel %vm725, %v1011, 0.0
        %1013 = vadd.xlane.f32.xlu0 %v1012
        %v1014 = vpop.xlane.xlu0 %1013
        %v1015 = vpack.c.bf16 %v1011, %v1011
        %1016 = vrot.lane.b32.xlu0 %v724, 112
        %v1017 = vpop.permute.xlu0 %1016
        %v1019 = vsel %vm725, %v1015, 0
        %v1022 = vsel %vm785, %v1017, 0
        %1024 = vmatprep.subr.bf16.mxu0 0
        %1025 = vmatpush1.bf16.msra.mxu0 %v1022
        %1026 = vmatprep.subr.bf16.mxu0 0
        %1027 = vmatpush1.bf16.msra.mxu0 0
        %1028 = vmatprep.subr.bf16.mxu0 0
        %1029 = vmatpush1.bf16.msra.mxu0 0
        %1030 = vmatprep.subr.bf16.mxu0 0
        %1031 = vmatpush1.bf16.msra.mxu0 0
        %1032 = vmatprep.subr.bf16.mxu0 0
        %1033 = vmatpush1.bf16.msra.mxu0 0
        %1034 = vmatprep.subr.bf16.mxu0 0
        %1035 = vmatpush1.bf16.msra.mxu0 0
        %1036 = vmatprep.subr.bf16.mxu0 0
        %1037 = vmatpush1.bf16.msra.mxu0 0
        %1038 = vmatprep.subr.bf16.mxu0 0
        %1039 = vmatpush1.bf16.msra.mxu0 0
        %1040 = vmatprep.subr.bf16.mxu0 0
        %1041 = vmatpush1.bf16.msra.mxu0 0
        %1042 = vmatprep.subr.bf16.mxu0 0
        %1043 = vmatpush1.bf16.msra.mxu0 0
        %1044 = vmatprep.subr.bf16.mxu0 0
        %1045 = vmatpush1.bf16.msra.mxu0 0
        %1046 = vmatprep.subr.bf16.mxu0 0
        %1047 = vmatpush1.bf16.msra.mxu0 0
        %1048 = vmatprep.subr.bf16.mxu0 0
        %1049 = vmatpush1.bf16.msra.mxu0 0
        %1050 = vmatprep.subr.bf16.mxu0 0
        %1051 = vmatpush1.bf16.msra.mxu0 0
        %1052 = vmatprep.subr.bf16.mxu0 0
        %1053 = vmatpush1.bf16.msra.mxu0 0
        %1054 = vmatprep.subr.bf16.mxu0 0
        %1055 = vmatpush1.bf16.msra.mxu0 0
        %1056 = vmatprep.mubr.bf16.mxu0 0
        %1057 = vmatmul.mubr.bf16.gmra.mrb[0].mxu0 %v1019
        %v1058 = vpop.f32.mrb[0].mxu0
        %v1059 = vadd.f32 0.0, %v1058
        %v1060 = vpop.f32.mrb[0].mxu0
        %v1061 = vpop.f32.mrb[0].mxu0
        %v1062 = vpop.f32.mrb[0].mxu0
        %1063 = vdwg.mxu0
        %v1064 = vrcp.pop %v1014
        %v1065 = vmul.f32 %v1059, %v1064
        %v1066 = vpack.c.bf16 %v1065, %v1065
        %v1068 = vunpack.c.l.b16 %v1066
        %v1069 = vpack.c.b16 %v1068, %v1068
        %1070 = vrot.lane.b32.xlu0 %v1069, 16
        %v1071 = vpop.permute.xlu0 %1070
        %vm1073 = vcmask 191616
        %1074 = vst.msk [vmem:[#allocation2] sm:$0xf] %vm1073, %v1071
        %1075 = vrot.lane.b32.xlu0 %v590, 104
        %v1076 = vpop.permute.xlu0 %1075
        %1077 = vrot.lane.b32.xlu0 %v657, 104
        %v1078 = vpop.permute.xlu0 %1077
        %v1080 = vsel %vm725, %v1076, 0
        %v1083 = vsel %vm725, %v1078, 0
        %1085 = vmatprep.subr.bf16.mxu0 0
        %1086 = vmatpush1.bf16.xpose.msra.mxu0 %v1083
        %1087 = vmatprep.subr.bf16.mxu0 0
        %1088 = vmatpush1.bf16.xpose.msra.mxu0 0
        %1089 = vmatprep.subr.bf16.mxu0 0
        %1090 = vmatpush1.bf16.xpose.msra.mxu0 0
        %1091 = vmatprep.subr.bf16.mxu0 0
        %1092 = vmatpush1.bf16.xpose.msra.mxu0 0
        %1093 = vmatprep.subr.bf16.mxu0 0
        %1094 = vmatpush1.bf16.xpose.msra.mxu0 0
        %1095 = vmatprep.subr.bf16.mxu0 0
        %1096 = vmatpush1.bf16.xpose.msra.mxu0 0
        %1097 = vmatprep.subr.bf16.mxu0 0
        %1098 = vmatpush1.bf16.xpose.msra.mxu0 0
        %1099 = vmatprep.subr.bf16.mxu0 0
        %1100 = vmatpush1.bf16.xpose.msra.mxu0 0
        %1101 = vmatprep.subr.bf16.mxu0 0
        %1102 = vmatpush1.bf16.xpose.msra.mxu0 0
        %1103 = vmatprep.subr.bf16.mxu0 0
        %1104 = vmatpush1.bf16.xpose.msra.mxu0 0
        %1105 = vmatprep.subr.bf16.mxu0 0
        %1106 = vmatpush1.bf16.xpose.msra.mxu0 0
        %1107 = vmatprep.subr.bf16.mxu0 0
        %1108 = vmatpush1.bf16.xpose.msra.mxu0 0
        %1109 = vmatprep.subr.bf16.mxu0 0
        %1110 = vmatpush1.bf16.xpose.msra.mxu0 0
        %1111 = vmatprep.subr.bf16.mxu0 0
        %1112 = vmatpush1.bf16.xpose.msra.mxu0 0
        %1113 = vmatprep.subr.bf16.mxu0 0
        %1114 = vmatpush1.bf16.xpose.msra.mxu0 0
        %1115 = vmatprep.subr.bf16.mxu0 0
        %1116 = vmatpush1.bf16.xpose.msra.mxu0 0
        %1117 = vmatprep.mubr.bf16.mxu0 0
        %1118 = vmatmul.mubr.bf16.gmra.mrb[0].mxu0 %v1080
        %v1119 = vpop.f32.mrb[0].mxu0
        %v1120 = vadd.f32 0.0, %v1119
        %v1121 = vpop.f32.mrb[0].mxu0
        %v1122 = vpop.f32.mrb[0].mxu0
        %v1123 = vpop.f32.mrb[0].mxu0
        %1124 = vdwg.mxu0
        %v1125 = vsel %vm725, %v1120, -inf
        %1126 = vmax.xlane.f32.xlu0 %v1125
        %v1127 = vpop.xlane.xlu0 %1126
        %v1128 = vsub.f32 %v1120, %v1127
        %v1129 = vmul.f32 %v1128, 1.442695
        %v1130 = vpow.pop %v1129
        %v1131 = vsel %vm725, %v1130, 0.0
        %1132 = vadd.xlane.f32.xlu0 %v1131
        %v1133 = vpop.xlane.xlu0 %1132
        %v1134 = vpack.c.bf16 %v1130, %v1130
        %1135 = vrot.lane.b32.xlu0 %v724, 104
        %v1136 = vpop.permute.xlu0 %1135
        %v1138 = vsel %vm725, %v1134, 0
        %v1141 = vsel %vm785, %v1136, 0
        %1143 = vmatprep.subr.bf16.mxu0 0
        %1144 = vmatpush1.bf16.msra.mxu0 %v1141
        %1145 = vmatprep.subr.bf16.mxu0 0
        %1146 = vmatpush1.bf16.msra.mxu0 0
        %1147 = vmatprep.subr.bf16.mxu0 0
        %1148 = vmatpush1.bf16.msra.mxu0 0
        %1149 = vmatprep.subr.bf16.mxu0 0
        %1150 = vmatpush1.bf16.msra.mxu0 0
        %1151 = vmatprep.subr.bf16.mxu0 0
        %1152 = vmatpush1.bf16.msra.mxu0 0
        %1153 = vmatprep.subr.bf16.mxu0 0
        %1154 = vmatpush1.bf16.msra.mxu0 0
        %1155 = vmatprep.subr.bf16.mxu0 0
        %1156 = vmatpush1.bf16.msra.mxu0 0
        %1157 = vmatprep.subr.bf16.mxu0 0
        %1158 = vmatpush1.bf16.msra.mxu0 0
        %1159 = vmatprep.subr.bf16.mxu0 0
        %1160 = vmatpush1.bf16.msra.mxu0 0
        %1161 = vmatprep.subr.bf16.mxu0 0
        %1162 = vmatpush1.bf16.msra.mxu0 0
        %1163 = vmatprep.subr.bf16.mxu0 0
        %1164 = vmatpush1.bf16.msra.mxu0 0
        %1165 = vmatprep.subr.bf16.mxu0 0
        %1166 = vmatpush1.bf16.msra.mxu0 0
        %1167 = vmatprep.subr.bf16.mxu0 0
        %1168 = vmatpush1.bf16.msra.mxu0 0
        %1169 = vmatprep.subr.bf16.mxu0 0
        %1170 = vmatpush1.bf16.msra.mxu0 0
        %1171 = vmatprep.subr.bf16.mxu0 0
        %1172 = vmatpush1.bf16.msra.mxu0 0
        %1173 = vmatprep.subr.bf16.mxu0 0
        %1174 = vmatpush1.bf16.msra.mxu0 0
        %1175 = vmatprep.mubr.bf16.mxu0 0
        %1176 = vmatmul.mubr.bf16.gmra.mrb[0].mxu0 %v1138
        %v1177 = vpop.f32.mrb[0].mxu0
        %v1178 = vadd.f32 0.0, %v1177
        %v1179 = vpop.f32.mrb[0].mxu0
        %v1180 = vpop.f32.mrb[0].mxu0
        %v1181 = vpop.f32.mrb[0].mxu0
        %1182 = vdwg.mxu0
        %v1183 = vrcp.pop %v1133
        %v1184 = vmul.f32 %v1178, %v1183
        %v1185 = vpack.c.bf16 %v1184, %v1184
        %v1187 = vunpack.c.l.b16 %v1185
        %v1188 = vpack.c.b16 %v1187, %v1187
        %1189 = vrot.lane.b32.xlu0 %v1188, 24
        %v1190 = vpop.permute.xlu0 %1189
        %vm1192 = vcmask 257216
        %1193 = vst.msk [vmem:[#allocation2] sm:$0xf] %vm1192, %v1190
        %v1194 = vld [vmem:[#allocation2] sm:$0xf]
        %v1195 = vld [vmem:[%s9] sm:$0xf]
        %v1196 = vld [vmem:[%s9 + $0x4] sm:$0xf]
        %v1197 = vld [vmem:[%s9 + $0x8] sm:$0xf]
        %v1198 = vld [vmem:[%s9 + $0xc] sm:$0xf]
        %v1199 = vld [vmem:[%s10] sm:$0x1]
        %v1201 = vlaneseq
        %v1202 = vshrl.u32 %v1201, 7
        %v1203 = vsub.s32 0, %v1202
        %v1204 = vrot.slane %v1199, %v1203
        %v1210 = vunpack.c.l.b16 %v1195
        %v1211 = vunpack.c.l.b16 %v1196
        %v1212 = vunpack.c.l.b16 %v1197
        %v1213 = vunpack.c.l.b16 %v1198
        %v1214 = vpack.c.b16 %v1211, %v1210
        %v1215 = vpack.c.b16 %v1213, %v1212
        %v1219 = vsel %vm545, %v1194, 0
        %1221 = vmatprep.subr.bf16.mxu0 0
        %1222 = vmatpush1.bf16.msra.mxu0 %v1214
        %1223 = vmatprep.subr.bf16.mxu0 0
        %1224 = vmatpush1.bf16.msra.mxu0 %v1215
        %1225 = vmatprep.subr.bf16.mxu0 0
        %1226 = vmatpush1.bf16.msra.mxu0 0
        %1227 = vmatprep.subr.bf16.mxu0 0
        %1228 = vmatpush1.bf16.msra.mxu0 0
        %1229 = vmatprep.subr.bf16.mxu0 0
        %1230 = vmatpush1.bf16.msra.mxu0 0
        %1231 = vmatprep.subr.bf16.mxu0 0
        %1232 = vmatpush1.bf16.msra.mxu0 0
        %1233 = vmatprep.subr.bf16.mxu0 0
        %1234 = vmatpush1.bf16.msra.mxu0 0
        %1235 = vmatprep.subr.bf16.mxu0 0
        %1236 = vmatpush1.bf16.msra.mxu0 0
        %1237 = vmatprep.subr.bf16.mxu0 0
        %1238 = vmatpush1.bf16.msra.mxu0 0
        %1239 = vmatprep.subr.bf16.mxu0 0
        %1240 = vmatpush1.bf16.msra.mxu0 0
        %1241 = vmatprep.subr.bf16.mxu0 0
        %1242 = vmatpush1.bf16.msra.mxu0 0
        %1243 = vmatprep.subr.bf16.mxu0 0
        %1244 = vmatpush1.bf16.msra.mxu0 0
        %1245 = vmatprep.subr.bf16.mxu0 0
        %1246 = vmatpush1.bf16.msra.mxu0 0
        %1247 = vmatprep.subr.bf16.mxu0 0
        %1248 = vmatpush1.bf16.msra.mxu0 0
        %1249 = vmatprep.subr.bf16.mxu0 0
        %1250 = vmatpush1.bf16.msra.mxu0 0
        %1251 = vmatprep.subr.bf16.mxu0 0
        %1252 = vmatpush1.bf16.msra.mxu0 0
        %1253 = vmatprep.mubr.bf16.mxu0 0
        %1254 = vmatmul.mubr.bf16.gmra.mrb[0].mxu0 %v1219
        %v1255 = vpop.f32.mrb[0].mxu0
        %v1256 = vadd.f32 %v1204, %v1255
        %v1257 = vpop.f32.mrb[0].mxu0
        %v1258 = vpop.f32.mrb[0].mxu0
        %v1259 = vpop.f32.mrb[0].mxu0
        %1260 = vdwg.mxu0
        %1261 = vst.msk [vmem:[%s514] sm:$0xff] %vm545, %v1256
        %s1262 = sand.u32 %s287, 1
        %s1263 = scalar_lea.sflag [#allocation5], %s1262
        %s1264 = sand.u32 %s287, 1
        %s1265 = smul.addr %s1264, 8
        %s1266 = scalar_lea.vmem [#allocation14], %s1265
        // Predicated region
        $region89: #{tpu_custom_call.1} parent=63 // pred_check
          %p1267 = pneg %p297
        $region90: #{tpu_custom_call.1} parent=63 // pred_check_branch
          %1269 = sbr.rel (%p1267) target = $region92
        $region91: #{tpu_custom_call.1} parent=63 // pred_region
          %s1271 = ssub.s32 128, 128
          %1272 = vsyncadd %s1263, %s1271
          %s1273 = smul.addr %s33, 128
          %s1274 = scalar_lea.hbm %s11, %s1273
          %s1276 = sshll.u32 %s1266, 4
          %s1277 = int_to_ptr.vmem [resolvable:$true] %s1276
          %1279 = dma.vmem_to_hbm [thread:$0]  %s1277, 128, %s1274, %s1263
        $region92: #{tpu_custom_call.1} parent=63 // pred_fallthru
          _
      $region64: #{tpu_custom_call.1} parent=5 // pred_fallthru
        _
      %p1280 = scmp.le.s32.totalorder 2, %s28
      // Predicated region
      $region93: #{tpu_custom_call.1} parent=5 // pred_check
        %p1281 = pneg %p1280
      $region94: #{tpu_custom_call.1} parent=5 // pred_check_branch
        %1283 = sbr.rel (%p1281) target = $region96
      $region95: #{tpu_custom_call.1} parent=5 // pred_region
        %s1284 = ssub.s32 %s28, 2
        // Predicated region
        $region97: #{tpu_custom_call.1} parent=95 // pred_check
          %p1285 = pneg %p303
        $region98: #{tpu_custom_call.1} parent=95 // pred_check_branch
          %1287 = sbr.rel (%p1285) target = $region100
        $region99: #{tpu_custom_call.1} parent=95 // pred_region
          %s1288 = sand.u32 %s288, 1
          %s1289 = scalar_lea.sflag [#allocation5], %s1288
          %s1290 = sand.u32 %s288, 1
          %s1291 = smul.addr %s1290, 8
          %s1292 = scalar_lea.vmem [#allocation14], %s1291
          %1293 = dma.done %s1289, 128
        $region100: #{tpu_custom_call.1} parent=95 // pred_fallthru
          _
      $region96: #{tpu_custom_call.1} parent=5 // pred_fallthru
        _
    $region6: #{tpu_custom_call.1} parent=1 // loop_footer
      %s32 = sadd.s32 1, %s28
    $region7: #{tpu_custom_call.1} parent=1 // loop_footer_branch
      %27 = sbr.rel target = $region3
    $region8: #{tpu_custom_call.1} parent=1 // loop_exit
      _
    %1294 = vsyncpa [#allocation4], 1
    %s1295 = scalar_lea.sflag [#allocation4], 1
    %1296 = vsyncpa %s1295, 1
    %1297 = vsyncpa [#allocation7], 1
    %s1298 = scalar_lea.sflag [#allocation7], 1
    %1299 = vsyncpa %s1298, 1
    %1300 = vsyncpa [#allocation10], 1
    %1301 = vsyncpa [#allocation13], 1
    %1302 = vsyncpa [#allocation5], 1
    %s1303 = scalar_lea.sflag [#allocation5], 1
    %1304 = vsyncpa %s1303, 1

</llo_original>
